<compile_context>
chip_gen: v6e
topology: v6e:2x2x1
jax: 0.10.0
libtpu: 0.0.40
codegen_flags: <defaults>
</compile_context>

<pallas_src>
from functools import partial

import jax
import jax.numpy as jnp
from jax.experimental import pallas as pl
from jax.experimental.pallas import tpu as pltpu

# --- model hyper-parameters (config) ----------------------------------------
HIDDEN = 32          # hidden_dim
NODE_DIM = 16        # config['node_dim']
EDGE_DIM = 8         # config['edge_dim']
SOLV_NODE_DIM = 12   # solvent node feature dim
TARGET_DIM = 2       # config['target_dim']
MPNN_LAYERS = 4      # conv_layers
OUT_SUB = 8          # TARGET_DIM rows padded up to one sublane tile


# --- fused forward kernel -----------------------------------------------------
def mpnn_solv_kernel(
    node_ref, edge_ref, src_ref, dst_ref, gid_ref, solv_ref, sgid_ref,
    w_node_ref, b_node_ref, w_edge_ref, b_edge_ref,
    w_msg_a_ref, w_msg_b_ref, b_msg_ref,
    w_upd_a_ref, w_upd_b_ref, b_upd_ref,
    w_l1_ref, b_l1_ref, w_l2_ref, b_l2_ref,
    w_solv_ref, b_solv_ref,
    w_out_a_ref, w_out_b_ref, b_out_ref,
    out_ref,
    h_ref, agg_ref,
):
    f32 = jnp.float32
    relu = lambda x: jnp.maximum(x, 0.0)
    dotf = partial(jnp.dot, preferred_element_type=jnp.float32)

    l = pl.program_id(0)           # MPNN layer
    b = pl.program_id(1)           # edge block (reduction axis)
    last_l = pl.num_programs(0) - 1
    last_b = pl.num_programs(1) - 1

    n_pad = h_ref.shape[1]
    e_blk = src_ref.shape[1]
    g_pad = out_ref.shape[1]
    ns_pad = sgid_ref.shape[0]

    # ---- node embedding once, at the very first grid step --------------------
    @pl.when(jnp.logical_and(l == 0, b == 0))
    def _init_h():
        h_ref[...] = dotf(w_node_ref[...], node_ref[...]) + b_node_ref[...]

    # ---- zero the per-layer message accumulator -------------------------------
    @pl.when(b == 0)
    def _zero_agg():
        agg_ref[...] = jnp.zeros_like(agg_ref)

    # ---- per-edge-block message computation -----------------------------------
    # edge embedding for this block (tiny K=EDGE_DIM dot, recomputed per layer)
    eT = dotf(w_edge_ref[...], edge_ref[...]) + b_edge_ref[...]          # (H, Eb)

    # gather one-hot built per tile: S[n, eb] = 1 iff src[eb] == n
    # (padded edges carry src = -1 -> all-zero column -> zero gathered state)
    S = (jax.lax.broadcasted_iota(jnp.int32, (n_pad, e_blk), 0)
         == src_ref[...]).astype(f32)                                    # (N, Eb)
    h_src = dotf(h_ref[...], S)                                          # (H, Eb)

    # message MLP on concat([h_src, e]) as two K=H matmuls (no concat)
    mT = relu(dotf(w_msg_a_ref[l], h_src)
              + dotf(w_msg_b_ref[l], eT) + b_msg_ref[l])                 # (H, Eb)

    # scatter-add one-hot: D[eb, n] = 1 iff dst[eb] == n (padded edges dropped)
    D = (jax.lax.broadcasted_iota(jnp.int32, (e_blk, n_pad), 1)
         == dst_ref[...]).astype(f32)                                    # (Eb, N)
    agg_ref[...] += dotf(mT, D)                                          # (H, N)

    # ---- node update after the last edge block of this layer ------------------
    @pl.when(b == last_b)
    def _update_h():
        h_ref[...] = relu(dotf(w_upd_a_ref[l], h_ref[...])
                          + dotf(w_upd_b_ref[l], agg_ref[...]) + b_upd_ref[l])
        # TODO(synk): dropout is a no-op in eval mode; the batch-norm flag of
        # MPNNs (False) is treated as identity.

    # ---- pooling + readout + solvent after the final layer --------------------
    @pl.when(jnp.logical_and(l == last_l, b == last_b))
    def _readout():
        hT = h_ref[...]                                                  # (H, N)
        # SumPooling over solute graphs: P[n, g] = 1 iff graph_id[n] == g
        P = (jax.lax.broadcasted_iota(jnp.int32, (n_pad, g_pad), 1)
             == gid_ref[...]).astype(f32)
        hg = dotf(hT, P)                                                 # (H, G)

        # Linears readout MLP (2 layers, ReLU)
        x = relu(dotf(w_l1_ref[...], hg) + b_l1_ref[...])
        x = relu(dotf(w_l2_ref[...], x) + b_l2_ref[...])                 # (H, G)

        # SolventLayer: embed + ReLU, sum-pool, concat (as split matmuls), linear
        s = relu(dotf(w_solv_ref[...], solv_ref[...]) + b_solv_ref[...])  # (H, Ns)
        Ps = (jax.lax.broadcasted_iota(jnp.int32, (ns_pad, g_pad), 1)
              == sgid_ref[...]).astype(f32)
        sg = dotf(s, Ps)                                                 # (H, G)

        out = (dotf(w_out_a_ref[...], x) + dotf(w_out_b_ref[...], sg)
               + b_out_ref[...])                                         # (OUT_SUB, G)
        out_ref[...] = out.astype(out_ref.dtype)


# --- wrapper ------------------------------------------------------------------
def _pad_to(x, rows, cols):
    out = jnp.zeros((rows, cols), x.dtype)
    return out.at[:x.shape[0], :x.shape[1]].set(x)


def mpnn_with_solv(node_feats, edge_feats, src, dst, graph_ids,
                   solv_node_feats, solv_graph_ids, params, num_graphs,
                   edge_block=512):
    H = HIDDEN
    f32 = jnp.float32
    N, E = node_feats.shape[0], edge_feats.shape[0]
    Ns, G = solv_node_feats.shape[0], num_graphs

    def rup(x, m):
        return ((max(x, 1) + m - 1) // m) * m

    n_pad = rup(N, 128)
    ns_pad = rup(Ns, 128)
    g_pad = rup(G, 128)
    e_blk = min(max(128, (edge_block // 128) * 128), rup(E, 128))
    e_pad = rup(E, e_blk)
    n_eblocks = e_pad // e_blk

    # --- transposed + padded activations (big dims on the 128-lane axis) ------
    nodeT = _pad_to(node_feats.T.astype(f32), NODE_DIM, n_pad)
    edgeT = _pad_to(edge_feats.T.astype(f32), EDGE_DIM, e_pad)
    solvT = _pad_to(solv_node_feats.T.astype(f32), SOLV_NODE_DIM, ns_pad)

    # index vectors; padded slots carry -1 so their one-hot rows/cols are zero
    def pad_idx(v, n, shape):
        out = jnp.full((n,), -1, jnp.int32).at[:v.shape[0]].set(v.astype(jnp.int32))
        return out.reshape(shape)

    src_i = pad_idx(src, e_pad, (1, e_pad))        # lane-dense row
    dst_i = pad_idx(dst, e_pad, (e_pad, 1))
    gid_i = pad_idx(graph_ids, n_pad, (n_pad, 1))
    sgid_i = pad_idx(solv_graph_ids, ns_pad, (ns_pad, 1))

    # --- transposed weights; (2H, .) concat weights split into two H halves ----
    wT = lambda w: jnp.asarray(w, f32).T
    bT = lambda bias: jnp.asarray(bias, f32).reshape(-1, 1)

    w_msg_aT = jnp.transpose(params['w_msg'][:, :H, :], (0, 2, 1))   # (L, H, H)
    w_msg_bT = jnp.transpose(params['w_msg'][:, H:, :], (0, 2, 1))
    b_msgT = jnp.transpose(params['b_msg'], (0, 2, 1))               # (L, H, 1)
    w_upd_aT = jnp.transpose(params['w_upd'][:, :H, :], (0, 2, 1))
    w_upd_bT = jnp.transpose(params['w_upd'][:, H:, :], (0, 2, 1))
    b_updT = jnp.transpose(params['b_upd'], (0, 2, 1))

    w_out_aT = _pad_to(params['w_out'][:H].T.astype(f32), OUT_SUB, H)
    w_out_bT = _pad_to(params['w_out'][H:].T.astype(f32), OUT_SUB, H)
    b_outT = _pad_to(params['b_out'].T.astype(f32), OUT_SUB, 1)

    args = (
        nodeT, edgeT, src_i, dst_i, gid_i, solvT, sgid_i,
        wT(params['w_node']), bT(params['b_node']),
        wT(params['w_edge']), bT(params['b_edge']),
        w_msg_aT, w_msg_bT, b_msgT,
        w_upd_aT, w_upd_bT, b_updT,
        wT(params['w_l1']), bT(params['b_l1']),
        wT(params['w_l2']), bT(params['b_l2']),
        wT(params['w_solv']), bT(params['b_solv']),
        w_out_aT, w_out_bT, b_outT,
    )

    const2 = lambda shape: pl.BlockSpec(shape, lambda l, b: (0, 0))
    const3 = lambda shape: pl.BlockSpec(shape, lambda l, b: (0, 0, 0))

    in_specs = [
        const2((NODE_DIM, n_pad)),                               # nodeT
        pl.BlockSpec((EDGE_DIM, e_blk), lambda l, b: (0, b)),    # edgeT (tiled)
        pl.BlockSpec((1, e_blk), lambda l, b: (0, b)),           # src   (tiled)
        pl.BlockSpec((e_blk, 1), lambda l, b: (b, 0)),           # dst   (tiled)
        const2((n_pad, 1)),                                      # graph ids
        const2((SOLV_NODE_DIM, ns_pad)),                         # solvT
        const2((ns_pad, 1)),                                     # solv graph ids
        const2((H, NODE_DIM)), const2((H, 1)),                   # node embedding
        const2((H, EDGE_DIM)), const2((H, 1)),                   # edge embedding
        const3((MPNN_LAYERS, H, H)), const3((MPNN_LAYERS, H, H)),
        const3((MPNN_LAYERS, H, 1)),                             # message MLP
        const3((MPNN_LAYERS, H, H)), const3((MPNN_LAYERS, H, H)),
        const3((MPNN_LAYERS, H, 1)),                             # node update
        const2((H, H)), const2((H, 1)),                          # Linears l1
        const2((H, H)), const2((H, 1)),                          # Linears l2
        const2((H, SOLV_NODE_DIM)), const2((H, 1)),              # solvent embed
        const2((OUT_SUB, H)), const2((OUT_SUB, H)), const2((OUT_SUB, 1)),  # out
    ]
    out_spec = pl.BlockSpec((OUT_SUB, g_pad), lambda l, b: (0, 0))

    # advisory cost estimate and VMEM budget from actual padded sizes
    flops = (
        2 * NODE_DIM * H * n_pad
        + MPNN_LAYERS * (2 * EDGE_DIM * H * e_pad
                         + 2 * H * n_pad * e_pad          # gather
                         + 2 * (2 * H) * H * e_pad        # message MLP
                         + 2 * H * e_pad * n_pad          # scatter-add
                         + 2 * (2 * H) * H * n_pad)       # node update
        + 2 * H * n_pad * g_pad + 2 * (2 * H) * H * g_pad
        + 2 * SOLV_NODE_DIM * H * ns_pad + 2 * H * ns_pad * g_pad
        + 2 * (2 * H) * OUT_SUB * g_pad
    )
    arg_bytes = sum(int(a.size) * a.dtype.itemsize for a in args)
    out_bytes = OUT_SUB * g_pad * 4
    scratch_bytes = 2 * H * n_pad * 4
    mask_bytes = 4 * (2 * n_pad * e_blk + n_pad * g_pad + ns_pad * g_pad)
    vmem_limit = int(min(48 * 2**20,
                         max(8 * 2**20,
                             2 * (arg_bytes + scratch_bytes + mask_bytes) + (1 << 20))))

    out_padded = pl.pallas_call(
        mpnn_solv_kernel,
        out_shape=jax.ShapeDtypeStruct((OUT_SUB, g_pad), jnp.float32),
        grid_spec=pltpu.PrefetchScalarGridSpec(
            num_scalar_prefetch=0,
            grid=(MPNN_LAYERS, n_eblocks),
            in_specs=in_specs,
            out_specs=out_spec,
            scratch_shapes=[pltpu.VMEM((H, n_pad), jnp.float32),   # node state h
                            pltpu.VMEM((H, n_pad), jnp.float32)],  # message accum
        ),
        compiler_params=pltpu.CompilerParams(
            dimension_semantics=("arbitrary", "arbitrary"),
            vmem_limit_bytes=vmem_limit),
        cost_estimate=pl.CostEstimate(flops=int(flops), transcendentals=0,
                                      bytes_accessed=int(arg_bytes + out_bytes)),
    )(*args)

    return out_padded[:TARGET_DIM, :G].T            # (G, TARGET_DIM)


# --- pure-JAX reference (exact gather/scatter semantics) ------------------------
def reference_forward(node_feats, edge_feats, src, dst, graph_ids,
                      solv_node_feats, solv_graph_ids, params, num_graphs):
    relu = jax.nn.relu
    h = node_feats @ params['w_node'] + params['b_node']
    e = edge_feats @ params['w_edge'] + params['b_edge']
    for l in range(MPNN_LAYERS):
        h_src = h[src]
        m = relu(jnp.concatenate([h_src, e], -1) @ params['w_msg'][l]
                 + params['b_msg'][l])
        agg = jax.ops.segment_sum(m, dst, num_segments=h.shape[0])
        h = relu(jnp.concatenate([h, agg], -1) @ params['w_upd'][l]
                 + params['b_upd'][l])
    hg = jax.ops.segment_sum(h, graph_ids, num_segments=num_graphs)
    x = relu(hg @ params['w_l1'] + params['b_l1'])
    x = relu(x @ params['w_l2'] + params['b_l2'])
    s = relu(solv_node_feats @ params['w_solv'] + params['b_solv'])
    sg = jax.ops.segment_sum(s, solv_graph_ids, num_segments=num_graphs)
    return jnp.concatenate([x, sg], -1) @ params['w_out'] + params['b_out']


# --- deterministic parameter init ----------------------------------------------
def init_params(key):
    H = HIDDEN
    ks = jax.random.split(key, 16)

    def lin(k, fan_in, fan_out):
        scale = 1.0 / jnp.sqrt(jnp.float32(fan_in))
        return jax.random.uniform(k, (fan_in, fan_out), jnp.float32, -scale, scale)

    return {
        'w_node': lin(ks[0], NODE_DIM, H),
        'b_node': jnp.zeros((1, H), jnp.float32),
        'w_edge': lin(ks[1], EDGE_DIM, H),
        'b_edge': jnp.zeros((1, H), jnp.float32),
        'w_msg': jnp.stack([lin(k, 2 * H, H)
                            for k in jax.random.split(ks[2], MPNN_LAYERS)]),
        'b_msg': jnp.zeros((MPNN_LAYERS, 1, H), jnp.float32),
        'w_upd': jnp.stack([lin(k, 2 * H, H)
                            for k in jax.random.split(ks[3], MPNN_LAYERS)]),
        'b_upd': jnp.zeros((MPNN_LAYERS, 1, H), jnp.float32),
        'w_l1': lin(ks[4], H, H),
        'b_l1': jnp.zeros((1, H), jnp.float32),
        'w_l2': lin(ks[5], H, H),
        'b_l2': jnp.zeros((1, H), jnp.float32),
        'w_solv': lin(ks[6], SOLV_NODE_DIM, H),
        'b_solv': jnp.zeros((1, H), jnp.float32),
        'w_out': lin(ks[7], 2 * H, TARGET_DIM),
        'b_out': jnp.zeros((1, TARGET_DIM), jnp.float32),
    }


if __name__ == "__main__":
    key = jax.random.PRNGKey(0)
    k_param, k_node, k_edge, k_solv = jax.random.split(key, 4)

    # two solute graphs of 4 nodes each, 6 directed edges per graph;
    # two solvent graphs of 3 nodes each.
    G = 2
    N = 8
    E = 12
    Ns = 6

    node_feats = jax.random.normal(k_node, (N, NODE_DIM), jnp.float32)
    edge_feats = jax.random.normal(k_edge, (E, EDGE_DIM), jnp.float32)
    solv_node_feats = jax.random.normal(k_solv, (Ns, SOLV_NODE_DIM), jnp.float32)

    src = jnp.array([0, 1, 2, 3, 0, 2,   4, 5, 6, 7, 4, 6], jnp.int32)
    dst = jnp.array([1, 2, 3, 0, 2, 0,   5, 6, 7, 4, 6, 4], jnp.int32)
    graph_ids = jnp.array([0, 0, 0, 0, 1, 1, 1, 1], jnp.int32)
    solv_graph_ids = jnp.array([0, 0, 0, 1, 1, 1], jnp.int32)

    params = init_params(k_param)

    out = mpnn_with_solv(node_feats, edge_feats, src, dst, graph_ids,
                         solv_node_feats, solv_graph_ids, params, num_graphs=G)
    out = jax.block_until_ready(out)
    assert out.shape == (G, TARGET_DIM)
    assert bool(jnp.all(jnp.isfinite(out)))

    # correctness check against a plain-JAX reference (exact gather/scatter)
    with jax.default_matmul_precision('float32'):
        ref = reference_forward(node_feats, edge_feats, src, dst, graph_ids,
                                solv_node_feats, solv_graph_ids, params, G)
    assert jnp.allclose(out, ref, rtol=5e-2, atol=5e-2), (out, ref)

    print("KERNEL_OK")
</pallas_src>

<mosaic_0001>
module attributes {stable_mosaic.version = 11 : i64} {
  func.func @mpnn_solv_kernel(%arg0: i32, %arg1: i32, %arg2: memref<16x128xf32, #tpu.memory_space<vmem>>, %arg3: memref<8x128xf32, #tpu.memory_space<vmem>>, %arg4: memref<1x128xi32, #tpu.memory_space<vmem>>, %arg5: memref<128x1xi32, #tpu.memory_space<vmem>>, %arg6: memref<128x1xi32, #tpu.memory_space<vmem>>, %arg7: memref<12x128xf32, #tpu.memory_space<vmem>>, %arg8: memref<128x1xi32, #tpu.memory_space<vmem>>, %arg9: memref<32x16xf32, #tpu.memory_space<vmem>>, %arg10: memref<32x1xf32, #tpu.memory_space<vmem>>, %arg11: memref<32x8xf32, #tpu.memory_space<vmem>>, %arg12: memref<32x1xf32, #tpu.memory_space<vmem>>, %arg13: memref<4x32x32xf32, #tpu.memory_space<vmem>>, %arg14: memref<4x32x32xf32, #tpu.memory_space<vmem>>, %arg15: memref<4x32x1xf32, #tpu.memory_space<vmem>>, %arg16: memref<4x32x32xf32, #tpu.memory_space<vmem>>, %arg17: memref<4x32x32xf32, #tpu.memory_space<vmem>>, %arg18: memref<4x32x1xf32, #tpu.memory_space<vmem>>, %arg19: memref<32x32xf32, #tpu.memory_space<vmem>>, %arg20: memref<32x1xf32, #tpu.memory_space<vmem>>, %arg21: memref<32x32xf32, #tpu.memory_space<vmem>>, %arg22: memref<32x1xf32, #tpu.memory_space<vmem>>, %arg23: memref<32x12xf32, #tpu.memory_space<vmem>>, %arg24: memref<32x1xf32, #tpu.memory_space<vmem>>, %arg25: memref<8x32xf32, #tpu.memory_space<vmem>>, %arg26: memref<8x32xf32, #tpu.memory_space<vmem>>, %arg27: memref<8x1xf32, #tpu.memory_space<vmem>>, %arg28: memref<8x128xf32, #tpu.memory_space<vmem>>, %arg29: memref<32x128xf32, #tpu.memory_space<vmem>>, %arg30: memref<32x128xf32, #tpu.memory_space<vmem>>) attributes {dimension_semantics = [#tpu.dimension_semantics<arbitrary>, #tpu.dimension_semantics<arbitrary>], iteration_bounds = array<i64: 4, 1>, scalar_prefetch = 0 : i64, scratch_operands = 2 : i64, tpu.core_type = #tpu.core_type<tc>, window_params = [{pipeline_mode = #tpu.pipeline_mode<synchronous>, transform_indices = @transform_0, window_bounds = array<i64: 16, 128>}, {transform_indices = @transform_1, window_bounds = array<i64: 8, 128>}, {transform_indices = @transform_2, window_bounds = array<i64: 1, 128>}, {transform_indices = @transform_3, window_bounds = array<i64: 128, 1>}, {pipeline_mode = #tpu.pipeline_mode<synchronous>, transform_indices = @transform_4, window_bounds = array<i64: 128, 1>}, {pipeline_mode = #tpu.pipeline_mode<synchronous>, transform_indices = @transform_5, window_bounds = array<i64: 12, 128>}, {pipeline_mode = #tpu.pipeline_mode<synchronous>, transform_indices = @transform_6, window_bounds = array<i64: 128, 1>}, {pipeline_mode = #tpu.pipeline_mode<synchronous>, transform_indices = @transform_7, window_bounds = array<i64: 32, 16>}, {pipeline_mode = #tpu.pipeline_mode<synchronous>, transform_indices = @transform_8, window_bounds = array<i64: 32, 1>}, {pipeline_mode = #tpu.pipeline_mode<synchronous>, transform_indices = @transform_9, window_bounds = array<i64: 32, 8>}, {pipeline_mode = #tpu.pipeline_mode<synchronous>, transform_indices = @transform_10, window_bounds = array<i64: 32, 1>}, {pipeline_mode = #tpu.pipeline_mode<synchronous>, transform_indices = @transform_11, window_bounds = array<i64: 4, 32, 32>}, {pipeline_mode = #tpu.pipeline_mode<synchronous>, transform_indices = @transform_12, window_bounds = array<i64: 4, 32, 32>}, {pipeline_mode = #tpu.pipeline_mode<synchronous>, transform_indices = @transform_13, window_bounds = array<i64: 4, 32, 1>}, {pipeline_mode = #tpu.pipeline_mode<synchronous>, transform_indices = @transform_14, window_bounds = array<i64: 4, 32, 32>}, {pipeline_mode = #tpu.pipeline_mode<synchronous>, transform_indices = @transform_15, window_bounds = array<i64: 4, 32, 32>}, {pipeline_mode = #tpu.pipeline_mode<synchronous>, transform_indices = @transform_16, window_bounds = array<i64: 4, 32, 1>}, {pipeline_mode = #tpu.pipeline_mode<synchronous>, transform_indices = @transform_17, window_bounds = array<i64: 32, 32>}, {pipeline_mode = #tpu.pipeline_mode<synchronous>, transform_indices = @transform_18, window_bounds = array<i64: 32, 1>}, {pipeline_mode = #tpu.pipeline_mode<synchronous>, transform_indices = @transform_19, window_bounds = array<i64: 32, 32>}, {pipeline_mode = #tpu.pipeline_mode<synchronous>, transform_indices = @transform_20, window_bounds = array<i64: 32, 1>}, {pipeline_mode = #tpu.pipeline_mode<synchronous>, transform_indices = @transform_21, window_bounds = array<i64: 32, 12>}, {pipeline_mode = #tpu.pipeline_mode<synchronous>, transform_indices = @transform_22, window_bounds = array<i64: 32, 1>}, {pipeline_mode = #tpu.pipeline_mode<synchronous>, transform_indices = @transform_23, window_bounds = array<i64: 8, 32>}, {pipeline_mode = #tpu.pipeline_mode<synchronous>, transform_indices = @transform_24, window_bounds = array<i64: 8, 32>}, {pipeline_mode = #tpu.pipeline_mode<synchronous>, transform_indices = @transform_25, window_bounds = array<i64: 8, 1>}, {pipeline_mode = #tpu.pipeline_mode<synchronous>, transform_indices = @transform_26, window_bounds = array<i64: 8, 128>}]} {
    %c0_i32 = arith.constant 0 : i32
    %0 = arith.cmpi eq, %arg0, %c0_i32 : i32
    %c0_i32_0 = arith.constant 0 : i32
    %1 = arith.cmpi eq, %arg1, %c0_i32_0 : i32
    %2 = arith.andi %0, %1 : i1
    %3 = arith.extui %2 : i1 to i32
    %c0_i32_1 = arith.constant 0 : i32
    %4 = arith.cmpi ne, %3, %c0_i32_1 : i32
    scf.if %4 {
      %c0_34 = arith.constant 0 : index
      %c0_35 = arith.constant 0 : index
      %56 = vector.load %arg9[%c0_34, %c0_35] : memref<32x16xf32, #tpu.memory_space<vmem>>, vector<32x16xf32>
      %c0_36 = arith.constant 0 : index
      %c0_37 = arith.constant 0 : index
      %57 = vector.load %arg2[%c0_36, %c0_37] : memref<16x128xf32, #tpu.memory_space<vmem>>, vector<16x128xf32>
      %cst_38 = arith.constant dense<0.000000e+00> : vector<32x128xf32>
      %58 = tpu.matmul %56, %57, %cst_38 {dimension_numbers = #tpu.dot_dimension_numbers<[1], [0], [0], [1], [0, 0, 1, 1], [], []>} : vector<32x16xf32>, vector<16x128xf32>, vector<32x128xf32> -> vector<32x128xf32>
      %c0_39 = arith.constant 0 : index
      %c0_40 = arith.constant 0 : index
      %59 = vector.load %arg10[%c0_39, %c0_40] : memref<32x1xf32, #tpu.memory_space<vmem>>, vector<32x1xf32>
      %60 = vector.broadcast %59 : vector<32x1xf32> to vector<32x128xf32>
      %61 = arith.addf %58, %60 : vector<32x128xf32>
      %c0_41 = arith.constant 0 : index
      %c0_42 = arith.constant 0 : index
      %62 = vector.load %arg29[%c0_41, %c0_42] : memref<32x128xf32, #tpu.memory_space<vmem>>, vector<32x128xf32>
      tpu.vector_store %arg29[%c0_41, %c0_42], %61 {strides = array<i32>} : memref<32x128xf32, #tpu.memory_space<vmem>>, vector<32x128xf32>,
    } else {
    }
    %c0_i32_2 = arith.constant 0 : i32
    %5 = arith.cmpi eq, %arg1, %c0_i32_2 : i32
    %6 = arith.extui %5 : i1 to i32
    %c0_i32_3 = arith.constant 0 : i32
    %7 = arith.cmpi ne, %6, %c0_i32_3 : i32
    scf.if %7 {
      %cst_34 = arith.constant 0.000000e+00 : f32
      %56 = vector.broadcast %cst_34 : f32 to vector<32x128xf32>
      %c0_35 = arith.constant 0 : index
      %c0_36 = arith.constant 0 : index
      %57 = vector.load %arg30[%c0_35, %c0_36] : memref<32x128xf32, #tpu.memory_space<vmem>>, vector<32x128xf32>
      tpu.vector_store %arg30[%c0_35, %c0_36], %56 {strides = array<i32>} : memref<32x128xf32, #tpu.memory_space<vmem>>, vector<32x128xf32>,
    } else {
    }
    %c0 = arith.constant 0 : index
    %c0_4 = arith.constant 0 : index
    %8 = vector.load %arg11[%c0, %c0_4] : memref<32x8xf32, #tpu.memory_space<vmem>>, vector<32x8xf32>
    %c0_5 = arith.constant 0 : index
    %c0_6 = arith.constant 0 : index
    %9 = vector.load %arg3[%c0_5, %c0_6] : memref<8x128xf32, #tpu.memory_space<vmem>>, vector<8x128xf32>
    %cst = arith.constant dense<0.000000e+00> : vector<32x128xf32>
    %10 = tpu.matmul %8, %9, %cst {dimension_numbers = #tpu.dot_dimension_numbers<[1], [0], [0], [1], [0, 0, 1, 1], [], []>} : vector<32x8xf32>, vector<8x128xf32>, vector<32x128xf32> -> vector<32x128xf32>
    %c0_7 = arith.constant 0 : index
    %c0_8 = arith.constant 0 : index
    %11 = vector.load %arg12[%c0_7, %c0_8] : memref<32x1xf32, #tpu.memory_space<vmem>>, vector<32x1xf32>
    %12 = vector.broadcast %11 : vector<32x1xf32> to vector<32x128xf32>
    %13 = arith.addf %10, %12 : vector<32x128xf32>
    %14 = tpu.iota {dimensions = array<i32: 0>} : vector<128x128xi32>
    %c0_9 = arith.constant 0 : index
    %c0_10 = arith.constant 0 : index
    %15 = vector.load %arg4[%c0_9, %c0_10] : memref<1x128xi32, #tpu.memory_space<vmem>>, vector<1x128xi32>
    %16 = vector.broadcast %15 : vector<1x128xi32> to vector<128x128xi32>
    %17 = arith.cmpi eq, %14, %16 : vector<128x128xi32>
    %18 = arith.extui %17 : vector<128x128xi1> to vector<128x128xi32>
    %19 = arith.sitofp %18 : vector<128x128xi32> to vector<128x128xf32>
    %c0_11 = arith.constant 0 : index
    %c0_12 = arith.constant 0 : index
    %20 = vector.load %arg29[%c0_11, %c0_12] : memref<32x128xf32, #tpu.memory_space<vmem>>, vector<32x128xf32>
    %cst_13 = arith.constant dense<0.000000e+00> : vector<32x128xf32>
    %21 = tpu.matmul %20, %19, %cst_13 {dimension_numbers = #tpu.dot_dimension_numbers<[1], [0], [0], [1], [0, 0, 1, 1], [], []>} : vector<32x128xf32>, vector<128x128xf32>, vector<32x128xf32> -> vector<32x128xf32>
    %22 = arith.index_cast %arg0 : i32 to index
    %c0_14 = arith.constant 0 : index
    %c0_15 = arith.constant 0 : index
    %23 = vector.load %arg13[%22, %c0_14, %c0_15] : memref<4x32x32xf32, #tpu.memory_space<vmem>>, vector<1x32x32xf32>
    %24 = vector.shape_cast %23 : vector<1x32x32xf32> to vector<32x32xf32>
    %cst_16 = arith.constant dense<0.000000e+00> : vector<32x128xf32>
    %25 = tpu.matmul %24, %21, %cst_16 {dimension_numbers = #tpu.dot_dimension_numbers<[1], [0], [0], [1], [0, 0, 1, 1], [], []>} : vector<32x32xf32>, vector<32x128xf32>, vector<32x128xf32> -> vector<32x128xf32>
    %26 = arith.index_cast %arg0 : i32 to index
    %c0_17 = arith.constant 0 : index
    %c0_18 = arith.constant 0 : index
    %27 = vector.load %arg14[%26, %c0_17, %c0_18] : memref<4x32x32xf32, #tpu.memory_space<vmem>>, vector<1x32x32xf32>
    %28 = vector.shape_cast %27 : vector<1x32x32xf32> to vector<32x32xf32>
    %cst_19 = arith.constant dense<0.000000e+00> : vector<32x128xf32>
    %29 = tpu.matmul %28, %13, %cst_19 {dimension_numbers = #tpu.dot_dimension_numbers<[1], [0], [0], [1], [0, 0, 1, 1], [], []>} : vector<32x32xf32>, vector<32x128xf32>, vector<32x128xf32> -> vector<32x128xf32>
    %30 = arith.addf %25, %29 : vector<32x128xf32>
    %31 = arith.index_cast %arg0 : i32 to index
    %c0_20 = arith.constant 0 : index
    %c0_21 = arith.constant 0 : index
    %32 = vector.load %arg15[%31, %c0_20, %c0_21] : memref<4x32x1xf32, #tpu.memory_space<vmem>>, vector<1x32x1xf32>
    %33 = vector.shape_cast %32 : vector<1x32x1xf32> to vector<32x1xf32>
    %34 = vector.broadcast %33 : vector<32x1xf32> to vector<32x128xf32>
    %35 = arith.addf %30, %34 : vector<32x128xf32>
    %cst_22 = arith.constant 0.000000e+00 : f32
    %36 = vector.broadcast %cst_22 : f32 to vector<32x128xf32>
    %37 = arith.maximumf %35, %36 : vector<32x128xf32>
    %38 = tpu.iota {dimensions = array<i32: 1>} : vector<128x128xi32>
    %c0_23 = arith.constant 0 : index
    %c0_24 = arith.constant 0 : index
    %39 = vector.load %arg5[%c0_23, %c0_24] : memref<128x1xi32, #tpu.memory_space<vmem>>, vector<128x1xi32>
    %40 = vector.broadcast %39 : vector<128x1xi32> to vector<128x128xi32>
    %41 = arith.cmpi eq, %38, %40 : vector<128x128xi32>
    %42 = arith.extui %41 : vector<128x128xi1> to vector<128x128xi32>
    %43 = arith.sitofp %42 : vector<128x128xi32> to vector<128x128xf32>
    %c0_25 = arith.constant 0 : index
    %c0_26 = arith.constant 0 : index
    %44 = vector.load %arg30[%c0_25, %c0_26] : memref<32x128xf32, #tpu.memory_space<vmem>>, vector<32x128xf32>
    %cst_27 = arith.constant dense<0.000000e+00> : vector<32x128xf32>
    %45 = tpu.matmul %37, %43, %cst_27 {dimension_numbers = #tpu.dot_dimension_numbers<[1], [0], [0], [1], [0, 0, 1, 1], [], []>} : vector<32x128xf32>, vector<128x128xf32>, vector<32x128xf32> -> vector<32x128xf32>
    %46 = arith.addf %44, %45 : vector<32x128xf32>
    %c0_28 = arith.constant 0 : index
    %c0_29 = arith.constant 0 : index
    %47 = vector.load %arg30[%c0_28, %c0_29] : memref<32x128xf32, #tpu.memory_space<vmem>>, vector<32x128xf32>
    tpu.vector_store %arg30[%c0_28, %c0_29], %46 {strides = array<i32>} : memref<32x128xf32, #tpu.memory_space<vmem>>, vector<32x128xf32>,
    %c0_i32_30 = arith.constant 0 : i32
    %48 = arith.cmpi eq, %arg1, %c0_i32_30 : i32
    %49 = arith.extui %48 : i1 to i32
    %c0_i32_31 = arith.constant 0 : i32
    %50 = arith.cmpi ne, %49, %c0_i32_31 : i32
    scf.if %50 {
      %56 = arith.index_cast %arg0 : i32 to index
      %c0_34 = arith.constant 0 : index
      %c0_35 = arith.constant 0 : index
      %57 = vector.load %arg16[%56, %c0_34, %c0_35] : memref<4x32x32xf32, #tpu.memory_space<vmem>>, vector<1x32x32xf32>
      %58 = vector.shape_cast %57 : vector<1x32x32xf32> to vector<32x32xf32>
      %c0_36 = arith.constant 0 : index
      %c0_37 = arith.constant 0 : index
      %59 = vector.load %arg29[%c0_36, %c0_37] : memref<32x128xf32, #tpu.memory_space<vmem>>, vector<32x128xf32>
      %cst_38 = arith.constant dense<0.000000e+00> : vector<32x128xf32>
      %60 = tpu.matmul %58, %59, %cst_38 {dimension_numbers = #tpu.dot_dimension_numbers<[1], [0], [0], [1], [0, 0, 1, 1], [], []>} : vector<32x32xf32>, vector<32x128xf32>, vector<32x128xf32> -> vector<32x128xf32>
      %61 = arith.index_cast %arg0 : i32 to index
      %c0_39 = arith.constant 0 : index
      %c0_40 = arith.constant 0 : index
      %62 = vector.load %arg17[%61, %c0_39, %c0_40] : memref<4x32x32xf32, #tpu.memory_space<vmem>>, vector<1x32x32xf32>
      %63 = vector.shape_cast %62 : vector<1x32x32xf32> to vector<32x32xf32>
      %c0_41 = arith.constant 0 : index
      %c0_42 = arith.constant 0 : index
      %64 = vector.load %arg30[%c0_41, %c0_42] : memref<32x128xf32, #tpu.memory_space<vmem>>, vector<32x128xf32>
      %cst_43 = arith.constant dense<0.000000e+00> : vector<32x128xf32>
      %65 = tpu.matmul %63, %64, %cst_43 {dimension_numbers = #tpu.dot_dimension_numbers<[1], [0], [0], [1], [0, 0, 1, 1], [], []>} : vector<32x32xf32>, vector<32x128xf32>, vector<32x128xf32> -> vector<32x128xf32>
      %66 = arith.addf %60, %65 : vector<32x128xf32>
      %67 = arith.index_cast %arg0 : i32 to index
      %c0_44 = arith.constant 0 : index
      %c0_45 = arith.constant 0 : index
      %68 = vector.load %arg18[%67, %c0_44, %c0_45] : memref<4x32x1xf32, #tpu.memory_space<vmem>>, vector<1x32x1xf32>
      %69 = vector.shape_cast %68 : vector<1x32x1xf32> to vector<32x1xf32>
      %70 = vector.broadcast %69 : vector<32x1xf32> to vector<32x128xf32>
      %71 = arith.addf %66, %70 : vector<32x128xf32>
      %cst_46 = arith.constant 0.000000e+00 : f32
      %72 = vector.broadcast %cst_46 : f32 to vector<32x128xf32>
      %73 = arith.maximumf %71, %72 : vector<32x128xf32>
      %c0_47 = arith.constant 0 : index
      %c0_48 = arith.constant 0 : index
      %74 = vector.load %arg29[%c0_47, %c0_48] : memref<32x128xf32, #tpu.memory_space<vmem>>, vector<32x128xf32>
      tpu.vector_store %arg29[%c0_47, %c0_48], %73 {strides = array<i32>} : memref<32x128xf32, #tpu.memory_space<vmem>>, vector<32x128xf32>,
    } else {
    }
    %c3_i32 = arith.constant 3 : i32
    %51 = arith.cmpi eq, %arg0, %c3_i32 : i32
    %c0_i32_32 = arith.constant 0 : i32
    %52 = arith.cmpi eq, %arg1, %c0_i32_32 : i32
    %53 = arith.andi %51, %52 : i1
    %54 = arith.extui %53 : i1 to i32
    %c0_i32_33 = arith.constant 0 : i32
    %55 = arith.cmpi ne, %54, %c0_i32_33 : i32
    scf.if %55 {
      %c0_34 = arith.constant 0 : index
      %c0_35 = arith.constant 0 : index
      %56 = vector.load %arg29[%c0_34, %c0_35] : memref<32x128xf32, #tpu.memory_space<vmem>>, vector<32x128xf32>
      %57 = tpu.iota {dimensions = array<i32: 1>} : vector<128x128xi32>
      %c0_36 = arith.constant 0 : index
      %c0_37 = arith.constant 0 : index
      %58 = vector.load %arg6[%c0_36, %c0_37] : memref<128x1xi32, #tpu.memory_space<vmem>>, vector<128x1xi32>
      %59 = vector.broadcast %58 : vector<128x1xi32> to vector<128x128xi32>
      %60 = arith.cmpi eq, %57, %59 : vector<128x128xi32>
      %61 = arith.extui %60 : vector<128x128xi1> to vector<128x128xi32>
      %62 = arith.sitofp %61 : vector<128x128xi32> to vector<128x128xf32>
      %cst_38 = arith.constant dense<0.000000e+00> : vector<32x128xf32>
      %63 = tpu.matmul %56, %62, %cst_38 {dimension_numbers = #tpu.dot_dimension_numbers<[1], [0], [0], [1], [0, 0, 1, 1], [], []>} : vector<32x128xf32>, vector<128x128xf32>, vector<32x128xf32> -> vector<32x128xf32>
      %c0_39 = arith.constant 0 : index
      %c0_40 = arith.constant 0 : index
      %64 = vector.load %arg19[%c0_39, %c0_40] : memref<32x32xf32, #tpu.memory_space<vmem>>, vector<32x32xf32>
      %cst_41 = arith.constant dense<0.000000e+00> : vector<32x128xf32>
      %65 = tpu.matmul %64, %63, %cst_41 {dimension_numbers = #tpu.dot_dimension_numbers<[1], [0], [0], [1], [0, 0, 1, 1], [], []>} : vector<32x32xf32>, vector<32x128xf32>, vector<32x128xf32> -> vector<32x128xf32>
      %c0_42 = arith.constant 0 : index
      %c0_43 = arith.constant 0 : index
      %66 = vector.load %arg20[%c0_42, %c0_43] : memref<32x1xf32, #tpu.memory_space<vmem>>, vector<32x1xf32>
      %67 = vector.broadcast %66 : vector<32x1xf32> to vector<32x128xf32>
      %68 = arith.addf %65, %67 : vector<32x128xf32>
      %cst_44 = arith.constant 0.000000e+00 : f32
      %69 = vector.broadcast %cst_44 : f32 to vector<32x128xf32>
      %70 = arith.maximumf %68, %69 : vector<32x128xf32>
      %c0_45 = arith.constant 0 : index
      %c0_46 = arith.constant 0 : index
      %71 = vector.load %arg21[%c0_45, %c0_46] : memref<32x32xf32, #tpu.memory_space<vmem>>, vector<32x32xf32>
      %cst_47 = arith.constant dense<0.000000e+00> : vector<32x128xf32>
      %72 = tpu.matmul %71, %70, %cst_47 {dimension_numbers = #tpu.dot_dimension_numbers<[1], [0], [0], [1], [0, 0, 1, 1], [], []>} : vector<32x32xf32>, vector<32x128xf32>, vector<32x128xf32> -> vector<32x128xf32>
      %c0_48 = arith.constant 0 : index
      %c0_49 = arith.constant 0 : index
      %73 = vector.load %arg22[%c0_48, %c0_49] : memref<32x1xf32, #tpu.memory_space<vmem>>, vector<32x1xf32>
      %74 = vector.broadcast %73 : vector<32x1xf32> to vector<32x128xf32>
      %75 = arith.addf %72, %74 : vector<32x128xf32>
      %cst_50 = arith.constant 0.000000e+00 : f32
      %76 = vector.broadcast %cst_50 : f32 to vector<32x128xf32>
      %77 = arith.maximumf %75, %76 : vector<32x128xf32>
      %c0_51 = arith.constant 0 : index
      %c0_52 = arith.constant 0 : index
      %78 = vector.load %arg23[%c0_51, %c0_52] : memref<32x12xf32, #tpu.memory_space<vmem>>, vector<32x12xf32>
      %c0_53 = arith.constant 0 : index
      %c0_54 = arith.constant 0 : index
      %79 = vector.load %arg7[%c0_53, %c0_54] : memref<12x128xf32, #tpu.memory_space<vmem>>, vector<12x128xf32>
      %cst_55 = arith.constant dense<0.000000e+00> : vector<32x128xf32>
      %80 = tpu.matmul %78, %79, %cst_55 {dimension_numbers = #tpu.dot_dimension_numbers<[1], [0], [0], [1], [0, 0, 1, 1], [], []>} : vector<32x12xf32>, vector<12x128xf32>, vector<32x128xf32> -> vector<32x128xf32>
      %c0_56 = arith.constant 0 : index
      %c0_57 = arith.constant 0 : index
      %81 = vector.load %arg24[%c0_56, %c0_57] : memref<32x1xf32, #tpu.memory_space<vmem>>, vector<32x1xf32>
      %82 = vector.broadcast %81 : vector<32x1xf32> to vector<32x128xf32>
      %83 = arith.addf %80, %82 : vector<32x128xf32>
      %cst_58 = arith.constant 0.000000e+00 : f32
      %84 = vector.broadcast %cst_58 : f32 to vector<32x128xf32>
      %85 = arith.maximumf %83, %84 : vector<32x128xf32>
      %86 = tpu.iota {dimensions = array<i32: 1>} : vector<128x128xi32>
      %c0_59 = arith.constant 0 : index
      %c0_60 = arith.constant 0 : index
      %87 = vector.load %arg8[%c0_59, %c0_60] : memref<128x1xi32, #tpu.memory_space<vmem>>, vector<128x1xi32>
      %88 = vector.broadcast %87 : vector<128x1xi32> to vector<128x128xi32>
      %89 = arith.cmpi eq, %86, %88 : vector<128x128xi32>
      %90 = arith.extui %89 : vector<128x128xi1> to vector<128x128xi32>
      %91 = arith.sitofp %90 : vector<128x128xi32> to vector<128x128xf32>
      %cst_61 = arith.constant dense<0.000000e+00> : vector<32x128xf32>
      %92 = tpu.matmul %85, %91, %cst_61 {dimension_numbers = #tpu.dot_dimension_numbers<[1], [0], [0], [1], [0, 0, 1, 1], [], []>} : vector<32x128xf32>, vector<128x128xf32>, vector<32x128xf32> -> vector<32x128xf32>
      %c0_62 = arith.constant 0 : index
      %c0_63 = arith.constant 0 : index
      %93 = vector.load %arg25[%c0_62, %c0_63] : memref<8x32xf32, #tpu.memory_space<vmem>>, vector<8x32xf32>
      %cst_64 = arith.constant dense<0.000000e+00> : vector<8x128xf32>
      %94 = tpu.matmul %93, %77, %cst_64 {dimension_numbers = #tpu.dot_dimension_numbers<[1], [0], [0], [1], [0, 0, 1, 1], [], []>} : vector<8x32xf32>, vector<32x128xf32>, vector<8x128xf32> -> vector<8x128xf32>
      %c0_65 = arith.constant 0 : index
      %c0_66 = arith.constant 0 : index
      %95 = vector.load %arg26[%c0_65, %c0_66] : memref<8x32xf32, #tpu.memory_space<vmem>>, vector<8x32xf32>
      %cst_67 = arith.constant dense<0.000000e+00> : vector<8x128xf32>
      %96 = tpu.matmul %95, %92, %cst_67 {dimension_numbers = #tpu.dot_dimension_numbers<[1], [0], [0], [1], [0, 0, 1, 1], [], []>} : vector<8x32xf32>, vector<32x128xf32>, vector<8x128xf32> -> vector<8x128xf32>
      %97 = arith.addf %94, %96 : vector<8x128xf32>
      %c0_68 = arith.constant 0 : index
      %c0_69 = arith.constant 0 : index
      %98 = vector.load %arg27[%c0_68, %c0_69] : memref<8x1xf32, #tpu.memory_space<vmem>>, vector<8x1xf32>
      %99 = vector.broadcast %98 : vector<8x1xf32> to vector<8x128xf32>
      %100 = arith.addf %97, %99 : vector<8x128xf32>
      %c0_70 = arith.constant 0 : index
      %c0_71 = arith.constant 0 : index
      %101 = vector.load %arg28[%c0_70, %c0_71] : memref<8x128xf32, #tpu.memory_space<vmem>>, vector<8x128xf32>
      tpu.vector_store %arg28[%c0_70, %c0_71], %100 {strides = array<i32>} : memref<8x128xf32, #tpu.memory_space<vmem>>, vector<8x128xf32>,
    } else {
    }
    return
  }
  func.func @transform_0(%arg0: i32, %arg1: i32) -> (i32, i32) {
    %c0_i32 = arith.constant 0 : i32
    %c0_i32_0 = arith.constant 0 : i32
    %c0_i32_1 = arith.constant 0 : i32
    return %c0_i32, %c0_i32_0 : i32, i32
  }
  func.func @transform_1(%arg0: i32, %arg1: i32) -> (i32, i32) {
    %c0_i32 = arith.constant 0 : i32
    %c0_i32_0 = arith.constant 0 : i32
    return %c0_i32, %arg1 : i32, i32
  }
  func.func @transform_2(%arg0: i32, %arg1: i32) -> (i32, i32) {
    %c0_i32 = arith.constant 0 : i32
    %c0_i32_0 = arith.constant 0 : i32
    return %c0_i32, %arg1 : i32, i32
  }
  func.func @transform_3(%arg0: i32, %arg1: i32) -> (i32, i32) {
    %c0_i32 = arith.constant 0 : i32
    %c0_i32_0 = arith.constant 0 : i32
    return %arg1, %c0_i32 : i32, i32
  }
  func.func @transform_4(%arg0: i32, %arg1: i32) -> (i32, i32) {
    %c0_i32 = arith.constant 0 : i32
    %c0_i32_0 = arith.constant 0 : i32
    %c0_i32_1 = arith.constant 0 : i32
    return %c0_i32, %c0_i32_0 : i32, i32
  }
  func.func @transform_5(%arg0: i32, %arg1: i32) -> (i32, i32) {
    %c0_i32 = arith.constant 0 : i32
    %c0_i32_0 = arith.constant 0 : i32
    %c0_i32_1 = arith.constant 0 : i32
    return %c0_i32, %c0_i32_0 : i32, i32
  }
  func.func @transform_6(%arg0: i32, %arg1: i32) -> (i32, i32) {
    %c0_i32 = arith.constant 0 : i32
    %c0_i32_0 = arith.constant 0 : i32
    %c0_i32_1 = arith.constant 0 : i32
    return %c0_i32, %c0_i32_0 : i32, i32
  }
  func.func @transform_7(%arg0: i32, %arg1: i32) -> (i32, i32) {
    %c0_i32 = arith.constant 0 : i32
    %c0_i32_0 = arith.constant 0 : i32
    %c0_i32_1 = arith.constant 0 : i32
    return %c0_i32, %c0_i32_0 : i32, i32
  }
  func.func @transform_8(%arg0: i32, %arg1: i32) -> (i32, i32) {
    %c0_i32 = arith.constant 0 : i32
    %c0_i32_0 = arith.constant 0 : i32
    %c0_i32_1 = arith.constant 0 : i32
    return %c0_i32, %c0_i32_0 : i32, i32
  }
  func.func @transform_9(%arg0: i32, %arg1: i32) -> (i32, i32) {
    %c0_i32 = arith.constant 0 : i32
    %c0_i32_0 = arith.constant 0 : i32
    %c0_i32_1 = arith.constant 0 : i32
    return %c0_i32, %c0_i32_0 : i32, i32
  }
  func.func @transform_10(%arg0: i32, %arg1: i32) -> (i32, i32) {
    %c0_i32 = arith.constant 0 : i32
    %c0_i32_0 = arith.constant 0 : i32
    %c0_i32_1 = arith.constant 0 : i32
    return %c0_i32, %c0_i32_0 : i32, i32
  }
  func.func @transform_11(%arg0: i32, %arg1: i32) -> (i32, i32, i32) {
    %c0_i32 = arith.constant 0 : i32
    %c0_i32_0 = arith.constant 0 : i32
    %c0_i32_1 = arith.constant 0 : i32
    %c0_i32_2 = arith.constant 0 : i32
    return %c0_i32, %c0_i32_0, %c0_i32_1 : i32, i32, i32
  }
  func.func @transform_12(%arg0: i32, %arg1: i32) -> (i32, i32, i32) {
    %c0_i32 = arith.constant 0 : i32
    %c0_i32_0 = arith.constant 0 : i32
    %c0_i32_1 = arith.constant 0 : i32
    %c0_i32_2 = arith.constant 0 : i32
    return %c0_i32, %c0_i32_0, %c0_i32_1 : i32, i32, i32
  }
  func.func @transform_13(%arg0: i32, %arg1: i32) -> (i32, i32, i32) {
    %c0_i32 = arith.constant 0 : i32
    %c0_i32_0 = arith.constant 0 : i32
    %c0_i32_1 = arith.constant 0 : i32
    %c0_i32_2 = arith.constant 0 : i32
    return %c0_i32, %c0_i32_0, %c0_i32_1 : i32, i32, i32
  }
  func.func @transform_14(%arg0: i32, %arg1: i32) -> (i32, i32, i32) {
    %c0_i32 = arith.constant 0 : i32
    %c0_i32_0 = arith.constant 0 : i32
    %c0_i32_1 = arith.constant 0 : i32
    %c0_i32_2 = arith.constant 0 : i32
    return %c0_i32, %c0_i32_0, %c0_i32_1 : i32, i32, i32
  }
  func.func @transform_15(%arg0: i32, %arg1: i32) -> (i32, i32, i32) {
    %c0_i32 = arith.constant 0 : i32
    %c0_i32_0 = arith.constant 0 : i32
    %c0_i32_1 = arith.constant 0 : i32
    %c0_i32_2 = arith.constant 0 : i32
    return %c0_i32, %c0_i32_0, %c0_i32_1 : i32, i32, i32
  }
  func.func @transform_16(%arg0: i32, %arg1: i32) -> (i32, i32, i32) {
    %c0_i32 = arith.constant 0 : i32
    %c0_i32_0 = arith.constant 0 : i32
    %c0_i32_1 = arith.constant 0 : i32
    %c0_i32_2 = arith.constant 0 : i32
    return %c0_i32, %c0_i32_0, %c0_i32_1 : i32, i32, i32
  }
  func.func @transform_17(%arg0: i32, %arg1: i32) -> (i32, i32) {
    %c0_i32 = arith.constant 0 : i32
    %c0_i32_0 = arith.constant 0 : i32
    %c0_i32_1 = arith.constant 0 : i32
    return %c0_i32, %c0_i32_0 : i32, i32
  }
  func.func @transform_18(%arg0: i32, %arg1: i32) -> (i32, i32) {
    %c0_i32 = arith.constant 0 : i32
    %c0_i32_0 = arith.constant 0 : i32
    %c0_i32_1 = arith.constant 0 : i32
    return %c0_i32, %c0_i32_0 : i32, i32
  }
  func.func @transform_19(%arg0: i32, %arg1: i32) -> (i32, i32) {
    %c0_i32 = arith.constant 0 : i32
    %c0_i32_0 = arith.constant 0 : i32
    %c0_i32_1 = arith.constant 0 : i32
    return %c0_i32, %c0_i32_0 : i32, i32
  }
  func.func @transform_20(%arg0: i32, %arg1: i32) -> (i32, i32) {
    %c0_i32 = arith.constant 0 : i32
    %c0_i32_0 = arith.constant 0 : i32
    %c0_i32_1 = arith.constant 0 : i32
    return %c0_i32, %c0_i32_0 : i32, i32
  }
  func.func @transform_21(%arg0: i32, %arg1: i32) -> (i32, i32) {
    %c0_i32 = arith.constant 0 : i32
    %c0_i32_0 = arith.constant 0 : i32
    %c0_i32_1 = arith.constant 0 : i32
    return %c0_i32, %c0_i32_0 : i32, i32
  }
  func.func @transform_22(%arg0: i32, %arg1: i32) -> (i32, i32) {
    %c0_i32 = arith.constant 0 : i32
    %c0_i32_0 = arith.constant 0 : i32
    %c0_i32_1 = arith.constant 0 : i32
    return %c0_i32, %c0_i32_0 : i32, i32
  }
  func.func @transform_23(%arg0: i32, %arg1: i32) -> (i32, i32) {
    %c0_i32 = arith.constant 0 : i32
    %c0_i32_0 = arith.constant 0 : i32
    %c0_i32_1 = arith.constant 0 : i32
    return %c0_i32, %c0_i32_0 : i32, i32
  }
  func.func @transform_24(%arg0: i32, %arg1: i32) -> (i32, i32) {
    %c0_i32 = arith.constant 0 : i32
    %c0_i32_0 = arith.constant 0 : i32
    %c0_i32_1 = arith.constant 0 : i32
    return %c0_i32, %c0_i32_0 : i32, i32
  }
  func.func @transform_25(%arg0: i32, %arg1: i32) -> (i32, i32) {
    %c0_i32 = arith.constant 0 : i32
    %c0_i32_0 = arith.constant 0 : i32
    %c0_i32_1 = arith.constant 0 : i32
    return %c0_i32, %c0_i32_0 : i32, i32
  }
  func.func @transform_26(%arg0: i32, %arg1: i32) -> (i32, i32) {
    %c0_i32 = arith.constant 0 : i32
    %c0_i32_0 = arith.constant 0 : i32
    %c0_i32_1 = arith.constant 0 : i32
    return %c0_i32, %c0_i32_0 : i32, i32
  }
}

</mosaic_0001>

<llo_original>
// kernel: tpu_custom_call.1
$region0: #{tpu_custom_call.1}
  #allocation0 [shape = 'u32[]', space=smem, size = 0x4, offset = 0x4, fixed_abs, tag = 'smem constant byte address 0x4 - core index']
  #allocation1 [shape = 'u32[144,128]{1,0:T(1,128)}', space=vmem, size = 0x12000, scoped, tag = 'internal scratch']
  #allocation2 [shape = 'f32[32,128]{1,0:T(8,128)}', space=vmem, size = 0x4000, scoped, tag = 'scratch operand']
  #allocation3 [shape = 'f32[32,128]{1,0:T(8,128)}', space=vmem, size = 0x4000, scoped, tag = 'scratch operand']
  %s0 = inlined_call_operand.vmem [shape: f32[16,128], index: 0, kind: input, shape index: {}]
  %s1 = inlined_call_operand.vmem [shape: f32[8,128], index: 1, kind: input, shape index: {}]
  %s2 = inlined_call_operand.vmem [shape: s32[1,128], index: 2, kind: input, shape index: {}]
  %s3 = inlined_call_operand.vmem [shape: s32[128,1], index: 3, kind: input, shape index: {}]
  %s4 = inlined_call_operand.vmem [shape: s32[128,1], index: 4, kind: input, shape index: {}]
  %s5 = inlined_call_operand.vmem [shape: f32[12,128], index: 5, kind: input, shape index: {}]
  %s6 = inlined_call_operand.vmem [shape: s32[128,1], index: 6, kind: input, shape index: {}]
  %s7 = inlined_call_operand.vmem [shape: f32[32,16], index: 7, kind: input, shape index: {}]
  %s8 = inlined_call_operand.vmem [shape: f32[32,1], index: 8, kind: input, shape index: {}]
  %s9 = inlined_call_operand.vmem [shape: f32[32,8], index: 9, kind: input, shape index: {}]
  %s10 = inlined_call_operand.vmem [shape: f32[32,1], index: 10, kind: input, shape index: {}]
  %s11 = inlined_call_operand.vmem [shape: f32[4,32,32], index: 11, kind: input, shape index: {}]
  %s12 = inlined_call_operand.vmem [shape: f32[4,32,32], index: 12, kind: input, shape index: {}]
  %s13 = inlined_call_operand.vmem [shape: f32[4,32,1], index: 13, kind: input, shape index: {}]
  %s14 = inlined_call_operand.vmem [shape: f32[4,32,32], index: 14, kind: input, shape index: {}]
  %s15 = inlined_call_operand.vmem [shape: f32[4,32,32], index: 15, kind: input, shape index: {}]
  %s16 = inlined_call_operand.vmem [shape: f32[4,32,1], index: 16, kind: input, shape index: {}]
  %s17 = inlined_call_operand.vmem [shape: f32[32,32], index: 17, kind: input, shape index: {}]
  %s18 = inlined_call_operand.vmem [shape: f32[32,1], index: 18, kind: input, shape index: {}]
  %s19 = inlined_call_operand.vmem [shape: f32[32,32], index: 19, kind: input, shape index: {}]
  %s20 = inlined_call_operand.vmem [shape: f32[32,1], index: 20, kind: input, shape index: {}]
  %s21 = inlined_call_operand.vmem [shape: f32[32,12], index: 21, kind: input, shape index: {}]
  %s22 = inlined_call_operand.vmem [shape: f32[32,1], index: 22, kind: input, shape index: {}]
  %s23 = inlined_call_operand.vmem [shape: f32[8,32], index: 23, kind: input, shape index: {}]
  %s24 = inlined_call_operand.vmem [shape: f32[8,32], index: 24, kind: input, shape index: {}]
  %s25 = inlined_call_operand.vmem [shape: f32[8,1], index: 25, kind: input, shape index: {}]
  %s26 = inlined_call_operand.hbm [shape: f32[8,128], index: 26, kind: output, shape index: {}]
  %s27 = sld [smem:[#allocation0]]
  $region153: #{tpu_custom_call.1} parent=0
    _
  %s29 = ssub.s32 1, %s27
  %s30 = scalar_select 0, %s29, %s27
  $region1: #{tpu_custom_call.1} parent=0
    #allocation4 [shape = 'u8[4096]{0}', space=vmem, size = 0x1000, scoped, tag = 'output window, operand 0, single buffered']
    #allocation5 [shape = 's32[2]{0}', space=sflag, size = 0x8, scoped, tag = 'scoped memory for tpu_custom_call.1']
    %31 = vsyncpa [#allocation5], 0
    loop: start=0, step=1, limit=6
    $region2: #{tpu_custom_call.1} parent=1 // loop_pre_header
      _
    $region3: #{tpu_custom_call.1} parent=1 // loop_header
      %s33 = sphi 0, %s37
      %p34 = scmp.ge.s32.totalorder %s33, 6
      %s40 = sphi 0, %s52
      %s41 = sphi 0, %s48
      %s42 = sphi 0, %s40
      %s43 = sphi 0, %s41
      %s44 = sphi 0, %s42
      %s45 = sphi 0, %s43
      %s53 = sphi 0, %s53
      %s55 = sphi 0, %s53
      %s56 = sphi 0, %s55
      %s70 = sphi 0, %s56
      %s76 = sphi 0, %s78
      %s79 = sphi 0, %s76
      %s80 = sphi 0, %s79
      %s96 = sphi 0, %s80
      %s102 = sphi 0, %s104
      %s105 = sphi 0, %s102
      %s106 = sphi 0, %s105
      %s122 = sphi 0, %s106
      %s128 = sphi 0, %s130
      %s131 = sphi 0, %s128
      %s132 = sphi 0, %s131
      %s148 = sphi 0, %s132
      %s152 = sphi 0, %s152
      %s154 = sphi 0, %s152
      %s155 = sphi 0, %s154
      %s169 = sphi 0, %s155
      %s173 = sphi 0, %s173
      %s175 = sphi 0, %s173
      %s176 = sphi 0, %s175
      %s190 = sphi 0, %s176
      %s194 = sphi 0, %s194
      %s196 = sphi 0, %s194
      %s197 = sphi 0, %s196
      %s211 = sphi 0, %s197
      %s215 = sphi 0, %s215
      %s217 = sphi 0, %s215
      %s218 = sphi 0, %s217
      %s232 = sphi 0, %s218
      %s236 = sphi 0, %s236
      %s238 = sphi 0, %s236
      %s239 = sphi 0, %s238
      %s253 = sphi 0, %s239
      %s257 = sphi 0, %s257
      %s259 = sphi 0, %s257
      %s260 = sphi 0, %s259
      %s274 = sphi 0, %s260
      %s278 = sphi 0, %s278
      %s280 = sphi 0, %s278
      %s281 = sphi 0, %s280
      %s295 = sphi 0, %s281
      %s299 = sphi 0, %s299
      %s301 = sphi 0, %s299
      %s302 = sphi 0, %s301
      %s316 = sphi 0, %s302
      %s320 = sphi 0, %s320
      %s322 = sphi 0, %s320
      %s323 = sphi 0, %s322
      %s337 = sphi 0, %s323
      %s341 = sphi 0, %s341
      %s343 = sphi 0, %s341
      %s344 = sphi 0, %s343
      %s358 = sphi 0, %s344
      %s362 = sphi 0, %s362
      %s364 = sphi 0, %s362
      %s365 = sphi 0, %s364
      %s379 = sphi 0, %s365
      %s383 = sphi 0, %s383
      %s385 = sphi 0, %s383
      %s386 = sphi 0, %s385
      %s400 = sphi 0, %s386
      %s404 = sphi 0, %s404
      %s406 = sphi 0, %s404
      %s407 = sphi 0, %s406
      %s421 = sphi 0, %s407
      %s425 = sphi 0, %s425
      %s427 = sphi 0, %s425
      %s428 = sphi 0, %s427
      %s442 = sphi 0, %s428
      %s446 = sphi 0, %s446
      %s448 = sphi 0, %s446
      %s449 = sphi 0, %s448
      %s463 = sphi 0, %s449
      %s467 = sphi 0, %s467
      %s469 = sphi 0, %s467
      %s470 = sphi 0, %s469
      %s484 = sphi 0, %s470
      %s488 = sphi 0, %s488
      %s490 = sphi 0, %s488
      %s491 = sphi 0, %s490
      %s505 = sphi 0, %s491
      %s509 = sphi 0, %s509
      %s511 = sphi 0, %s509
      %s512 = sphi 0, %s511
      %s526 = sphi 0, %s512
      %s530 = sphi 0, %s530
      %s532 = sphi 0, %s530
      %s533 = sphi 0, %s532
      %s547 = sphi 0, %s533
      %s551 = sphi 0, %s551
      %s553 = sphi 0, %s551
      %s554 = sphi 0, %s553
      %s568 = sphi 0, %s554
      %s572 = sphi 0, %s572
      %s574 = sphi 0, %s572
      %s575 = sphi 0, %s574
      %s589 = sphi 0, %s575
      %s593 = sphi 0, %s593
      %s595 = sphi 0, %s593
      %s596 = sphi 0, %s595
      %s610 = sphi 0, %s596
      %s614 = sphi 0, %s614
      %s616 = sphi 0, %s614
      %s617 = sphi 0, %s616
      %s631 = sphi 0, %s617
    $region4: #{tpu_custom_call.1} parent=1 // loop_header_branch
      %36 = sbr.rel (%p34) target = $region8
    $region5: #{tpu_custom_call.1} parent=1 // loop_body
      %s38 = ssub.s32 %s33, 1
      %s39 = ssub.s32 %s33, 2
      %s46 = sadd.s32 1, %s41
      %p47 = scmp.ge.s32.totalorder %s46, 1
      %s48 = scalar_select %p47, 0, %s46
      %s49 = sadd.s32 1, %s40
      %s50 = scalar_select %p47, %s49, %s40
      %p51 = scmp.ge.s32.totalorder %s50, 4
      %s52 = scalar_select %p51, 0, %s50
      %s54 = sadd.s32 %s53, 1
      %p57 = scmp.eq.s32.totalorder %s33, 3
      %p58 = scmp.ne.s32.totalorder %s53, %s55
      %p59 = scmp.eq.s32.totalorder %s33, 0
      %p60 = por %p58, %p59
      %p61 = scmp.ne.s32.totalorder %s53, %s55
      %p62 = scmp.eq.s32.totalorder %s38, 3
      %p63 = por %p61, %p62
      %p64 = scmp.ne.s32.totalorder %s55, %s56
      %p65 = scmp.eq.s32.totalorder %s38, 0
      %p66 = por %p64, %p65
      %p67 = scmp.ne.s32.totalorder %s55, %s56
      %p68 = scmp.eq.s32.totalorder %s39, 3
      %p69 = por %p67, %p68
      %p71 = scmp.ne.s32.totalorder %s56, %s70
      %p72 = scmp.eq.s32.totalorder %s39, 0
      %p73 = por %p71, %p72
      %s74 = ssub.s32 %s41, %s48
      %p75 = scmp.eq.s32.totalorder %s74, 0
      %s77 = sadd.s32 %s76, 1
      %s78 = scalar_select %p75, %s76, %s77
      %p81 = pneg %p75
      %p82 = scmp.eq.s32.totalorder %s33, 3
      %p83 = por %p81, %p82
      %p84 = scmp.ne.s32.totalorder %s76, %s79
      %p85 = scmp.eq.s32.totalorder %s33, 0
      %p86 = por %p84, %p85
      %p87 = scmp.ne.s32.totalorder %s76, %s79
      %p88 = scmp.eq.s32.totalorder %s38, 3
      %p89 = por %p87, %p88
      %p90 = scmp.ne.s32.totalorder %s79, %s80
      %p91 = scmp.eq.s32.totalorder %s38, 0
      %p92 = por %p90, %p91
      %p93 = scmp.ne.s32.totalorder %s79, %s80
      %p94 = scmp.eq.s32.totalorder %s39, 3
      %p95 = por %p93, %p94
      %p97 = scmp.ne.s32.totalorder %s80, %s96
      %p98 = scmp.eq.s32.totalorder %s39, 0
      %p99 = por %p97, %p98
      %s100 = ssub.s32 %s41, %s48
      %p101 = scmp.eq.s32.totalorder %s100, 0
      %s103 = sadd.s32 %s102, 1
      %s104 = scalar_select %p101, %s102, %s103
      %p107 = pneg %p101
      %p108 = scmp.eq.s32.totalorder %s33, 3
      %p109 = por %p107, %p108
      %p110 = scmp.ne.s32.totalorder %s102, %s105
      %p111 = scmp.eq.s32.totalorder %s33, 0
      %p112 = por %p110, %p111
      %p113 = scmp.ne.s32.totalorder %s102, %s105
      %p114 = scmp.eq.s32.totalorder %s38, 3
      %p115 = por %p113, %p114
      %p116 = scmp.ne.s32.totalorder %s105, %s106
      %p117 = scmp.eq.s32.totalorder %s38, 0
      %p118 = por %p116, %p117
      %p119 = scmp.ne.s32.totalorder %s105, %s106
      %p120 = scmp.eq.s32.totalorder %s39, 3
      %p121 = por %p119, %p120
      %p123 = scmp.ne.s32.totalorder %s106, %s122
      %p124 = scmp.eq.s32.totalorder %s39, 0
      %p125 = por %p123, %p124
      %s126 = ssub.s32 %s41, %s48
      %p127 = scmp.eq.s32.totalorder %s126, 0
      %s129 = sadd.s32 %s128, 1
      %s130 = scalar_select %p127, %s128, %s129
      %p133 = pneg %p127
      %p134 = scmp.eq.s32.totalorder %s33, 3
      %p135 = por %p133, %p134
      %p136 = scmp.ne.s32.totalorder %s128, %s131
      %p137 = scmp.eq.s32.totalorder %s33, 0
      %p138 = por %p136, %p137
      %p139 = scmp.ne.s32.totalorder %s128, %s131
      %p140 = scmp.eq.s32.totalorder %s38, 3
      %p141 = por %p139, %p140
      %p142 = scmp.ne.s32.totalorder %s131, %s132
      %p143 = scmp.eq.s32.totalorder %s38, 0
      %p144 = por %p142, %p143
      %p145 = scmp.ne.s32.totalorder %s131, %s132
      %p146 = scmp.eq.s32.totalorder %s39, 3
      %p147 = por %p145, %p146
      %p149 = scmp.ne.s32.totalorder %s132, %s148
      %p150 = scmp.eq.s32.totalorder %s39, 0
      %p151 = por %p149, %p150
      %s153 = sadd.s32 %s152, 1
      %p156 = scmp.eq.s32.totalorder %s33, 3
      %p157 = scmp.ne.s32.totalorder %s152, %s154
      %p158 = scmp.eq.s32.totalorder %s33, 0
      %p159 = por %p157, %p158
      %p160 = scmp.ne.s32.totalorder %s152, %s154
      %p161 = scmp.eq.s32.totalorder %s38, 3
      %p162 = por %p160, %p161
      %p163 = scmp.ne.s32.totalorder %s154, %s155
      %p164 = scmp.eq.s32.totalorder %s38, 0
      %p165 = por %p163, %p164
      %p166 = scmp.ne.s32.totalorder %s154, %s155
      %p167 = scmp.eq.s32.totalorder %s39, 3
      %p168 = por %p166, %p167
      %p170 = scmp.ne.s32.totalorder %s155, %s169
      %p171 = scmp.eq.s32.totalorder %s39, 0
      %p172 = por %p170, %p171
      %s174 = sadd.s32 %s173, 1
      %p177 = scmp.eq.s32.totalorder %s33, 3
      %p178 = scmp.ne.s32.totalorder %s173, %s175
      %p179 = scmp.eq.s32.totalorder %s33, 0
      %p180 = por %p178, %p179
      %p181 = scmp.ne.s32.totalorder %s173, %s175
      %p182 = scmp.eq.s32.totalorder %s38, 3
      %p183 = por %p181, %p182
      %p184 = scmp.ne.s32.totalorder %s175, %s176
      %p185 = scmp.eq.s32.totalorder %s38, 0
      %p186 = por %p184, %p185
      %p187 = scmp.ne.s32.totalorder %s175, %s176
      %p188 = scmp.eq.s32.totalorder %s39, 3
      %p189 = por %p187, %p188
      %p191 = scmp.ne.s32.totalorder %s176, %s190
      %p192 = scmp.eq.s32.totalorder %s39, 0
      %p193 = por %p191, %p192
      %s195 = sadd.s32 %s194, 1
      %p198 = scmp.eq.s32.totalorder %s33, 3
      %p199 = scmp.ne.s32.totalorder %s194, %s196
      %p200 = scmp.eq.s32.totalorder %s33, 0
      %p201 = por %p199, %p200
      %p202 = scmp.ne.s32.totalorder %s194, %s196
      %p203 = scmp.eq.s32.totalorder %s38, 3
      %p204 = por %p202, %p203
      %p205 = scmp.ne.s32.totalorder %s196, %s197
      %p206 = scmp.eq.s32.totalorder %s38, 0
      %p207 = por %p205, %p206
      %p208 = scmp.ne.s32.totalorder %s196, %s197
      %p209 = scmp.eq.s32.totalorder %s39, 3
      %p210 = por %p208, %p209
      %p212 = scmp.ne.s32.totalorder %s197, %s211
      %p213 = scmp.eq.s32.totalorder %s39, 0
      %p214 = por %p212, %p213
      %s216 = sadd.s32 %s215, 1
      %p219 = scmp.eq.s32.totalorder %s33, 3
      %p220 = scmp.ne.s32.totalorder %s215, %s217
      %p221 = scmp.eq.s32.totalorder %s33, 0
      %p222 = por %p220, %p221
      %p223 = scmp.ne.s32.totalorder %s215, %s217
      %p224 = scmp.eq.s32.totalorder %s38, 3
      %p225 = por %p223, %p224
      %p226 = scmp.ne.s32.totalorder %s217, %s218
      %p227 = scmp.eq.s32.totalorder %s38, 0
      %p228 = por %p226, %p227
      %p229 = scmp.ne.s32.totalorder %s217, %s218
      %p230 = scmp.eq.s32.totalorder %s39, 3
      %p231 = por %p229, %p230
      %p233 = scmp.ne.s32.totalorder %s218, %s232
      %p234 = scmp.eq.s32.totalorder %s39, 0
      %p235 = por %p233, %p234
      %s237 = sadd.s32 %s236, 1
      %p240 = scmp.eq.s32.totalorder %s33, 3
      %p241 = scmp.ne.s32.totalorder %s236, %s238
      %p242 = scmp.eq.s32.totalorder %s33, 0
      %p243 = por %p241, %p242
      %p244 = scmp.ne.s32.totalorder %s236, %s238
      %p245 = scmp.eq.s32.totalorder %s38, 3
      %p246 = por %p244, %p245
      %p247 = scmp.ne.s32.totalorder %s238, %s239
      %p248 = scmp.eq.s32.totalorder %s38, 0
      %p249 = por %p247, %p248
      %p250 = scmp.ne.s32.totalorder %s238, %s239
      %p251 = scmp.eq.s32.totalorder %s39, 3
      %p252 = por %p250, %p251
      %p254 = scmp.ne.s32.totalorder %s239, %s253
      %p255 = scmp.eq.s32.totalorder %s39, 0
      %p256 = por %p254, %p255
      %s258 = sadd.s32 %s257, 1
      %p261 = scmp.eq.s32.totalorder %s33, 3
      %p262 = scmp.ne.s32.totalorder %s257, %s259
      %p263 = scmp.eq.s32.totalorder %s33, 0
      %p264 = por %p262, %p263
      %p265 = scmp.ne.s32.totalorder %s257, %s259
      %p266 = scmp.eq.s32.totalorder %s38, 3
      %p267 = por %p265, %p266
      %p268 = scmp.ne.s32.totalorder %s259, %s260
      %p269 = scmp.eq.s32.totalorder %s38, 0
      %p270 = por %p268, %p269
      %p271 = scmp.ne.s32.totalorder %s259, %s260
      %p272 = scmp.eq.s32.totalorder %s39, 3
      %p273 = por %p271, %p272
      %p275 = scmp.ne.s32.totalorder %s260, %s274
      %p276 = scmp.eq.s32.totalorder %s39, 0
      %p277 = por %p275, %p276
      %s279 = sadd.s32 %s278, 1
      %p282 = scmp.eq.s32.totalorder %s33, 3
      %p283 = scmp.ne.s32.totalorder %s278, %s280
      %p284 = scmp.eq.s32.totalorder %s33, 0
      %p285 = por %p283, %p284
      %p286 = scmp.ne.s32.totalorder %s278, %s280
      %p287 = scmp.eq.s32.totalorder %s38, 3
      %p288 = por %p286, %p287
      %p289 = scmp.ne.s32.totalorder %s280, %s281
      %p290 = scmp.eq.s32.totalorder %s38, 0
      %p291 = por %p289, %p290
      %p292 = scmp.ne.s32.totalorder %s280, %s281
      %p293 = scmp.eq.s32.totalorder %s39, 3
      %p294 = por %p292, %p293
      %p296 = scmp.ne.s32.totalorder %s281, %s295
      %p297 = scmp.eq.s32.totalorder %s39, 0
      %p298 = por %p296, %p297
      %s300 = sadd.s32 %s299, 1
      %p303 = scmp.eq.s32.totalorder %s33, 3
      %p304 = scmp.ne.s32.totalorder %s299, %s301
      %p305 = scmp.eq.s32.totalorder %s33, 0
      %p306 = por %p304, %p305
      %p307 = scmp.ne.s32.totalorder %s299, %s301
      %p308 = scmp.eq.s32.totalorder %s38, 3
      %p309 = por %p307, %p308
      %p310 = scmp.ne.s32.totalorder %s301, %s302
      %p311 = scmp.eq.s32.totalorder %s38, 0
      %p312 = por %p310, %p311
      %p313 = scmp.ne.s32.totalorder %s301, %s302
      %p314 = scmp.eq.s32.totalorder %s39, 3
      %p315 = por %p313, %p314
      %p317 = scmp.ne.s32.totalorder %s302, %s316
      %p318 = scmp.eq.s32.totalorder %s39, 0
      %p319 = por %p317, %p318
      %s321 = sadd.s32 %s320, 1
      %p324 = scmp.eq.s32.totalorder %s33, 3
      %p325 = scmp.ne.s32.totalorder %s320, %s322
      %p326 = scmp.eq.s32.totalorder %s33, 0
      %p327 = por %p325, %p326
      %p328 = scmp.ne.s32.totalorder %s320, %s322
      %p329 = scmp.eq.s32.totalorder %s38, 3
      %p330 = por %p328, %p329
      %p331 = scmp.ne.s32.totalorder %s322, %s323
      %p332 = scmp.eq.s32.totalorder %s38, 0
      %p333 = por %p331, %p332
      %p334 = scmp.ne.s32.totalorder %s322, %s323
      %p335 = scmp.eq.s32.totalorder %s39, 3
      %p336 = por %p334, %p335
      %p338 = scmp.ne.s32.totalorder %s323, %s337
      %p339 = scmp.eq.s32.totalorder %s39, 0
      %p340 = por %p338, %p339
      %s342 = sadd.s32 %s341, 1
      %p345 = scmp.eq.s32.totalorder %s33, 3
      %p346 = scmp.ne.s32.totalorder %s341, %s343
      %p347 = scmp.eq.s32.totalorder %s33, 0
      %p348 = por %p346, %p347
      %p349 = scmp.ne.s32.totalorder %s341, %s343
      %p350 = scmp.eq.s32.totalorder %s38, 3
      %p351 = por %p349, %p350
      %p352 = scmp.ne.s32.totalorder %s343, %s344
      %p353 = scmp.eq.s32.totalorder %s38, 0
      %p354 = por %p352, %p353
      %p355 = scmp.ne.s32.totalorder %s343, %s344
      %p356 = scmp.eq.s32.totalorder %s39, 3
      %p357 = por %p355, %p356
      %p359 = scmp.ne.s32.totalorder %s344, %s358
      %p360 = scmp.eq.s32.totalorder %s39, 0
      %p361 = por %p359, %p360
      %s363 = sadd.s32 %s362, 1
      %p366 = scmp.eq.s32.totalorder %s33, 3
      %p367 = scmp.ne.s32.totalorder %s362, %s364
      %p368 = scmp.eq.s32.totalorder %s33, 0
      %p369 = por %p367, %p368
      %p370 = scmp.ne.s32.totalorder %s362, %s364
      %p371 = scmp.eq.s32.totalorder %s38, 3
      %p372 = por %p370, %p371
      %p373 = scmp.ne.s32.totalorder %s364, %s365
      %p374 = scmp.eq.s32.totalorder %s38, 0
      %p375 = por %p373, %p374
      %p376 = scmp.ne.s32.totalorder %s364, %s365
      %p377 = scmp.eq.s32.totalorder %s39, 3
      %p378 = por %p376, %p377
      %p380 = scmp.ne.s32.totalorder %s365, %s379
      %p381 = scmp.eq.s32.totalorder %s39, 0
      %p382 = por %p380, %p381
      %s384 = sadd.s32 %s383, 1
      %p387 = scmp.eq.s32.totalorder %s33, 3
      %p388 = scmp.ne.s32.totalorder %s383, %s385
      %p389 = scmp.eq.s32.totalorder %s33, 0
      %p390 = por %p388, %p389
      %p391 = scmp.ne.s32.totalorder %s383, %s385
      %p392 = scmp.eq.s32.totalorder %s38, 3
      %p393 = por %p391, %p392
      %p394 = scmp.ne.s32.totalorder %s385, %s386
      %p395 = scmp.eq.s32.totalorder %s38, 0
      %p396 = por %p394, %p395
      %p397 = scmp.ne.s32.totalorder %s385, %s386
      %p398 = scmp.eq.s32.totalorder %s39, 3
      %p399 = por %p397, %p398
      %p401 = scmp.ne.s32.totalorder %s386, %s400
      %p402 = scmp.eq.s32.totalorder %s39, 0
      %p403 = por %p401, %p402
      %s405 = sadd.s32 %s404, 1
      %p408 = scmp.eq.s32.totalorder %s33, 3
      %p409 = scmp.ne.s32.totalorder %s404, %s406
      %p410 = scmp.eq.s32.totalorder %s33, 0
      %p411 = por %p409, %p410
      %p412 = scmp.ne.s32.totalorder %s404, %s406
      %p413 = scmp.eq.s32.totalorder %s38, 3
      %p414 = por %p412, %p413
      %p415 = scmp.ne.s32.totalorder %s406, %s407
      %p416 = scmp.eq.s32.totalorder %s38, 0
      %p417 = por %p415, %p416
      %p418 = scmp.ne.s32.totalorder %s406, %s407
      %p419 = scmp.eq.s32.totalorder %s39, 3
      %p420 = por %p418, %p419
      %p422 = scmp.ne.s32.totalorder %s407, %s421
      %p423 = scmp.eq.s32.totalorder %s39, 0
      %p424 = por %p422, %p423
      %s426 = sadd.s32 %s425, 1
      %p429 = scmp.eq.s32.totalorder %s33, 3
      %p430 = scmp.ne.s32.totalorder %s425, %s427
      %p431 = scmp.eq.s32.totalorder %s33, 0
      %p432 = por %p430, %p431
      %p433 = scmp.ne.s32.totalorder %s425, %s427
      %p434 = scmp.eq.s32.totalorder %s38, 3
      %p435 = por %p433, %p434
      %p436 = scmp.ne.s32.totalorder %s427, %s428
      %p437 = scmp.eq.s32.totalorder %s38, 0
      %p438 = por %p436, %p437
      %p439 = scmp.ne.s32.totalorder %s427, %s428
      %p440 = scmp.eq.s32.totalorder %s39, 3
      %p441 = por %p439, %p440
      %p443 = scmp.ne.s32.totalorder %s428, %s442
      %p444 = scmp.eq.s32.totalorder %s39, 0
      %p445 = por %p443, %p444
      %s447 = sadd.s32 %s446, 1
      %p450 = scmp.eq.s32.totalorder %s33, 3
      %p451 = scmp.ne.s32.totalorder %s446, %s448
      %p452 = scmp.eq.s32.totalorder %s33, 0
      %p453 = por %p451, %p452
      %p454 = scmp.ne.s32.totalorder %s446, %s448
      %p455 = scmp.eq.s32.totalorder %s38, 3
      %p456 = por %p454, %p455
      %p457 = scmp.ne.s32.totalorder %s448, %s449
      %p458 = scmp.eq.s32.totalorder %s38, 0
      %p459 = por %p457, %p458
      %p460 = scmp.ne.s32.totalorder %s448, %s449
      %p461 = scmp.eq.s32.totalorder %s39, 3
      %p462 = por %p460, %p461
      %p464 = scmp.ne.s32.totalorder %s449, %s463
      %p465 = scmp.eq.s32.totalorder %s39, 0
      %p466 = por %p464, %p465
      %s468 = sadd.s32 %s467, 1
      %p471 = scmp.eq.s32.totalorder %s33, 3
      %p472 = scmp.ne.s32.totalorder %s467, %s469
      %p473 = scmp.eq.s32.totalorder %s33, 0
      %p474 = por %p472, %p473
      %p475 = scmp.ne.s32.totalorder %s467, %s469
      %p476 = scmp.eq.s32.totalorder %s38, 3
      %p477 = por %p475, %p476
      %p478 = scmp.ne.s32.totalorder %s469, %s470
      %p479 = scmp.eq.s32.totalorder %s38, 0
      %p480 = por %p478, %p479
      %p481 = scmp.ne.s32.totalorder %s469, %s470
      %p482 = scmp.eq.s32.totalorder %s39, 3
      %p483 = por %p481, %p482
      %p485 = scmp.ne.s32.totalorder %s470, %s484
      %p486 = scmp.eq.s32.totalorder %s39, 0
      %p487 = por %p485, %p486
      %s489 = sadd.s32 %s488, 1
      %p492 = scmp.eq.s32.totalorder %s33, 3
      %p493 = scmp.ne.s32.totalorder %s488, %s490
      %p494 = scmp.eq.s32.totalorder %s33, 0
      %p495 = por %p493, %p494
      %p496 = scmp.ne.s32.totalorder %s488, %s490
      %p497 = scmp.eq.s32.totalorder %s38, 3
      %p498 = por %p496, %p497
      %p499 = scmp.ne.s32.totalorder %s490, %s491
      %p500 = scmp.eq.s32.totalorder %s38, 0
      %p501 = por %p499, %p500
      %p502 = scmp.ne.s32.totalorder %s490, %s491
      %p503 = scmp.eq.s32.totalorder %s39, 3
      %p504 = por %p502, %p503
      %p506 = scmp.ne.s32.totalorder %s491, %s505
      %p507 = scmp.eq.s32.totalorder %s39, 0
      %p508 = por %p506, %p507
      %s510 = sadd.s32 %s509, 1
      %p513 = scmp.eq.s32.totalorder %s33, 3
      %p514 = scmp.ne.s32.totalorder %s509, %s511
      %p515 = scmp.eq.s32.totalorder %s33, 0
      %p516 = por %p514, %p515
      %p517 = scmp.ne.s32.totalorder %s509, %s511
      %p518 = scmp.eq.s32.totalorder %s38, 3
      %p519 = por %p517, %p518
      %p520 = scmp.ne.s32.totalorder %s511, %s512
      %p521 = scmp.eq.s32.totalorder %s38, 0
      %p522 = por %p520, %p521
      %p523 = scmp.ne.s32.totalorder %s511, %s512
      %p524 = scmp.eq.s32.totalorder %s39, 3
      %p525 = por %p523, %p524
      %p527 = scmp.ne.s32.totalorder %s512, %s526
      %p528 = scmp.eq.s32.totalorder %s39, 0
      %p529 = por %p527, %p528
      %s531 = sadd.s32 %s530, 1
      %p534 = scmp.eq.s32.totalorder %s33, 3
      %p535 = scmp.ne.s32.totalorder %s530, %s532
      %p536 = scmp.eq.s32.totalorder %s33, 0
      %p537 = por %p535, %p536
      %p538 = scmp.ne.s32.totalorder %s530, %s532
      %p539 = scmp.eq.s32.totalorder %s38, 3
      %p540 = por %p538, %p539
      %p541 = scmp.ne.s32.totalorder %s532, %s533
      %p542 = scmp.eq.s32.totalorder %s38, 0
      %p543 = por %p541, %p542
      %p544 = scmp.ne.s32.totalorder %s532, %s533
      %p545 = scmp.eq.s32.totalorder %s39, 3
      %p546 = por %p544, %p545
      %p548 = scmp.ne.s32.totalorder %s533, %s547
      %p549 = scmp.eq.s32.totalorder %s39, 0
      %p550 = por %p548, %p549
      %s552 = sadd.s32 %s551, 1
      %p555 = scmp.eq.s32.totalorder %s33, 3
      %p556 = scmp.ne.s32.totalorder %s551, %s553
      %p557 = scmp.eq.s32.totalorder %s33, 0
      %p558 = por %p556, %p557
      %p559 = scmp.ne.s32.totalorder %s551, %s553
      %p560 = scmp.eq.s32.totalorder %s38, 3
      %p561 = por %p559, %p560
      %p562 = scmp.ne.s32.totalorder %s553, %s554
      %p563 = scmp.eq.s32.totalorder %s38, 0
      %p564 = por %p562, %p563
      %p565 = scmp.ne.s32.totalorder %s553, %s554
      %p566 = scmp.eq.s32.totalorder %s39, 3
      %p567 = por %p565, %p566
      %p569 = scmp.ne.s32.totalorder %s554, %s568
      %p570 = scmp.eq.s32.totalorder %s39, 0
      %p571 = por %p569, %p570
      %s573 = sadd.s32 %s572, 1
      %p576 = scmp.eq.s32.totalorder %s33, 3
      %p577 = scmp.ne.s32.totalorder %s572, %s574
      %p578 = scmp.eq.s32.totalorder %s33, 0
      %p579 = por %p577, %p578
      %p580 = scmp.ne.s32.totalorder %s572, %s574
      %p581 = scmp.eq.s32.totalorder %s38, 3
      %p582 = por %p580, %p581
      %p583 = scmp.ne.s32.totalorder %s574, %s575
      %p584 = scmp.eq.s32.totalorder %s38, 0
      %p585 = por %p583, %p584
      %p586 = scmp.ne.s32.totalorder %s574, %s575
      %p587 = scmp.eq.s32.totalorder %s39, 3
      %p588 = por %p586, %p587
      %p590 = scmp.ne.s32.totalorder %s575, %s589
      %p591 = scmp.eq.s32.totalorder %s39, 0
      %p592 = por %p590, %p591
      %s594 = sadd.s32 %s593, 1
      %p597 = scmp.eq.s32.totalorder %s33, 3
      %p598 = scmp.ne.s32.totalorder %s593, %s595
      %p599 = scmp.eq.s32.totalorder %s33, 0
      %p600 = por %p598, %p599
      %p601 = scmp.ne.s32.totalorder %s593, %s595
      %p602 = scmp.eq.s32.totalorder %s38, 3
      %p603 = por %p601, %p602
      %p604 = scmp.ne.s32.totalorder %s595, %s596
      %p605 = scmp.eq.s32.totalorder %s38, 0
      %p606 = por %p604, %p605
      %p607 = scmp.ne.s32.totalorder %s595, %s596
      %p608 = scmp.eq.s32.totalorder %s39, 3
      %p609 = por %p607, %p608
      %p611 = scmp.ne.s32.totalorder %s596, %s610
      %p612 = scmp.eq.s32.totalorder %s39, 0
      %p613 = por %p611, %p612
      %s615 = sadd.s32 %s614, 1
      %p618 = scmp.eq.s32.totalorder %s33, 3
      %p619 = scmp.ne.s32.totalorder %s614, %s616
      %p620 = scmp.eq.s32.totalorder %s33, 0
      %p621 = por %p619, %p620
      %p622 = scmp.ne.s32.totalorder %s614, %s616
      %p623 = scmp.eq.s32.totalorder %s38, 3
      %p624 = por %p622, %p623
      %p625 = scmp.ne.s32.totalorder %s616, %s617
      %p626 = scmp.eq.s32.totalorder %s38, 0
      %p627 = por %p625, %p626
      %p628 = scmp.ne.s32.totalorder %s616, %s617
      %p629 = scmp.eq.s32.totalorder %s39, 3
      %p630 = por %p628, %p629
      %p632 = scmp.ne.s32.totalorder %s617, %s631
      %p633 = scmp.eq.s32.totalorder %s39, 0
      %p634 = por %p632, %p633
      %p635 = scmp.le.s32.totalorder 1, %s33
      %p636 = scmp.lt.s32.totalorder %s33, 5
      %p637 = pnand %p635, %p636
      %p638 = pneg %p637
      // Predicated region
      $region9: #{tpu_custom_call.1} parent=5 // pred_check
        _
      $region10: #{tpu_custom_call.1} parent=5 // pred_check_branch
        %640 = sbr.rel (%p637) target = $region12
      $region11: #{tpu_custom_call.1} parent=5 // pred_region
        %s641 = ssub.s32 %s33, 1
        // Predicated region
        $region13: #{tpu_custom_call.1} parent=11 // pred_check
          %p642 = pneg %p66
        $region14: #{tpu_custom_call.1} parent=11 // pred_check_branch
          %644 = sbr.rel (%p642) target = $region16
        $region15: #{tpu_custom_call.1} parent=11 // pred_region
          _
        $region16: #{tpu_custom_call.1} parent=11 // pred_fallthru
          _
        // Predicated region
        $region17: #{tpu_custom_call.1} parent=11 // pred_check
          %p645 = pneg %p92
        $region18: #{tpu_custom_call.1} parent=11 // pred_check_branch
          %647 = sbr.rel (%p645) target = $region20
        $region19: #{tpu_custom_call.1} parent=11 // pred_region
          %p648 = scmp.lt.s32.totalorder %s43, 0
          %s649 = scalar_select %p648, %s43, 0
          %s650 = smul.addr %s649, 8
          %s651 = scalar_lea.vmem %s1, %s650
        $region20: #{tpu_custom_call.1} parent=11 // pred_fallthru
          _
        // Predicated region
        $region21: #{tpu_custom_call.1} parent=11 // pred_check
          %p652 = pneg %p118
        $region22: #{tpu_custom_call.1} parent=11 // pred_check_branch
          %654 = sbr.rel (%p652) target = $region24
        $region23: #{tpu_custom_call.1} parent=11 // pred_region
          %p655 = scmp.lt.s32.totalorder %s43, 0
          %s656 = scalar_select %p655, %s43, 0
          %s657 = scalar_lea.vmem %s2, %s656
        $region24: #{tpu_custom_call.1} parent=11 // pred_fallthru
          _
        // Predicated region
        $region25: #{tpu_custom_call.1} parent=11 // pred_check
          %p658 = pneg %p144
        $region26: #{tpu_custom_call.1} parent=11 // pred_check_branch
          %660 = sbr.rel (%p658) target = $region28
        $region27: #{tpu_custom_call.1} parent=11 // pred_region
          %s661 = smul.u32 16, %s43
          %p662 = scmp.lt.s32.totalorder %s661, 15
          %s663 = scalar_select %p662, %s661, 15
          %s664 = smul.addr %s663, 8
          %s665 = scalar_lea.vmem %s3, %s664
          %s666 = smul.u32 16, %s43
        $region28: #{tpu_custom_call.1} parent=11 // pred_fallthru
          _
        // Predicated region
        $region29: #{tpu_custom_call.1} parent=11 // pred_check
          %p667 = pneg %p165
        $region30: #{tpu_custom_call.1} parent=11 // pred_check_branch
          %669 = sbr.rel (%p667) target = $region32
        $region31: #{tpu_custom_call.1} parent=11 // pred_region
          _
        $region32: #{tpu_custom_call.1} parent=11 // pred_fallthru
          _
        // Predicated region
        $region33: #{tpu_custom_call.1} parent=11 // pred_check
          %p670 = pneg %p186
        $region34: #{tpu_custom_call.1} parent=11 // pred_check_branch
          %672 = sbr.rel (%p670) target = $region36
        $region35: #{tpu_custom_call.1} parent=11 // pred_region
          _
        $region36: #{tpu_custom_call.1} parent=11 // pred_fallthru
          _
        // Predicated region
        $region37: #{tpu_custom_call.1} parent=11 // pred_check
          %p673 = pneg %p207
        $region38: #{tpu_custom_call.1} parent=11 // pred_check_branch
          %675 = sbr.rel (%p673) target = $region40
        $region39: #{tpu_custom_call.1} parent=11 // pred_region
          _
        $region40: #{tpu_custom_call.1} parent=11 // pred_fallthru
          _
        // Predicated region
        $region41: #{tpu_custom_call.1} parent=11 // pred_check
          %p676 = pneg %p228
        $region42: #{tpu_custom_call.1} parent=11 // pred_check_branch
          %678 = sbr.rel (%p676) target = $region44
        $region43: #{tpu_custom_call.1} parent=11 // pred_region
          _
        $region44: #{tpu_custom_call.1} parent=11 // pred_fallthru
          _
        // Predicated region
        $region45: #{tpu_custom_call.1} parent=11 // pred_check
          %p679 = pneg %p249
        $region46: #{tpu_custom_call.1} parent=11 // pred_check_branch
          %681 = sbr.rel (%p679) target = $region48
        $region47: #{tpu_custom_call.1} parent=11 // pred_region
          _
        $region48: #{tpu_custom_call.1} parent=11 // pred_fallthru
          _
        // Predicated region
        $region49: #{tpu_custom_call.1} parent=11 // pred_check
          %p682 = pneg %p270
        $region50: #{tpu_custom_call.1} parent=11 // pred_check_branch
          %684 = sbr.rel (%p682) target = $region52
        $region51: #{tpu_custom_call.1} parent=11 // pred_region
          _
        $region52: #{tpu_custom_call.1} parent=11 // pred_fallthru
          _
        // Predicated region
        $region53: #{tpu_custom_call.1} parent=11 // pred_check
          %p685 = pneg %p291
        $region54: #{tpu_custom_call.1} parent=11 // pred_check_branch
          %687 = sbr.rel (%p685) target = $region56
        $region55: #{tpu_custom_call.1} parent=11 // pred_region
          _
        $region56: #{tpu_custom_call.1} parent=11 // pred_fallthru
          _
        // Predicated region
        $region57: #{tpu_custom_call.1} parent=11 // pred_check
          %p688 = pneg %p312
        $region58: #{tpu_custom_call.1} parent=11 // pred_check_branch
          %690 = sbr.rel (%p688) target = $region60
        $region59: #{tpu_custom_call.1} parent=11 // pred_region
          _
        $region60: #{tpu_custom_call.1} parent=11 // pred_fallthru
          _
        // Predicated region
        $region61: #{tpu_custom_call.1} parent=11 // pred_check
          %p691 = pneg %p333
        $region62: #{tpu_custom_call.1} parent=11 // pred_check_branch
          %693 = sbr.rel (%p691) target = $region64
        $region63: #{tpu_custom_call.1} parent=11 // pred_region
          _
        $region64: #{tpu_custom_call.1} parent=11 // pred_fallthru
          _
        // Predicated region
        $region65: #{tpu_custom_call.1} parent=11 // pred_check
          %p694 = pneg %p354
        $region66: #{tpu_custom_call.1} parent=11 // pred_check_branch
          %696 = sbr.rel (%p694) target = $region68
        $region67: #{tpu_custom_call.1} parent=11 // pred_region
          _
        $region68: #{tpu_custom_call.1} parent=11 // pred_fallthru
          _
        // Predicated region
        $region69: #{tpu_custom_call.1} parent=11 // pred_check
          %p697 = pneg %p375
        $region70: #{tpu_custom_call.1} parent=11 // pred_check_branch
          %699 = sbr.rel (%p697) target = $region72
        $region71: #{tpu_custom_call.1} parent=11 // pred_region
          _
        $region72: #{tpu_custom_call.1} parent=11 // pred_fallthru
          _
        // Predicated region
        $region73: #{tpu_custom_call.1} parent=11 // pred_check
          %p700 = pneg %p396
        $region74: #{tpu_custom_call.1} parent=11 // pred_check_branch
          %702 = sbr.rel (%p700) target = $region76
        $region75: #{tpu_custom_call.1} parent=11 // pred_region
          _
        $region76: #{tpu_custom_call.1} parent=11 // pred_fallthru
          _
        // Predicated region
        $region77: #{tpu_custom_call.1} parent=11 // pred_check
          %p703 = pneg %p417
        $region78: #{tpu_custom_call.1} parent=11 // pred_check_branch
          %705 = sbr.rel (%p703) target = $region80
        $region79: #{tpu_custom_call.1} parent=11 // pred_region
          _
        $region80: #{tpu_custom_call.1} parent=11 // pred_fallthru
          _
        // Predicated region
        $region81: #{tpu_custom_call.1} parent=11 // pred_check
          %p706 = pneg %p438
        $region82: #{tpu_custom_call.1} parent=11 // pred_check_branch
          %708 = sbr.rel (%p706) target = $region84
        $region83: #{tpu_custom_call.1} parent=11 // pred_region
          _
        $region84: #{tpu_custom_call.1} parent=11 // pred_fallthru
          _
        // Predicated region
        $region85: #{tpu_custom_call.1} parent=11 // pred_check
          %p709 = pneg %p459
        $region86: #{tpu_custom_call.1} parent=11 // pred_check_branch
          %711 = sbr.rel (%p709) target = $region88
        $region87: #{tpu_custom_call.1} parent=11 // pred_region
          _
        $region88: #{tpu_custom_call.1} parent=11 // pred_fallthru
          _
        // Predicated region
        $region89: #{tpu_custom_call.1} parent=11 // pred_check
          %p712 = pneg %p480
        $region90: #{tpu_custom_call.1} parent=11 // pred_check_branch
          %714 = sbr.rel (%p712) target = $region92
        $region91: #{tpu_custom_call.1} parent=11 // pred_region
          _
        $region92: #{tpu_custom_call.1} parent=11 // pred_fallthru
          _
        // Predicated region
        $region93: #{tpu_custom_call.1} parent=11 // pred_check
          %p715 = pneg %p501
        $region94: #{tpu_custom_call.1} parent=11 // pred_check_branch
          %717 = sbr.rel (%p715) target = $region96
        $region95: #{tpu_custom_call.1} parent=11 // pred_region
          _
        $region96: #{tpu_custom_call.1} parent=11 // pred_fallthru
          _
        // Predicated region
        $region97: #{tpu_custom_call.1} parent=11 // pred_check
          %p718 = pneg %p522
        $region98: #{tpu_custom_call.1} parent=11 // pred_check_branch
          %720 = sbr.rel (%p718) target = $region100
        $region99: #{tpu_custom_call.1} parent=11 // pred_region
          _
        $region100: #{tpu_custom_call.1} parent=11 // pred_fallthru
          _
        // Predicated region
        $region101: #{tpu_custom_call.1} parent=11 // pred_check
          %p721 = pneg %p543
        $region102: #{tpu_custom_call.1} parent=11 // pred_check_branch
          %723 = sbr.rel (%p721) target = $region104
        $region103: #{tpu_custom_call.1} parent=11 // pred_region
          _
        $region104: #{tpu_custom_call.1} parent=11 // pred_fallthru
          _
        // Predicated region
        $region105: #{tpu_custom_call.1} parent=11 // pred_check
          %p724 = pneg %p564
        $region106: #{tpu_custom_call.1} parent=11 // pred_check_branch
          %726 = sbr.rel (%p724) target = $region108
        $region107: #{tpu_custom_call.1} parent=11 // pred_region
          _
        $region108: #{tpu_custom_call.1} parent=11 // pred_fallthru
          _
        // Predicated region
        $region109: #{tpu_custom_call.1} parent=11 // pred_check
          %p727 = pneg %p585
        $region110: #{tpu_custom_call.1} parent=11 // pred_check_branch
          %729 = sbr.rel (%p727) target = $region112
        $region111: #{tpu_custom_call.1} parent=11 // pred_region
          _
        $region112: #{tpu_custom_call.1} parent=11 // pred_fallthru
          _
        // Predicated region
        $region113: #{tpu_custom_call.1} parent=11 // pred_check
          %p730 = pneg %p606
        $region114: #{tpu_custom_call.1} parent=11 // pred_check_branch
          %732 = sbr.rel (%p730) target = $region116
        $region115: #{tpu_custom_call.1} parent=11 // pred_region
          _
        $region116: #{tpu_custom_call.1} parent=11 // pred_fallthru
          _
      $region12: #{tpu_custom_call.1} parent=5 // pred_fallthru
        _
      %p733 = scmp.lt.s32.totalorder %s33, 4
      // Predicated region
      $region117: #{tpu_custom_call.1} parent=5 // pred_check
        %p734 = pneg %p733
      $region118: #{tpu_custom_call.1} parent=5 // pred_check_branch
        %736 = sbr.rel (%p734) target = $region120
      $region119: #{tpu_custom_call.1} parent=5 // pred_region
        _
      $region120: #{tpu_custom_call.1} parent=5 // pred_fallthru
        _
      %p737 = scmp.le.s32.totalorder 1, %s33
      %p738 = scmp.lt.s32.totalorder %s33, 5
      %p739 = pnand %p737, %p738
      %p740 = pneg %p739
      // Predicated region
      $region121: #{tpu_custom_call.1} parent=5 // pred_check
        _
      $region122: #{tpu_custom_call.1} parent=5 // pred_check_branch
        %742 = sbr.rel (%p739) target = $region124
      $region123: #{tpu_custom_call.1} parent=5 // pred_region
        %s743 = ssub.s32 %s33, 1
        %p744 = pneg %p66
        %p745 = pneg %p63
        %p746 = scmp.lt.s32.totalorder %s43, 0
        %s747 = scalar_select %p746, %s43, 0
        %s748 = smul.addr %s747, 8
        %s749 = scalar_lea.vmem %s1, %s748
        %p750 = pneg %p92
        %p751 = pneg %p89
        %p752 = scmp.lt.s32.totalorder %s43, 0
        %s753 = scalar_select %p752, %s43, 0
        %s754 = scalar_lea.vmem %s2, %s753
        %p755 = pneg %p118
        %p756 = pneg %p115
        %s757 = smul.u32 16, %s43
        %p758 = scmp.lt.s32.totalorder %s757, 15
        %s759 = scalar_select %p758, %s757, 15
        %s760 = smul.addr %s759, 8
        %s761 = scalar_lea.vmem %s3, %s760
        %p762 = pneg %p144
        %p763 = pneg %p141
        %p764 = pneg %p165
        %p765 = pneg %p162
        %p766 = pneg %p186
        %p767 = pneg %p183
        %p768 = pneg %p207
        %p769 = pneg %p204
        %p770 = pneg %p228
        %p771 = pneg %p225
        %p772 = pneg %p249
        %p773 = pneg %p246
        %p774 = pneg %p270
        %p775 = pneg %p267
        %p776 = pneg %p291
        %p777 = pneg %p288
        %p778 = pneg %p312
        %p779 = pneg %p309
        %p780 = pneg %p333
        %p781 = pneg %p330
        %p782 = pneg %p354
        %p783 = pneg %p351
        %p784 = pneg %p375
        %p785 = pneg %p372
        %p786 = pneg %p396
        %p787 = pneg %p393
        %p788 = pneg %p417
        %p789 = pneg %p414
        %p790 = pneg %p438
        %p791 = pneg %p435
        %p792 = pneg %p459
        %p793 = pneg %p456
        %p794 = pneg %p480
        %p795 = pneg %p477
        %p796 = pneg %p501
        %p797 = pneg %p498
        %p798 = pneg %p522
        %p799 = pneg %p519
        %p800 = pneg %p543
        %p801 = pneg %p540
        %p802 = pneg %p564
        %p803 = pneg %p561
        %p804 = pneg %p585
        %p805 = pneg %p582
        %p806 = pneg %p606
        %p807 = pneg %p603
        %p808 = pneg %p627
        %p809 = pneg %p624
        %p810 = scmp.lt.s32.totalorder %s43, 0
        %s811 = scalar_select %p810, %s43, 0
        %s812 = smul.addr %s811, 8
        %s813 = scalar_lea.vmem %s1, %s812
        %p814 = scmp.lt.s32.totalorder %s43, 0
        %s815 = scalar_select %p814, %s43, 0
        %s816 = scalar_lea.vmem %s2, %s815
        %s817 = smul.u32 16, %s43
        %p818 = scmp.lt.s32.totalorder %s817, 15
        %s819 = scalar_select %p818, %s817, 15
        %s820 = smul.addr %s819, 8
        %s821 = scalar_lea.vmem %s3, %s820
        %s822 = smul.u32 16, %s43
        %p823 = scmp.eq.s32.totalorder %s42, 0
        %p824 = scmp.eq.s32.totalorder %s43, 0
        %p825 = pnand %p823, %p824
        %p826 = pneg %p825
        // Predicated region
        $region125: #{tpu_custom_call.1} parent=123 // pred_check
          _
        $region126: #{tpu_custom_call.1} parent=123 // pred_check_branch
          %828 = sbr.rel (%p825) target = $region128
        $region127: #{tpu_custom_call.1} parent=123 // pred_region
          %v829 = vld [vmem:[%s7] sm:$0xff]
          %v830 = vld [vmem:[%s7 + $0x8] sm:$0xff]
          %v831 = vld [vmem:[%s7 + $0x10] sm:$0xff]
          %v832 = vld [vmem:[%s7 + $0x18] sm:$0xff]
          %v833 = vld [vmem:[%s0] sm:$0xff]
          %v834 = vld [vmem:[%s0 + $0x8] sm:$0xff]
          %v835 = vld [vmem:[%s8] sm:$0xff]
          %v836 = vld [vmem:[%s8 + $0x8] sm:$0xff]
          %v837 = vld [vmem:[%s8 + $0x10] sm:$0xff]
          %v838 = vld [vmem:[%s8 + $0x18] sm:$0xff]
          %840 = vset.pattern.permute.xlu0 0
          %841 = vperm.xlu0 %840, %v835
          %v842 = vpop.permute.xlu0 %841
          %845 = vset.pattern.permute.xlu0 0
          %846 = vperm.xlu0 %845, %v836
          %v847 = vpop.permute.xlu0 %846
          %850 = vset.pattern.permute.xlu0 0
          %851 = vperm.xlu0 %850, %v837
          %v852 = vpop.permute.xlu0 %851
          %855 = vset.pattern.permute.xlu0 0
          %856 = vperm.xlu0 %855, %v838
          %v857 = vpop.permute.xlu0 %856
          %vm859 = vcmask 130048
          %v861 = vsel %vm859, %v829, 0
          %v864 = vsel %vm859, %v830, 0
          %v867 = vsel %vm859, %v831, 0
          %v870 = vsel %vm859, %v832, 0
          %872 = vmatprep.subr.mxu0 0.0
          %873 = vmatpush1.msra.mxu0 0.0
          %874 = vmatprep.subr.mxu0 0.0
          %875 = vmatpush1.msra.mxu0 0.0
          %876 = vmatprep.subr.mxu0 0.0
          %877 = vmatpush1.msra.mxu0 0.0
          %878 = vmatprep.subr.mxu0 0.0
          %879 = vmatpush1.msra.mxu0 0.0
          %880 = vmatprep.subr.mxu0 0.0
          %881 = vmatpush1.msra.mxu0 0.0
          %882 = vmatprep.subr.mxu0 0.0
          %883 = vmatpush1.msra.mxu0 0.0
          %884 = vmatprep.subr.mxu0 0.0
          %885 = vmatpush1.msra.mxu0 0.0
          %886 = vmatprep.subr.mxu0 0.0
          %887 = vmatpush1.msra.mxu0 0.0
          %888 = vmatprep.subr.mxu0 0.0
          %889 = vmatpush1.msra.mxu0 0.0
          %890 = vmatprep.subr.mxu0 0.0
          %891 = vmatpush1.msra.mxu0 0.0
          %892 = vmatprep.subr.mxu0 0.0
          %893 = vmatpush1.msra.mxu0 0.0
          %894 = vmatprep.subr.mxu0 0.0
          %895 = vmatpush1.msra.mxu0 0.0
          %896 = vmatprep.subr.mxu0 0.0
          %897 = vmatpush1.msra.mxu0 0.0
          %898 = vmatprep.subr.mxu0 0.0
          %899 = vmatpush1.msra.mxu0 0.0
          %900 = vmatprep.subr.mxu0 0.0
          %901 = vmatpush1.msra.mxu0 %v834
          %902 = vmatprep.subr.mxu0 0.0
          %903 = vmatpush1.msra.mxu0 %v833
          %904 = vmatprep.subr.mxu0 0.0
          %905 = vmatpush2.msra.mxu0 0.0
          %906 = vmatprep.subr.mxu0 0.0
          %907 = vmatpush2.msra.mxu0 0.0
          %908 = vmatprep.subr.mxu0 0.0
          %909 = vmatpush2.msra.mxu0 0.0
          %910 = vmatprep.subr.mxu0 0.0
          %911 = vmatpush2.msra.mxu0 0.0
          %912 = vmatprep.subr.mxu0 0.0
          %913 = vmatpush2.msra.mxu0 0.0
          %914 = vmatprep.subr.mxu0 0.0
          %915 = vmatpush2.msra.mxu0 0.0
          %916 = vmatprep.subr.mxu0 0.0
          %917 = vmatpush2.msra.mxu0 0.0
          %918 = vmatprep.subr.mxu0 0.0
          %919 = vmatpush2.msra.mxu0 0.0
          %920 = vmatprep.subr.mxu0 0.0
          %921 = vmatpush2.msra.mxu0 0.0
          %922 = vmatprep.subr.mxu0 0.0
          %923 = vmatpush2.msra.mxu0 0.0
          %924 = vmatprep.subr.mxu0 0.0
          %925 = vmatpush2.msra.mxu0 0.0
          %926 = vmatprep.subr.mxu0 0.0
          %927 = vmatpush2.msra.mxu0 0.0
          %928 = vmatprep.subr.mxu0 0.0
          %929 = vmatpush2.msra.mxu0 0.0
          %930 = vmatprep.subr.mxu0 0.0
          %931 = vmatpush2.msra.mxu0 0.0
          %932 = vmatprep.subr.mxu0 0.0
          %933 = vmatpush2.msra.mxu0 0.0
          %934 = vmatprep.subr.mxu0 0.0
          %935 = vmatpush2.msra.mxu0 0.0
          %936 = vmatprep.mubr.f32.mxu0 0.0
          %937 = vmatmul.mubr.f32.gmra.mxu0 %v861
          %v938 = vpop.f32.mrf.mxu0
          %v939 = vadd.f32 %v842, %v938
          %v940 = vpop.f32.mrf.mxu0
          %941 = vmatprep.mubr.f32.mxu0 0.0
          %942 = vmatmul.mubr.f32.gmra.mxu0 %v864
          %v943 = vpop.f32.mrf.mxu0
          %v944 = vadd.f32 %v847, %v943
          %v945 = vpop.f32.mrf.mxu0
          %946 = vmatprep.mubr.f32.mxu0 0.0
          %947 = vmatmul.mubr.f32.gmra.mxu0 %v867
          %v948 = vpop.f32.mrf.mxu0
          %v949 = vadd.f32 %v852, %v948
          %v950 = vpop.f32.mrf.mxu0
          %951 = vmatprep.mubr.f32.mxu0 0.0
          %952 = vmatmul.mubr.f32.gmra.mxu0 %v870
          %v953 = vpop.f32.mrf.mxu0
          %v954 = vadd.f32 %v857, %v953
          %v955 = vpop.f32.mrf.mxu0
          %956 = vdwg.mxu0
          %957 = vst [vmem:[#allocation2] sm:$0xff] %v939
          %958 = vst [vmem:[#allocation2 + $0x8] sm:$0xff] %v944
          %959 = vst [vmem:[#allocation2 + $0x10] sm:$0xff] %v949
          %960 = vst [vmem:[#allocation2 + $0x18] sm:$0xff] %v954
        $region128: #{tpu_custom_call.1} parent=123 // pred_fallthru
          _
        // Predicated region
        $region129: #{tpu_custom_call.1} parent=123 // pred_check
          %p961 = pneg %p824
        $region130: #{tpu_custom_call.1} parent=123 // pred_check_branch
          %963 = sbr.rel (%p961) target = $region132
        $region131: #{tpu_custom_call.1} parent=123 // pred_region
          %964 = vst [vmem:[#allocation3] sm:$0xff] 0.0
          %965 = vst [vmem:[#allocation3 + $0x8] sm:$0xff] 0.0
          %966 = vst [vmem:[#allocation3 + $0x10] sm:$0xff] 0.0
          %967 = vst [vmem:[#allocation3 + $0x18] sm:$0xff] 0.0
        $region132: #{tpu_custom_call.1} parent=123 // pred_fallthru
          _
        %v968 = vld [vmem:[%s9] sm:$0xff]
        %v969 = vld [vmem:[%s9 + $0x8] sm:$0xff]
        %v970 = vld [vmem:[%s9 + $0x10] sm:$0xff]
        %v971 = vld [vmem:[%s9 + $0x18] sm:$0xff]
        %v972 = vld [vmem:[%s813] sm:$0xff]
        %v973 = vld [vmem:[%s10] sm:$0xff]
        %v974 = vld [vmem:[%s10 + $0x8] sm:$0xff]
        %v975 = vld [vmem:[%s10 + $0x10] sm:$0xff]
        %v976 = vld [vmem:[%s10 + $0x18] sm:$0xff]
        %978 = vset.pattern.permute.xlu0 0
        %979 = vperm.xlu0 %978, %v973
        %v980 = vpop.permute.xlu0 %979
        %983 = vset.pattern.permute.xlu0 0
        %984 = vperm.xlu0 %983, %v974
        %v985 = vpop.permute.xlu0 %984
        %988 = vset.pattern.permute.xlu0 0
        %989 = vperm.xlu0 %988, %v975
        %v990 = vpop.permute.xlu0 %989
        %993 = vset.pattern.permute.xlu0 0
        %994 = vperm.xlu0 %993, %v976
        %v995 = vpop.permute.xlu0 %994
        %vm997 = vcmask 64512
        %v999 = vsel %vm997, %v968, 0
        %v1002 = vsel %vm997, %v969, 0
        %v1005 = vsel %vm997, %v970, 0
        %v1008 = vsel %vm997, %v971, 0
        %1010 = vmatprep.subr.mxu0 0.0
        %1011 = vmatpush1.msra.mxu0 0.0
        %1012 = vmatprep.subr.mxu0 0.0
        %1013 = vmatpush1.msra.mxu0 0.0
        %1014 = vmatprep.subr.mxu0 0.0
        %1015 = vmatpush1.msra.mxu0 0.0
        %1016 = vmatprep.subr.mxu0 0.0
        %1017 = vmatpush1.msra.mxu0 0.0
        %1018 = vmatprep.subr.mxu0 0.0
        %1019 = vmatpush1.msra.mxu0 0.0
        %1020 = vmatprep.subr.mxu0 0.0
        %1021 = vmatpush1.msra.mxu0 0.0
        %1022 = vmatprep.subr.mxu0 0.0
        %1023 = vmatpush1.msra.mxu0 0.0
        %1024 = vmatprep.subr.mxu0 0.0
        %1025 = vmatpush1.msra.mxu0 0.0
        %1026 = vmatprep.subr.mxu0 0.0
        %1027 = vmatpush1.msra.mxu0 0.0
        %1028 = vmatprep.subr.mxu0 0.0
        %1029 = vmatpush1.msra.mxu0 0.0
        %1030 = vmatprep.subr.mxu0 0.0
        %1031 = vmatpush1.msra.mxu0 0.0
        %1032 = vmatprep.subr.mxu0 0.0
        %1033 = vmatpush1.msra.mxu0 0.0
        %1034 = vmatprep.subr.mxu0 0.0
        %1035 = vmatpush1.msra.mxu0 0.0
        %1036 = vmatprep.subr.mxu0 0.0
        %1037 = vmatpush1.msra.mxu0 0.0
        %1038 = vmatprep.subr.mxu0 0.0
        %1039 = vmatpush1.msra.mxu0 0.0
        %1040 = vmatprep.subr.mxu0 0.0
        %1041 = vmatpush1.msra.mxu0 %v972
        %1042 = vmatprep.subr.mxu0 0.0
        %1043 = vmatpush2.msra.mxu0 0.0
        %1044 = vmatprep.subr.mxu0 0.0
        %1045 = vmatpush2.msra.mxu0 0.0
        %1046 = vmatprep.subr.mxu0 0.0
        %1047 = vmatpush2.msra.mxu0 0.0
        %1048 = vmatprep.subr.mxu0 0.0
        %1049 = vmatpush2.msra.mxu0 0.0
        %1050 = vmatprep.subr.mxu0 0.0
        %1051 = vmatpush2.msra.mxu0 0.0
        %1052 = vmatprep.subr.mxu0 0.0
        %1053 = vmatpush2.msra.mxu0 0.0
        %1054 = vmatprep.subr.mxu0 0.0
        %1055 = vmatpush2.msra.mxu0 0.0
        %1056 = vmatprep.subr.mxu0 0.0
        %1057 = vmatpush2.msra.mxu0 0.0
        %1058 = vmatprep.subr.mxu0 0.0
        %1059 = vmatpush2.msra.mxu0 0.0
        %1060 = vmatprep.subr.mxu0 0.0
        %1061 = vmatpush2.msra.mxu0 0.0
        %1062 = vmatprep.subr.mxu0 0.0
        %1063 = vmatpush2.msra.mxu0 0.0
        %1064 = vmatprep.subr.mxu0 0.0
        %1065 = vmatpush2.msra.mxu0 0.0
        %1066 = vmatprep.subr.mxu0 0.0
        %1067 = vmatpush2.msra.mxu0 0.0
        %1068 = vmatprep.subr.mxu0 0.0
        %1069 = vmatpush2.msra.mxu0 0.0
        %1070 = vmatprep.subr.mxu0 0.0
        %1071 = vmatpush2.msra.mxu0 0.0
        %1072 = vmatprep.subr.mxu0 0.0
        %1073 = vmatpush2.msra.mxu0 0.0
        %1074 = vmatprep.mubr.f32.mxu0 0.0
        %1075 = vmatmul.mubr.f32.gmra.mxu0 %v999
        %v1076 = vpop.f32.mrf.mxu0
        %v1077 = vadd.f32 %v980, %v1076
        %v1078 = vpop.f32.mrf.mxu0
        %1079 = vmatprep.mubr.f32.mxu0 0.0
        %1080 = vmatmul.mubr.f32.gmra.mxu0 %v1002
        %v1081 = vpop.f32.mrf.mxu0
        %v1082 = vadd.f32 %v985, %v1081
        %v1083 = vpop.f32.mrf.mxu0
        %1084 = vmatprep.mubr.f32.mxu0 0.0
        %1085 = vmatmul.mubr.f32.gmra.mxu0 %v1005
        %v1086 = vpop.f32.mrf.mxu0
        %v1087 = vadd.f32 %v990, %v1086
        %v1088 = vpop.f32.mrf.mxu0
        %1089 = vmatprep.mubr.f32.mxu0 0.0
        %1090 = vmatmul.mubr.f32.gmra.mxu0 %v1008
        %v1091 = vpop.f32.mrf.mxu0
        %v1092 = vadd.f32 %v995, %v1091
        %v1093 = vpop.f32.mrf.mxu0
        %1094 = vdwg.mxu0
        %v1095 = vlaneseq
        %v1096 = vshrl.u32 %v1095, 7
        %v1097 = vadd.s32 %v1096, 8
        %v1098 = vadd.s32 %v1096, 16
        %v1099 = vadd.s32 %v1096, 24
        %v1100 = vadd.s32 %v1096, 32
        %v1101 = vadd.s32 %v1096, 40
        %v1102 = vadd.s32 %v1096, 48
        %v1103 = vadd.s32 %v1096, 56
        %v1104 = vadd.s32 %v1096, 64
        %v1105 = vadd.s32 %v1096, 72
        %v1106 = vadd.s32 %v1096, 80
        %v1107 = vadd.s32 %v1096, 88
        %v1108 = vadd.s32 %v1096, 96
        %v1109 = vadd.s32 %v1096, 104
        %v1110 = vadd.s32 %v1096, 112
        %v1111 = vadd.s32 %v1096, 120
        %v1112 = vld [vmem:[%s816] sm:$0x1]
        %v1113 = vlaneseq
        %v1114 = vshrl.u32 %v1113, 7
        %v1115 = vsub.s32 0, %v1114
        %v1116 = vrot.slane %v1112, %v1115
        %vm1117 = vcmp.eq.s32.totalorder %v1096, %v1116
        %vm1118 = vcmp.eq.s32.totalorder %v1097, %v1116
        %vm1119 = vcmp.eq.s32.totalorder %v1098, %v1116
        %vm1120 = vcmp.eq.s32.totalorder %v1099, %v1116
        %vm1121 = vcmp.eq.s32.totalorder %v1100, %v1116
        %vm1122 = vcmp.eq.s32.totalorder %v1101, %v1116
        %vm1123 = vcmp.eq.s32.totalorder %v1102, %v1116
        %vm1124 = vcmp.eq.s32.totalorder %v1103, %v1116
        %vm1125 = vcmp.eq.s32.totalorder %v1104, %v1116
        %vm1126 = vcmp.eq.s32.totalorder %v1105, %v1116
        %vm1127 = vcmp.eq.s32.totalorder %v1106, %v1116
        %vm1128 = vcmp.eq.s32.totalorder %v1107, %v1116
        %vm1129 = vcmp.eq.s32.totalorder %v1108, %v1116
        %vm1130 = vcmp.eq.s32.totalorder %v1109, %v1116
        %vm1131 = vcmp.eq.s32.totalorder %v1110, %v1116
        %vm1132 = vcmp.eq.s32.totalorder %v1111, %v1116
        %v1133 = vsel %vm1117, 1, 0
        %v1134 = vsel %vm1118, 1, 0
        %v1135 = vsel %vm1119, 1, 0
        %v1136 = vsel %vm1120, 1, 0
        %v1137 = vsel %vm1121, 1, 0
        %v1138 = vsel %vm1122, 1, 0
        %v1139 = vsel %vm1123, 1, 0
        %v1140 = vsel %vm1124, 1, 0
        %v1141 = vsel %vm1125, 1, 0
        %v1142 = vsel %vm1126, 1, 0
        %v1143 = vsel %vm1127, 1, 0
        %v1144 = vsel %vm1128, 1, 0
        %v1145 = vsel %vm1129, 1, 0
        %v1146 = vsel %vm1130, 1, 0
        %v1147 = vsel %vm1131, 1, 0
        %v1148 = vsel %vm1132, 1, 0
        %v1149 = vcvt.s32.f32 %v1133
        %v1150 = vcvt.s32.f32 %v1134
        %v1151 = vcvt.s32.f32 %v1135
        %v1152 = vcvt.s32.f32 %v1136
        %v1153 = vcvt.s32.f32 %v1137
        %v1154 = vcvt.s32.f32 %v1138
        %v1155 = vcvt.s32.f32 %v1139
        %v1156 = vcvt.s32.f32 %v1140
        %v1157 = vcvt.s32.f32 %v1141
        %v1158 = vcvt.s32.f32 %v1142
        %v1159 = vcvt.s32.f32 %v1143
        %v1160 = vcvt.s32.f32 %v1144
        %v1161 = vcvt.s32.f32 %v1145
        %v1162 = vcvt.s32.f32 %v1146
        %v1163 = vcvt.s32.f32 %v1147
        %v1164 = vcvt.s32.f32 %v1148
        %v1165 = vld [vmem:[#allocation2] sm:$0xff]
        %v1166 = vld [vmem:[#allocation2 + $0x8] sm:$0xff]
        %v1167 = vld [vmem:[#allocation2 + $0x10] sm:$0xff]
        %v1168 = vld [vmem:[#allocation2 + $0x18] sm:$0xff]
        %1169 = vmatprep.subr.mxu0 0.0
        %1170 = vmatpush1.msra.mxu0 %v1164
        %1171 = vmatprep.subr.mxu0 0.0
        %1172 = vmatpush1.msra.mxu0 %v1163
        %1173 = vmatprep.subr.mxu0 0.0
        %1174 = vmatpush1.msra.mxu0 %v1162
        %1175 = vmatprep.subr.mxu0 0.0
        %1176 = vmatpush1.msra.mxu0 %v1161
        %1177 = vmatprep.subr.mxu0 0.0
        %1178 = vmatpush1.msra.mxu0 %v1160
        %1179 = vmatprep.subr.mxu0 0.0
        %1180 = vmatpush1.msra.mxu0 %v1159
        %1181 = vmatprep.subr.mxu0 0.0
        %1182 = vmatpush1.msra.mxu0 %v1158
        %1183 = vmatprep.subr.mxu0 0.0
        %1184 = vmatpush1.msra.mxu0 %v1157
        %1185 = vmatprep.subr.mxu0 0.0
        %1186 = vmatpush1.msra.mxu0 %v1156
        %1187 = vmatprep.subr.mxu0 0.0
        %1188 = vmatpush1.msra.mxu0 %v1155
        %1189 = vmatprep.subr.mxu0 0.0
        %1190 = vmatpush1.msra.mxu0 %v1154
        %1191 = vmatprep.subr.mxu0 0.0
        %1192 = vmatpush1.msra.mxu0 %v1153
        %1193 = vmatprep.subr.mxu0 0.0
        %1194 = vmatpush1.msra.mxu0 %v1152
        %1195 = vmatprep.subr.mxu0 0.0
        %1196 = vmatpush1.msra.mxu0 %v1151
        %1197 = vmatprep.subr.mxu0 0.0
        %1198 = vmatpush1.msra.mxu0 %v1150
        %1199 = vmatprep.subr.mxu0 0.0
        %1200 = vmatpush1.msra.mxu0 %v1149
        %1201 = vmatprep.subr.mxu0 0.0
        %1202 = vmatpush2.msra.mxu0 0.0
        %1203 = vmatprep.subr.mxu0 0.0
        %1204 = vmatpush2.msra.mxu0 0.0
        %1205 = vmatprep.subr.mxu0 0.0
        %1206 = vmatpush2.msra.mxu0 0.0
        %1207 = vmatprep.subr.mxu0 0.0
        %1208 = vmatpush2.msra.mxu0 0.0
        %1209 = vmatprep.subr.mxu0 0.0
        %1210 = vmatpush2.msra.mxu0 0.0
        %1211 = vmatprep.subr.mxu0 0.0
        %1212 = vmatpush2.msra.mxu0 0.0
        %1213 = vmatprep.subr.mxu0 0.0
        %1214 = vmatpush2.msra.mxu0 0.0
        %1215 = vmatprep.subr.mxu0 0.0
        %1216 = vmatpush2.msra.mxu0 0.0
        %1217 = vmatprep.subr.mxu0 0.0
        %1218 = vmatpush2.msra.mxu0 0.0
        %1219 = vmatprep.subr.mxu0 0.0
        %1220 = vmatpush2.msra.mxu0 0.0
        %1221 = vmatprep.subr.mxu0 0.0
        %1222 = vmatpush2.msra.mxu0 0.0
        %1223 = vmatprep.subr.mxu0 0.0
        %1224 = vmatpush2.msra.mxu0 0.0
        %1225 = vmatprep.subr.mxu0 0.0
        %1226 = vmatpush2.msra.mxu0 0.0
        %1227 = vmatprep.subr.mxu0 0.0
        %1228 = vmatpush2.msra.mxu0 0.0
        %1229 = vmatprep.subr.mxu0 0.0
        %1230 = vmatpush2.msra.mxu0 0.0
        %1231 = vmatprep.subr.mxu0 0.0
        %1232 = vmatpush2.msra.mxu0 0.0
        %1233 = vmatprep.mubr.f32.mxu0 0.0
        %1234 = vmatmul.mubr.f32.gmra.mxu0 %v1165
        %v1235 = vpop.f32.mrf.mxu0
        %v1236 = vadd.f32 0.0, %v1235
        %v1237 = vpop.f32.mrf.mxu0
        %1238 = vmatprep.mubr.f32.mxu0 0.0
        %1239 = vmatmul.mubr.f32.gmra.mxu0 %v1166
        %v1240 = vpop.f32.mrf.mxu0
        %v1241 = vadd.f32 0.0, %v1240
        %v1242 = vpop.f32.mrf.mxu0
        %1243 = vmatprep.mubr.f32.mxu0 0.0
        %1244 = vmatmul.mubr.f32.gmra.mxu0 %v1167
        %v1245 = vpop.f32.mrf.mxu0
        %v1246 = vadd.f32 0.0, %v1245
        %v1247 = vpop.f32.mrf.mxu0
        %1248 = vmatprep.mubr.f32.mxu0 0.0
        %1249 = vmatmul.mubr.f32.gmra.mxu0 %v1168
        %v1250 = vpop.f32.mrf.mxu0
        %v1251 = vadd.f32 0.0, %v1250
        %v1252 = vpop.f32.mrf.mxu0
        %1253 = vdwg.mxu0
        %s1254 = smul.u32 %s42, 32
        %s1255 = scalar_lea.vmem %s11, %s1254
        %v1256 = vld [vmem:[%s1255] sm:$0xff]
        %v1257 = vld [vmem:[%s1255 + $0x8] sm:$0xff]
        %v1258 = vld [vmem:[%s1255 + $0x10] sm:$0xff]
        %v1259 = vld [vmem:[%s1255 + $0x18] sm:$0xff]
        %s1260 = scalar_lea.vmem %s12, %s1254
        %v1261 = vld [vmem:[%s1260] sm:$0xff]
        %v1262 = vld [vmem:[%s1260 + $0x8] sm:$0xff]
        %v1263 = vld [vmem:[%s1260 + $0x10] sm:$0xff]
        %v1264 = vld [vmem:[%s1260 + $0x18] sm:$0xff]
        %vm1265 = vcmask 261120
        %v1267 = vsel %vm1265, %v1261, 0
        %v1270 = vsel %vm1265, %v1262, 0
        %v1273 = vsel %vm1265, %v1263, 0
        %v1276 = vsel %vm1265, %v1264, 0
        %1278 = vmatprep.subr.mxu0 0.0
        %1279 = vmatpush1.msra.mxu0 0.0
        %1280 = vmatprep.subr.mxu0 0.0
        %1281 = vmatpush1.msra.mxu0 0.0
        %1282 = vmatprep.subr.mxu0 0.0
        %1283 = vmatpush1.msra.mxu0 0.0
        %1284 = vmatprep.subr.mxu0 0.0
        %1285 = vmatpush1.msra.mxu0 0.0
        %1286 = vmatprep.subr.mxu0 0.0
        %1287 = vmatpush1.msra.mxu0 0.0
        %1288 = vmatprep.subr.mxu0 0.0
        %1289 = vmatpush1.msra.mxu0 0.0
        %1290 = vmatprep.subr.mxu0 0.0
        %1291 = vmatpush1.msra.mxu0 0.0
        %1292 = vmatprep.subr.mxu0 0.0
        %1293 = vmatpush1.msra.mxu0 0.0
        %1294 = vmatprep.subr.mxu0 0.0
        %1295 = vmatpush1.msra.mxu0 0.0
        %1296 = vmatprep.subr.mxu0 0.0
        %1297 = vmatpush1.msra.mxu0 0.0
        %1298 = vmatprep.subr.mxu0 0.0
        %1299 = vmatpush1.msra.mxu0 0.0
        %1300 = vmatprep.subr.mxu0 0.0
        %1301 = vmatpush1.msra.mxu0 0.0
        %1302 = vmatprep.subr.mxu0 0.0
        %1303 = vmatpush1.msra.mxu0 %v1092
        %1304 = vmatprep.subr.mxu0 0.0
        %1305 = vmatpush1.msra.mxu0 %v1087
        %1306 = vmatprep.subr.mxu0 0.0
        %1307 = vmatpush1.msra.mxu0 %v1082
        %1308 = vmatprep.subr.mxu0 0.0
        %1309 = vmatpush1.msra.mxu0 %v1077
        %1310 = vmatprep.subr.mxu0 0.0
        %1311 = vmatpush2.msra.mxu0 0.0
        %1312 = vmatprep.subr.mxu0 0.0
        %1313 = vmatpush2.msra.mxu0 0.0
        %1314 = vmatprep.subr.mxu0 0.0
        %1315 = vmatpush2.msra.mxu0 0.0
        %1316 = vmatprep.subr.mxu0 0.0
        %1317 = vmatpush2.msra.mxu0 0.0
        %1318 = vmatprep.subr.mxu0 0.0
        %1319 = vmatpush2.msra.mxu0 0.0
        %1320 = vmatprep.subr.mxu0 0.0
        %1321 = vmatpush2.msra.mxu0 0.0
        %1322 = vmatprep.subr.mxu0 0.0
        %1323 = vmatpush2.msra.mxu0 0.0
        %1324 = vmatprep.subr.mxu0 0.0
        %1325 = vmatpush2.msra.mxu0 0.0
        %1326 = vmatprep.subr.mxu0 0.0
        %1327 = vmatpush2.msra.mxu0 0.0
        %1328 = vmatprep.subr.mxu0 0.0
        %1329 = vmatpush2.msra.mxu0 0.0
        %1330 = vmatprep.subr.mxu0 0.0
        %1331 = vmatpush2.msra.mxu0 0.0
        %1332 = vmatprep.subr.mxu0 0.0
        %1333 = vmatpush2.msra.mxu0 0.0
        %1334 = vmatprep.subr.mxu0 0.0
        %1335 = vmatpush2.msra.mxu0 0.0
        %1336 = vmatprep.subr.mxu0 0.0
        %1337 = vmatpush2.msra.mxu0 0.0
        %1338 = vmatprep.subr.mxu0 0.0
        %1339 = vmatpush2.msra.mxu0 0.0
        %1340 = vmatprep.subr.mxu0 0.0
        %1341 = vmatpush2.msra.mxu0 0.0
        %1342 = vmatprep.mubr.f32.mxu0 0.0
        %1343 = vmatmul.mubr.f32.gmra.mxu0 %v1267
        %v1344 = vpop.f32.mrf.mxu0
        %v1345 = vadd.f32 0.0, %v1344
        %v1346 = vpop.f32.mrf.mxu0
        %1347 = vmatprep.mubr.f32.mxu0 0.0
        %1348 = vmatmul.mubr.f32.gmra.mxu0 %v1270
        %v1349 = vpop.f32.mrf.mxu0
        %v1350 = vadd.f32 0.0, %v1349
        %v1351 = vpop.f32.mrf.mxu0
        %1352 = vmatprep.mubr.f32.mxu0 0.0
        %1353 = vmatmul.mubr.f32.gmra.mxu0 %v1273
        %v1354 = vpop.f32.mrf.mxu0
        %v1355 = vadd.f32 0.0, %v1354
        %v1356 = vpop.f32.mrf.mxu0
        %1357 = vmatprep.mubr.f32.mxu0 0.0
        %1358 = vmatmul.mubr.f32.gmra.mxu0 %v1276
        %v1359 = vpop.f32.mrf.mxu0
        %v1360 = vadd.f32 0.0, %v1359
        %v1361 = vpop.f32.mrf.mxu0
        %1362 = vdwg.mxu0
        %v1364 = vsel %vm1265, %v1256, 0
        %v1367 = vsel %vm1265, %v1257, 0
        %v1370 = vsel %vm1265, %v1258, 0
        %v1373 = vsel %vm1265, %v1259, 0
        %1375 = vmatprep.subr.mxu0 0.0
        %1376 = vmatpush1.msra.mxu0 0.0
        %1377 = vmatprep.subr.mxu0 0.0
        %1378 = vmatpush1.msra.mxu0 0.0
        %1379 = vmatprep.subr.mxu0 0.0
        %1380 = vmatpush1.msra.mxu0 0.0
        %1381 = vmatprep.subr.mxu0 0.0
        %1382 = vmatpush1.msra.mxu0 0.0
        %1383 = vmatprep.subr.mxu0 0.0
        %1384 = vmatpush1.msra.mxu0 0.0
        %1385 = vmatprep.subr.mxu0 0.0
        %1386 = vmatpush1.msra.mxu0 0.0
        %1387 = vmatprep.subr.mxu0 0.0
        %1388 = vmatpush1.msra.mxu0 0.0
        %1389 = vmatprep.subr.mxu0 0.0
        %1390 = vmatpush1.msra.mxu0 0.0
        %1391 = vmatprep.subr.mxu0 0.0
        %1392 = vmatpush1.msra.mxu0 0.0
        %1393 = vmatprep.subr.mxu0 0.0
        %1394 = vmatpush1.msra.mxu0 0.0
        %1395 = vmatprep.subr.mxu0 0.0
        %1396 = vmatpush1.msra.mxu0 0.0
        %1397 = vmatprep.subr.mxu0 0.0
        %1398 = vmatpush1.msra.mxu0 0.0
        %1399 = vmatprep.subr.mxu0 0.0
        %1400 = vmatpush1.msra.mxu0 %v1251
        %1401 = vmatprep.subr.mxu0 0.0
        %1402 = vmatpush1.msra.mxu0 %v1246
        %1403 = vmatprep.subr.mxu0 0.0
        %1404 = vmatpush1.msra.mxu0 %v1241
        %1405 = vmatprep.subr.mxu0 0.0
        %1406 = vmatpush1.msra.mxu0 %v1236
        %1407 = vmatprep.subr.mxu0 0.0
        %1408 = vmatpush2.msra.mxu0 0.0
        %1409 = vmatprep.subr.mxu0 0.0
        %1410 = vmatpush2.msra.mxu0 0.0
        %1411 = vmatprep.subr.mxu0 0.0
        %1412 = vmatpush2.msra.mxu0 0.0
        %1413 = vmatprep.subr.mxu0 0.0
        %1414 = vmatpush2.msra.mxu0 0.0
        %1415 = vmatprep.subr.mxu0 0.0
        %1416 = vmatpush2.msra.mxu0 0.0
        %1417 = vmatprep.subr.mxu0 0.0
        %1418 = vmatpush2.msra.mxu0 0.0
        %1419 = vmatprep.subr.mxu0 0.0
        %1420 = vmatpush2.msra.mxu0 0.0
        %1421 = vmatprep.subr.mxu0 0.0
        %1422 = vmatpush2.msra.mxu0 0.0
        %1423 = vmatprep.subr.mxu0 0.0
        %1424 = vmatpush2.msra.mxu0 0.0
        %1425 = vmatprep.subr.mxu0 0.0
        %1426 = vmatpush2.msra.mxu0 0.0
        %1427 = vmatprep.subr.mxu0 0.0
        %1428 = vmatpush2.msra.mxu0 0.0
        %1429 = vmatprep.subr.mxu0 0.0
        %1430 = vmatpush2.msra.mxu0 0.0
        %1431 = vmatprep.subr.mxu0 0.0
        %1432 = vmatpush2.msra.mxu0 0.0
        %1433 = vmatprep.subr.mxu0 0.0
        %1434 = vmatpush2.msra.mxu0 0.0
        %1435 = vmatprep.subr.mxu0 0.0
        %1436 = vmatpush2.msra.mxu0 0.0
        %1437 = vmatprep.subr.mxu0 0.0
        %1438 = vmatpush2.msra.mxu0 0.0
        %1439 = vmatprep.mubr.f32.mxu0 0.0
        %1440 = vmatmul.mubr.f32.gmra.mxu0 %v1364
        %v1441 = vpop.f32.mrf.mxu0
        %v1442 = vadd.f32 %v1345, %v1441
        %v1443 = vpop.f32.mrf.mxu0
        %1444 = vmatprep.mubr.f32.mxu0 0.0
        %1445 = vmatmul.mubr.f32.gmra.mxu0 %v1367
        %v1446 = vpop.f32.mrf.mxu0
        %v1447 = vadd.f32 %v1350, %v1446
        %v1448 = vpop.f32.mrf.mxu0
        %1449 = vmatprep.mubr.f32.mxu0 0.0
        %1450 = vmatmul.mubr.f32.gmra.mxu0 %v1370
        %v1451 = vpop.f32.mrf.mxu0
        %v1452 = vadd.f32 %v1355, %v1451
        %v1453 = vpop.f32.mrf.mxu0
        %1454 = vmatprep.mubr.f32.mxu0 0.0
        %1455 = vmatmul.mubr.f32.gmra.mxu0 %v1373
        %v1456 = vpop.f32.mrf.mxu0
        %v1457 = vadd.f32 %v1360, %v1456
        %v1458 = vpop.f32.mrf.mxu0
        %1459 = vdwg.mxu0
        %s1460 = scalar_lea.vmem %s13, %s1254
        %v1461 = vld [vmem:[%s1460] sm:$0xff]
        %v1462 = vld [vmem:[%s1460 + $0x8] sm:$0xff]
        %v1463 = vld [vmem:[%s1460 + $0x10] sm:$0xff]
        %v1464 = vld [vmem:[%s1460 + $0x18] sm:$0xff]
        %1466 = vset.pattern.permute.xlu0 0
        %1467 = vperm.xlu0 %1466, %v1461
        %v1468 = vpop.permute.xlu0 %1467
        %1471 = vset.pattern.permute.xlu0 0
        %1472 = vperm.xlu0 %1471, %v1462
        %v1473 = vpop.permute.xlu0 %1472
        %1476 = vset.pattern.permute.xlu0 0
        %1477 = vperm.xlu0 %1476, %v1463
        %v1478 = vpop.permute.xlu0 %1477
        %1481 = vset.pattern.permute.xlu0 0
        %1482 = vperm.xlu0 %1481, %v1464
        %v1483 = vpop.permute.xlu0 %1482
        %v1485 = vadd.f32 %v1442, %v1468
        %v1486 = vadd.f32 %v1447, %v1473
        %v1487 = vadd.f32 %v1452, %v1478
        %v1488 = vadd.f32 %v1457, %v1483
        %v1489 = vmax.f32 %v1485, 0.0
        %v1490 = vmax.f32 %v1486, 0.0
        %v1491 = vmax.f32 %v1487, 0.0
        %v1492 = vmax.f32 %v1488, 0.0
        %v1493 = vlaneseq
        %v1494 = vand.u32 %v1493, 127
        %v1495 = vld [vmem:[%s821] sm:$0xff]
        %v1496 = vld [vmem:[%s821 + $0x8] sm:$0xff]
        %v1497 = vld [vmem:[%s821 + $0x10] sm:$0xff]
        %v1498 = vld [vmem:[%s821 + $0x18] sm:$0xff]
        %v1499 = vld [vmem:[%s821 + $0x20] sm:$0xff]
        %v1500 = vld [vmem:[%s821 + $0x28] sm:$0xff]
        %v1501 = vld [vmem:[%s821 + $0x30] sm:$0xff]
        %v1502 = vld [vmem:[%s821 + $0x38] sm:$0xff]
        %v1503 = vld [vmem:[%s821 + $0x40] sm:$0xff]
        %v1504 = vld [vmem:[%s821 + $0x48] sm:$0xff]
        %v1505 = vld [vmem:[%s821 + $0x50] sm:$0xff]
        %v1506 = vld [vmem:[%s821 + $0x58] sm:$0xff]
        %v1507 = vld [vmem:[%s821 + $0x60] sm:$0xff]
        %v1508 = vld [vmem:[%s821 + $0x68] sm:$0xff]
        %v1509 = vld [vmem:[%s821 + $0x70] sm:$0xff]
        %v1510 = vld [vmem:[%s821 + $0x78] sm:$0xff]
        %1511 = vset.pattern.permute.xlu0 0
        %1512 = vperm.xlu0 %1511, %v1495
        %v1513 = vpop.permute.xlu0 %1512
        %1514 = vset.pattern.permute.xlu0 0
        %1515 = vperm.xlu0 %1514, %v1496
        %v1516 = vpop.permute.xlu0 %1515
        %1517 = vset.pattern.permute.xlu0 0
        %1518 = vperm.xlu0 %1517, %v1497
        %v1519 = vpop.permute.xlu0 %1518
        %1520 = vset.pattern.permute.xlu0 0
        %1521 = vperm.xlu0 %1520, %v1498
        %v1522 = vpop.permute.xlu0 %1521
        %1523 = vset.pattern.permute.xlu0 0
        %1524 = vperm.xlu0 %1523, %v1499
        %v1525 = vpop.permute.xlu0 %1524
        %1526 = vset.pattern.permute.xlu0 0
        %1527 = vperm.xlu0 %1526, %v1500
        %v1528 = vpop.permute.xlu0 %1527
        %1529 = vset.pattern.permute.xlu0 0
        %1530 = vperm.xlu0 %1529, %v1501
        %v1531 = vpop.permute.xlu0 %1530
        %1532 = vset.pattern.permute.xlu0 0
        %1533 = vperm.xlu0 %1532, %v1502
        %v1534 = vpop.permute.xlu0 %1533
        %1535 = vset.pattern.permute.xlu0 0
        %1536 = vperm.xlu0 %1535, %v1503
        %v1537 = vpop.permute.xlu0 %1536
        %1538 = vset.pattern.permute.xlu0 0
        %1539 = vperm.xlu0 %1538, %v1504
        %v1540 = vpop.permute.xlu0 %1539
        %1541 = vset.pattern.permute.xlu0 0
        %1542 = vperm.xlu0 %1541, %v1505
        %v1543 = vpop.permute.xlu0 %1542
        %1544 = vset.pattern.permute.xlu0 0
        %1545 = vperm.xlu0 %1544, %v1506
        %v1546 = vpop.permute.xlu0 %1545
        %1547 = vset.pattern.permute.xlu0 0
        %1548 = vperm.xlu0 %1547, %v1507
        %v1549 = vpop.permute.xlu0 %1548
        %1550 = vset.pattern.permute.xlu0 0
        %1551 = vperm.xlu0 %1550, %v1508
        %v1552 = vpop.permute.xlu0 %1551
        %1553 = vset.pattern.permute.xlu0 0
        %1554 = vperm.xlu0 %1553, %v1509
        %v1555 = vpop.permute.xlu0 %1554
        %1556 = vset.pattern.permute.xlu0 0
        %1557 = vperm.xlu0 %1556, %v1510
        %v1558 = vpop.permute.xlu0 %1557
        %vm1559 = vcmp.eq.s32.totalorder %v1494, %v1513
        %vm1560 = vcmp.eq.s32.totalorder %v1494, %v1516
        %vm1561 = vcmp.eq.s32.totalorder %v1494, %v1519
        %vm1562 = vcmp.eq.s32.totalorder %v1494, %v1522
        %vm1563 = vcmp.eq.s32.totalorder %v1494, %v1525
        %vm1564 = vcmp.eq.s32.totalorder %v1494, %v1528
        %vm1565 = vcmp.eq.s32.totalorder %v1494, %v1531
        %vm1566 = vcmp.eq.s32.totalorder %v1494, %v1534
        %vm1567 = vcmp.eq.s32.totalorder %v1494, %v1537
        %vm1568 = vcmp.eq.s32.totalorder %v1494, %v1540
        %vm1569 = vcmp.eq.s32.totalorder %v1494, %v1543
        %vm1570 = vcmp.eq.s32.totalorder %v1494, %v1546
        %vm1571 = vcmp.eq.s32.totalorder %v1494, %v1549
        %vm1572 = vcmp.eq.s32.totalorder %v1494, %v1552
        %vm1573 = vcmp.eq.s32.totalorder %v1494, %v1555
        %vm1574 = vcmp.eq.s32.totalorder %v1494, %v1558
        %v1575 = vsel %vm1559, 1, 0
        %v1576 = vsel %vm1560, 1, 0
        %v1577 = vsel %vm1561, 1, 0
        %v1578 = vsel %vm1562, 1, 0
        %v1579 = vsel %vm1563, 1, 0
        %v1580 = vsel %vm1564, 1, 0
        %v1581 = vsel %vm1565, 1, 0
        %v1582 = vsel %vm1566, 1, 0
        %v1583 = vsel %vm1567, 1, 0
        %v1584 = vsel %vm1568, 1, 0
        %v1585 = vsel %vm1569, 1, 0
        %v1586 = vsel %vm1570, 1, 0
        %v1587 = vsel %vm1571, 1, 0
        %v1588 = vsel %vm1572, 1, 0
        %v1589 = vsel %vm1573, 1, 0
        %v1590 = vsel %vm1574, 1, 0
        %v1591 = vcvt.s32.f32 %v1575
        %v1592 = vcvt.s32.f32 %v1576
        %v1593 = vcvt.s32.f32 %v1577
        %v1594 = vcvt.s32.f32 %v1578
        %v1595 = vcvt.s32.f32 %v1579
        %v1596 = vcvt.s32.f32 %v1580
        %v1597 = vcvt.s32.f32 %v1581
        %v1598 = vcvt.s32.f32 %v1582
        %v1599 = vcvt.s32.f32 %v1583
        %v1600 = vcvt.s32.f32 %v1584
        %v1601 = vcvt.s32.f32 %v1585
        %v1602 = vcvt.s32.f32 %v1586
        %v1603 = vcvt.s32.f32 %v1587
        %v1604 = vcvt.s32.f32 %v1588
        %v1605 = vcvt.s32.f32 %v1589
        %v1606 = vcvt.s32.f32 %v1590
        %v1607 = vld [vmem:[#allocation3] sm:$0xff]
        %v1608 = vld [vmem:[#allocation3 + $0x8] sm:$0xff]
        %v1609 = vld [vmem:[#allocation3 + $0x10] sm:$0xff]
        %v1610 = vld [vmem:[#allocation3 + $0x18] sm:$0xff]
        %1611 = vmatprep.subr.mxu0 0.0
        %1612 = vmatpush1.msra.mxu0 %v1606
        %1613 = vmatprep.subr.mxu0 0.0
        %1614 = vmatpush1.msra.mxu0 %v1605
        %1615 = vmatprep.subr.mxu0 0.0
        %1616 = vmatpush1.msra.mxu0 %v1604
        %1617 = vmatprep.subr.mxu0 0.0
        %1618 = vmatpush1.msra.mxu0 %v1603
        %1619 = vmatprep.subr.mxu0 0.0
        %1620 = vmatpush1.msra.mxu0 %v1602
        %1621 = vmatprep.subr.mxu0 0.0
        %1622 = vmatpush1.msra.mxu0 %v1601
        %1623 = vmatprep.subr.mxu0 0.0
        %1624 = vmatpush1.msra.mxu0 %v1600
        %1625 = vmatprep.subr.mxu0 0.0
        %1626 = vmatpush1.msra.mxu0 %v1599
        %1627 = vmatprep.subr.mxu0 0.0
        %1628 = vmatpush1.msra.mxu0 %v1598
        %1629 = vmatprep.subr.mxu0 0.0
        %1630 = vmatpush1.msra.mxu0 %v1597
        %1631 = vmatprep.subr.mxu0 0.0
        %1632 = vmatpush1.msra.mxu0 %v1596
        %1633 = vmatprep.subr.mxu0 0.0
        %1634 = vmatpush1.msra.mxu0 %v1595
        %1635 = vmatprep.subr.mxu0 0.0
        %1636 = vmatpush1.msra.mxu0 %v1594
        %1637 = vmatprep.subr.mxu0 0.0
        %1638 = vmatpush1.msra.mxu0 %v1593
        %1639 = vmatprep.subr.mxu0 0.0
        %1640 = vmatpush1.msra.mxu0 %v1592
        %1641 = vmatprep.subr.mxu0 0.0
        %1642 = vmatpush1.msra.mxu0 %v1591
        %1643 = vmatprep.subr.mxu0 0.0
        %1644 = vmatpush2.msra.mxu0 0.0
        %1645 = vmatprep.subr.mxu0 0.0
        %1646 = vmatpush2.msra.mxu0 0.0
        %1647 = vmatprep.subr.mxu0 0.0
        %1648 = vmatpush2.msra.mxu0 0.0
        %1649 = vmatprep.subr.mxu0 0.0
        %1650 = vmatpush2.msra.mxu0 0.0
        %1651 = vmatprep.subr.mxu0 0.0
        %1652 = vmatpush2.msra.mxu0 0.0
        %1653 = vmatprep.subr.mxu0 0.0
        %1654 = vmatpush2.msra.mxu0 0.0
        %1655 = vmatprep.subr.mxu0 0.0
        %1656 = vmatpush2.msra.mxu0 0.0
        %1657 = vmatprep.subr.mxu0 0.0
        %1658 = vmatpush2.msra.mxu0 0.0
        %1659 = vmatprep.subr.mxu0 0.0
        %1660 = vmatpush2.msra.mxu0 0.0
        %1661 = vmatprep.subr.mxu0 0.0
        %1662 = vmatpush2.msra.mxu0 0.0
        %1663 = vmatprep.subr.mxu0 0.0
        %1664 = vmatpush2.msra.mxu0 0.0
        %1665 = vmatprep.subr.mxu0 0.0
        %1666 = vmatpush2.msra.mxu0 0.0
        %1667 = vmatprep.subr.mxu0 0.0
        %1668 = vmatpush2.msra.mxu0 0.0
        %1669 = vmatprep.subr.mxu0 0.0
        %1670 = vmatpush2.msra.mxu0 0.0
        %1671 = vmatprep.subr.mxu0 0.0
        %1672 = vmatpush2.msra.mxu0 0.0
        %1673 = vmatprep.subr.mxu0 0.0
        %1674 = vmatpush2.msra.mxu0 0.0
        %1675 = vmatprep.mubr.f32.mxu0 0.0
        %1676 = vmatmul.mubr.f32.gmra.mxu0 %v1489
        %v1677 = vpop.f32.mrf.mxu0
        %v1678 = vadd.f32 0.0, %v1677
        %v1679 = vpop.f32.mrf.mxu0
        %1680 = vmatprep.mubr.f32.mxu0 0.0
        %1681 = vmatmul.mubr.f32.gmra.mxu0 %v1490
        %v1682 = vpop.f32.mrf.mxu0
        %v1683 = vadd.f32 0.0, %v1682
        %v1684 = vpop.f32.mrf.mxu0
        %1685 = vmatprep.mubr.f32.mxu0 0.0
        %1686 = vmatmul.mubr.f32.gmra.mxu0 %v1491
        %v1687 = vpop.f32.mrf.mxu0
        %v1688 = vadd.f32 0.0, %v1687
        %v1689 = vpop.f32.mrf.mxu0
        %1690 = vmatprep.mubr.f32.mxu0 0.0
        %1691 = vmatmul.mubr.f32.gmra.mxu0 %v1492
        %v1692 = vpop.f32.mrf.mxu0
        %v1693 = vadd.f32 0.0, %v1692
        %v1694 = vpop.f32.mrf.mxu0
        %1695 = vdwg.mxu0
        %v1696 = vadd.f32 %v1607, %v1678
        %v1697 = vadd.f32 %v1608, %v1683
        %v1698 = vadd.f32 %v1609, %v1688
        %v1699 = vadd.f32 %v1610, %v1693
        %1700 = vst [vmem:[#allocation3] sm:$0xff] %v1696
        %1701 = vst [vmem:[#allocation3 + $0x8] sm:$0xff] %v1697
        %1702 = vst [vmem:[#allocation3 + $0x10] sm:$0xff] %v1698
        %1703 = vst [vmem:[#allocation3 + $0x18] sm:$0xff] %v1699
        // Predicated region
        $region133: #{tpu_custom_call.1} parent=123 // pred_check
          %p1704 = pneg %p824
        $region134: #{tpu_custom_call.1} parent=123 // pred_check_branch
          %1706 = sbr.rel (%p1704) target = $region136
        $region135: #{tpu_custom_call.1} parent=123 // pred_region
          %s1707 = scalar_lea.vmem %s14, %s1254
          %v1708 = vld [vmem:[%s1707] sm:$0xff]
          %v1709 = vld [vmem:[%s1707 + $0x8] sm:$0xff]
          %v1710 = vld [vmem:[%s1707 + $0x10] sm:$0xff]
          %v1711 = vld [vmem:[%s1707 + $0x18] sm:$0xff]
          %v1712 = vld [vmem:[#allocation2] sm:$0xff]
          %v1713 = vld [vmem:[#allocation2 + $0x8] sm:$0xff]
          %v1714 = vld [vmem:[#allocation2 + $0x10] sm:$0xff]
          %v1715 = vld [vmem:[#allocation2 + $0x18] sm:$0xff]
          %s1716 = scalar_lea.vmem %s15, %s1254
          %v1717 = vld [vmem:[%s1716] sm:$0xff]
          %v1718 = vld [vmem:[%s1716 + $0x8] sm:$0xff]
          %v1719 = vld [vmem:[%s1716 + $0x10] sm:$0xff]
          %v1720 = vld [vmem:[%s1716 + $0x18] sm:$0xff]
          %v1721 = vld [vmem:[#allocation3] sm:$0xff]
          %v1722 = vld [vmem:[#allocation3 + $0x8] sm:$0xff]
          %v1723 = vld [vmem:[#allocation3 + $0x10] sm:$0xff]
          %v1724 = vld [vmem:[#allocation3 + $0x18] sm:$0xff]
          %v1726 = vsel %vm1265, %v1717, 0
          %v1729 = vsel %vm1265, %v1718, 0
          %v1732 = vsel %vm1265, %v1719, 0
          %v1735 = vsel %vm1265, %v1720, 0
          %1737 = vmatprep.subr.mxu0 0.0
          %1738 = vmatpush1.msra.mxu0 0.0
          %1739 = vmatprep.subr.mxu0 0.0
          %1740 = vmatpush1.msra.mxu0 0.0
          %1741 = vmatprep.subr.mxu0 0.0
          %1742 = vmatpush1.msra.mxu0 0.0
          %1743 = vmatprep.subr.mxu0 0.0
          %1744 = vmatpush1.msra.mxu0 0.0
          %1745 = vmatprep.subr.mxu0 0.0
          %1746 = vmatpush1.msra.mxu0 0.0
          %1747 = vmatprep.subr.mxu0 0.0
          %1748 = vmatpush1.msra.mxu0 0.0
          %1749 = vmatprep.subr.mxu0 0.0
          %1750 = vmatpush1.msra.mxu0 0.0
          %1751 = vmatprep.subr.mxu0 0.0
          %1752 = vmatpush1.msra.mxu0 0.0
          %1753 = vmatprep.subr.mxu0 0.0
          %1754 = vmatpush1.msra.mxu0 0.0
          %1755 = vmatprep.subr.mxu0 0.0
          %1756 = vmatpush1.msra.mxu0 0.0
          %1757 = vmatprep.subr.mxu0 0.0
          %1758 = vmatpush1.msra.mxu0 0.0
          %1759 = vmatprep.subr.mxu0 0.0
          %1760 = vmatpush1.msra.mxu0 0.0
          %1761 = vmatprep.subr.mxu0 0.0
          %1762 = vmatpush1.msra.mxu0 %v1724
          %1763 = vmatprep.subr.mxu0 0.0
          %1764 = vmatpush1.msra.mxu0 %v1723
          %1765 = vmatprep.subr.mxu0 0.0
          %1766 = vmatpush1.msra.mxu0 %v1722
          %1767 = vmatprep.subr.mxu0 0.0
          %1768 = vmatpush1.msra.mxu0 %v1721
          %1769 = vmatprep.subr.mxu0 0.0
          %1770 = vmatpush2.msra.mxu0 0.0
          %1771 = vmatprep.subr.mxu0 0.0
          %1772 = vmatpush2.msra.mxu0 0.0
          %1773 = vmatprep.subr.mxu0 0.0
          %1774 = vmatpush2.msra.mxu0 0.0
          %1775 = vmatprep.subr.mxu0 0.0
          %1776 = vmatpush2.msra.mxu0 0.0
          %1777 = vmatprep.subr.mxu0 0.0
          %1778 = vmatpush2.msra.mxu0 0.0
          %1779 = vmatprep.subr.mxu0 0.0
          %1780 = vmatpush2.msra.mxu0 0.0
          %1781 = vmatprep.subr.mxu0 0.0
          %1782 = vmatpush2.msra.mxu0 0.0
          %1783 = vmatprep.subr.mxu0 0.0
          %1784 = vmatpush2.msra.mxu0 0.0
          %1785 = vmatprep.subr.mxu0 0.0
          %1786 = vmatpush2.msra.mxu0 0.0
          %1787 = vmatprep.subr.mxu0 0.0
          %1788 = vmatpush2.msra.mxu0 0.0
          %1789 = vmatprep.subr.mxu0 0.0
          %1790 = vmatpush2.msra.mxu0 0.0
          %1791 = vmatprep.subr.mxu0 0.0
          %1792 = vmatpush2.msra.mxu0 0.0
          %1793 = vmatprep.subr.mxu0 0.0
          %1794 = vmatpush2.msra.mxu0 0.0
          %1795 = vmatprep.subr.mxu0 0.0
          %1796 = vmatpush2.msra.mxu0 0.0
          %1797 = vmatprep.subr.mxu0 0.0
          %1798 = vmatpush2.msra.mxu0 0.0
          %1799 = vmatprep.subr.mxu0 0.0
          %1800 = vmatpush2.msra.mxu0 0.0
          %1801 = vmatprep.mubr.f32.mxu0 0.0
          %1802 = vmatmul.mubr.f32.gmra.mxu0 %v1726
          %v1803 = vpop.f32.mrf.mxu0
          %v1804 = vadd.f32 0.0, %v1803
          %v1805 = vpop.f32.mrf.mxu0
          %1806 = vmatprep.mubr.f32.mxu0 0.0
          %1807 = vmatmul.mubr.f32.gmra.mxu0 %v1729
          %v1808 = vpop.f32.mrf.mxu0
          %v1809 = vadd.f32 0.0, %v1808
          %v1810 = vpop.f32.mrf.mxu0
          %1811 = vmatprep.mubr.f32.mxu0 0.0
          %1812 = vmatmul.mubr.f32.gmra.mxu0 %v1732
          %v1813 = vpop.f32.mrf.mxu0
          %v1814 = vadd.f32 0.0, %v1813
          %v1815 = vpop.f32.mrf.mxu0
          %1816 = vmatprep.mubr.f32.mxu0 0.0
          %1817 = vmatmul.mubr.f32.gmra.mxu0 %v1735
          %v1818 = vpop.f32.mrf.mxu0
          %v1819 = vadd.f32 0.0, %v1818
          %v1820 = vpop.f32.mrf.mxu0
          %1821 = vdwg.mxu0
          %v1823 = vsel %vm1265, %v1708, 0
          %v1826 = vsel %vm1265, %v1709, 0
          %v1829 = vsel %vm1265, %v1710, 0
          %v1832 = vsel %vm1265, %v1711, 0
          %1834 = vmatprep.subr.mxu0 0.0
          %1835 = vmatpush1.msra.mxu0 0.0
          %1836 = vmatprep.subr.mxu0 0.0
          %1837 = vmatpush1.msra.mxu0 0.0
          %1838 = vmatprep.subr.mxu0 0.0
          %1839 = vmatpush1.msra.mxu0 0.0
          %1840 = vmatprep.subr.mxu0 0.0
          %1841 = vmatpush1.msra.mxu0 0.0
          %1842 = vmatprep.subr.mxu0 0.0
          %1843 = vmatpush1.msra.mxu0 0.0
          %1844 = vmatprep.subr.mxu0 0.0
          %1845 = vmatpush1.msra.mxu0 0.0
          %1846 = vmatprep.subr.mxu0 0.0
          %1847 = vmatpush1.msra.mxu0 0.0
          %1848 = vmatprep.subr.mxu0 0.0
          %1849 = vmatpush1.msra.mxu0 0.0
          %1850 = vmatprep.subr.mxu0 0.0
          %1851 = vmatpush1.msra.mxu0 0.0
          %1852 = vmatprep.subr.mxu0 0.0
          %1853 = vmatpush1.msra.mxu0 0.0
          %1854 = vmatprep.subr.mxu0 0.0
          %1855 = vmatpush1.msra.mxu0 0.0
          %1856 = vmatprep.subr.mxu0 0.0
          %1857 = vmatpush1.msra.mxu0 0.0
          %1858 = vmatprep.subr.mxu0 0.0
          %1859 = vmatpush1.msra.mxu0 %v1715
          %1860 = vmatprep.subr.mxu0 0.0
          %1861 = vmatpush1.msra.mxu0 %v1714
          %1862 = vmatprep.subr.mxu0 0.0
          %1863 = vmatpush1.msra.mxu0 %v1713
          %1864 = vmatprep.subr.mxu0 0.0
          %1865 = vmatpush1.msra.mxu0 %v1712
          %1866 = vmatprep.subr.mxu0 0.0
          %1867 = vmatpush2.msra.mxu0 0.0
          %1868 = vmatprep.subr.mxu0 0.0
          %1869 = vmatpush2.msra.mxu0 0.0
          %1870 = vmatprep.subr.mxu0 0.0
          %1871 = vmatpush2.msra.mxu0 0.0
          %1872 = vmatprep.subr.mxu0 0.0
          %1873 = vmatpush2.msra.mxu0 0.0
          %1874 = vmatprep.subr.mxu0 0.0
          %1875 = vmatpush2.msra.mxu0 0.0
          %1876 = vmatprep.subr.mxu0 0.0
          %1877 = vmatpush2.msra.mxu0 0.0
          %1878 = vmatprep.subr.mxu0 0.0
          %1879 = vmatpush2.msra.mxu0 0.0
          %1880 = vmatprep.subr.mxu0 0.0
          %1881 = vmatpush2.msra.mxu0 0.0
          %1882 = vmatprep.subr.mxu0 0.0
          %1883 = vmatpush2.msra.mxu0 0.0
          %1884 = vmatprep.subr.mxu0 0.0
          %1885 = vmatpush2.msra.mxu0 0.0
          %1886 = vmatprep.subr.mxu0 0.0
          %1887 = vmatpush2.msra.mxu0 0.0
          %1888 = vmatprep.subr.mxu0 0.0
          %1889 = vmatpush2.msra.mxu0 0.0
          %1890 = vmatprep.subr.mxu0 0.0
          %1891 = vmatpush2.msra.mxu0 0.0
          %1892 = vmatprep.subr.mxu0 0.0
          %1893 = vmatpush2.msra.mxu0 0.0
          %1894 = vmatprep.subr.mxu0 0.0
          %1895 = vmatpush2.msra.mxu0 0.0
          %1896 = vmatprep.subr.mxu0 0.0
          %1897 = vmatpush2.msra.mxu0 0.0
          %1898 = vmatprep.mubr.f32.mxu0 0.0
          %1899 = vmatmul.mubr.f32.gmra.mxu0 %v1823
          %v1900 = vpop.f32.mrf.mxu0
          %v1901 = vadd.f32 %v1804, %v1900
          %v1902 = vpop.f32.mrf.mxu0
          %1903 = vmatprep.mubr.f32.mxu0 0.0
          %1904 = vmatmul.mubr.f32.gmra.mxu0 %v1826
          %v1905 = vpop.f32.mrf.mxu0
          %v1906 = vadd.f32 %v1809, %v1905
          %v1907 = vpop.f32.mrf.mxu0
          %1908 = vmatprep.mubr.f32.mxu0 0.0
          %1909 = vmatmul.mubr.f32.gmra.mxu0 %v1829
          %v1910 = vpop.f32.mrf.mxu0
          %v1911 = vadd.f32 %v1814, %v1910
          %v1912 = vpop.f32.mrf.mxu0
          %1913 = vmatprep.mubr.f32.mxu0 0.0
          %1914 = vmatmul.mubr.f32.gmra.mxu0 %v1832
          %v1915 = vpop.f32.mrf.mxu0
          %v1916 = vadd.f32 %v1819, %v1915
          %v1917 = vpop.f32.mrf.mxu0
          %1918 = vdwg.mxu0
          %s1919 = scalar_lea.vmem %s16, %s1254
          %v1920 = vld [vmem:[%s1919] sm:$0xff]
          %v1921 = vld [vmem:[%s1919 + $0x8] sm:$0xff]
          %v1922 = vld [vmem:[%s1919 + $0x10] sm:$0xff]
          %v1923 = vld [vmem:[%s1919 + $0x18] sm:$0xff]
          %1925 = vset.pattern.permute.xlu0 0
          %1926 = vperm.xlu0 %1925, %v1920
          %v1927 = vpop.permute.xlu0 %1926
          %1930 = vset.pattern.permute.xlu0 0
          %1931 = vperm.xlu0 %1930, %v1921
          %v1932 = vpop.permute.xlu0 %1931
          %1935 = vset.pattern.permute.xlu0 0
          %1936 = vperm.xlu0 %1935, %v1922
          %v1937 = vpop.permute.xlu0 %1936
          %1940 = vset.pattern.permute.xlu0 0
          %1941 = vperm.xlu0 %1940, %v1923
          %v1942 = vpop.permute.xlu0 %1941
          %v1944 = vadd.f32 %v1901, %v1927
          %v1945 = vadd.f32 %v1906, %v1932
          %v1946 = vadd.f32 %v1911, %v1937
          %v1947 = vadd.f32 %v1916, %v1942
          %v1948 = vmax.f32 %v1944, 0.0
          %v1949 = vmax.f32 %v1945, 0.0
          %v1950 = vmax.f32 %v1946, 0.0
          %v1951 = vmax.f32 %v1947, 0.0
          %1952 = vst [vmem:[#allocation2] sm:$0xff] %v1948
          %1953 = vst [vmem:[#allocation2 + $0x8] sm:$0xff] %v1949
          %1954 = vst [vmem:[#allocation2 + $0x10] sm:$0xff] %v1950
          %1955 = vst [vmem:[#allocation2 + $0x18] sm:$0xff] %v1951
        $region136: #{tpu_custom_call.1} parent=123 // pred_fallthru
          _
        %p1956 = scmp.eq.s32.totalorder %s42, 3
        %p1957 = pnand %p1956, %p824
        %p1958 = pneg %p1957
        // Predicated region
        $region137: #{tpu_custom_call.1} parent=123 // pred_check
          _
        $region138: #{tpu_custom_call.1} parent=123 // pred_check_branch
          %1960 = sbr.rel (%p1957) target = $region140
        $region139: #{tpu_custom_call.1} parent=123 // pred_region
          %v1961 = vld [vmem:[#allocation2] sm:$0xff]
          %v1962 = vld [vmem:[#allocation2 + $0x8] sm:$0xff]
          %v1963 = vld [vmem:[#allocation2 + $0x10] sm:$0xff]
          %v1964 = vld [vmem:[#allocation2 + $0x18] sm:$0xff]
          %v1965 = vld [vmem:[%s4] sm:$0xff]
          %v1966 = vld [vmem:[%s4 + $0x8] sm:$0xff]
          %v1967 = vld [vmem:[%s4 + $0x10] sm:$0xff]
          %v1968 = vld [vmem:[%s4 + $0x18] sm:$0xff]
          %v1969 = vld [vmem:[%s4 + $0x20] sm:$0xff]
          %v1970 = vld [vmem:[%s4 + $0x28] sm:$0xff]
          %v1971 = vld [vmem:[%s4 + $0x30] sm:$0xff]
          %v1972 = vld [vmem:[%s4 + $0x38] sm:$0xff]
          %v1973 = vld [vmem:[%s4 + $0x40] sm:$0xff]
          %v1974 = vld [vmem:[%s4 + $0x48] sm:$0xff]
          %v1975 = vld [vmem:[%s4 + $0x50] sm:$0xff]
          %v1976 = vld [vmem:[%s4 + $0x58] sm:$0xff]
          %v1977 = vld [vmem:[%s4 + $0x60] sm:$0xff]
          %v1978 = vld [vmem:[%s4 + $0x68] sm:$0xff]
          %v1979 = vld [vmem:[%s4 + $0x70] sm:$0xff]
          %v1980 = vld [vmem:[%s4 + $0x78] sm:$0xff]
          %1981 = vset.pattern.permute.xlu0 0
          %1982 = vperm.xlu0 %1981, %v1965
          %v1983 = vpop.permute.xlu0 %1982
          %1984 = vset.pattern.permute.xlu0 0
          %1985 = vperm.xlu0 %1984, %v1966
          %v1986 = vpop.permute.xlu0 %1985
          %1987 = vset.pattern.permute.xlu0 0
          %1988 = vperm.xlu0 %1987, %v1967
          %v1989 = vpop.permute.xlu0 %1988
          %1990 = vset.pattern.permute.xlu0 0
          %1991 = vperm.xlu0 %1990, %v1968
          %v1992 = vpop.permute.xlu0 %1991
          %1993 = vset.pattern.permute.xlu0 0
          %1994 = vperm.xlu0 %1993, %v1969
          %v1995 = vpop.permute.xlu0 %1994
          %1996 = vset.pattern.permute.xlu0 0
          %1997 = vperm.xlu0 %1996, %v1970
          %v1998 = vpop.permute.xlu0 %1997
          %1999 = vset.pattern.permute.xlu0 0
          %2000 = vperm.xlu0 %1999, %v1971
          %v2001 = vpop.permute.xlu0 %2000
          %2002 = vset.pattern.permute.xlu0 0
          %2003 = vperm.xlu0 %2002, %v1972
          %v2004 = vpop.permute.xlu0 %2003
          %2005 = vset.pattern.permute.xlu0 0
          %2006 = vperm.xlu0 %2005, %v1973
          %v2007 = vpop.permute.xlu0 %2006
          %2008 = vset.pattern.permute.xlu0 0
          %2009 = vperm.xlu0 %2008, %v1974
          %v2010 = vpop.permute.xlu0 %2009
          %2011 = vset.pattern.permute.xlu0 0
          %2012 = vperm.xlu0 %2011, %v1975
          %v2013 = vpop.permute.xlu0 %2012
          %2014 = vset.pattern.permute.xlu0 0
          %2015 = vperm.xlu0 %2014, %v1976
          %v2016 = vpop.permute.xlu0 %2015
          %2017 = vset.pattern.permute.xlu0 0
          %2018 = vperm.xlu0 %2017, %v1977
          %v2019 = vpop.permute.xlu0 %2018
          %2020 = vset.pattern.permute.xlu0 0
          %2021 = vperm.xlu0 %2020, %v1978
          %v2022 = vpop.permute.xlu0 %2021
          %2023 = vset.pattern.permute.xlu0 0
          %2024 = vperm.xlu0 %2023, %v1979
          %v2025 = vpop.permute.xlu0 %2024
          %2026 = vset.pattern.permute.xlu0 0
          %2027 = vperm.xlu0 %2026, %v1980
          %v2028 = vpop.permute.xlu0 %2027
          %vm2029 = vcmp.eq.s32.totalorder %v1494, %v1983
          %vm2030 = vcmp.eq.s32.totalorder %v1494, %v1986
          %vm2031 = vcmp.eq.s32.totalorder %v1494, %v1989
          %vm2032 = vcmp.eq.s32.totalorder %v1494, %v1992
          %vm2033 = vcmp.eq.s32.totalorder %v1494, %v1995
          %vm2034 = vcmp.eq.s32.totalorder %v1494, %v1998
          %vm2035 = vcmp.eq.s32.totalorder %v1494, %v2001
          %vm2036 = vcmp.eq.s32.totalorder %v1494, %v2004
          %vm2037 = vcmp.eq.s32.totalorder %v1494, %v2007
          %vm2038 = vcmp.eq.s32.totalorder %v1494, %v2010
          %vm2039 = vcmp.eq.s32.totalorder %v1494, %v2013
          %vm2040 = vcmp.eq.s32.totalorder %v1494, %v2016
          %vm2041 = vcmp.eq.s32.totalorder %v1494, %v2019
          %vm2042 = vcmp.eq.s32.totalorder %v1494, %v2022
          %vm2043 = vcmp.eq.s32.totalorder %v1494, %v2025
          %vm2044 = vcmp.eq.s32.totalorder %v1494, %v2028
          %v2045 = vsel %vm2029, 1, 0
          %v2046 = vsel %vm2030, 1, 0
          %v2047 = vsel %vm2031, 1, 0
          %v2048 = vsel %vm2032, 1, 0
          %v2049 = vsel %vm2033, 1, 0
          %v2050 = vsel %vm2034, 1, 0
          %v2051 = vsel %vm2035, 1, 0
          %v2052 = vsel %vm2036, 1, 0
          %v2053 = vsel %vm2037, 1, 0
          %v2054 = vsel %vm2038, 1, 0
          %v2055 = vsel %vm2039, 1, 0
          %v2056 = vsel %vm2040, 1, 0
          %v2057 = vsel %vm2041, 1, 0
          %v2058 = vsel %vm2042, 1, 0
          %v2059 = vsel %vm2043, 1, 0
          %v2060 = vsel %vm2044, 1, 0
          %v2061 = vcvt.s32.f32 %v2045
          %v2062 = vcvt.s32.f32 %v2046
          %v2063 = vcvt.s32.f32 %v2047
          %v2064 = vcvt.s32.f32 %v2048
          %v2065 = vcvt.s32.f32 %v2049
          %v2066 = vcvt.s32.f32 %v2050
          %v2067 = vcvt.s32.f32 %v2051
          %v2068 = vcvt.s32.f32 %v2052
          %v2069 = vcvt.s32.f32 %v2053
          %v2070 = vcvt.s32.f32 %v2054
          %v2071 = vcvt.s32.f32 %v2055
          %v2072 = vcvt.s32.f32 %v2056
          %v2073 = vcvt.s32.f32 %v2057
          %v2074 = vcvt.s32.f32 %v2058
          %v2075 = vcvt.s32.f32 %v2059
          %v2076 = vcvt.s32.f32 %v2060
          %2077 = vmatprep.subr.mxu0 0.0
          %2078 = vmatpush1.msra.mxu0 %v2076
          %2079 = vmatprep.subr.mxu0 0.0
          %2080 = vmatpush1.msra.mxu0 %v2075
          %2081 = vmatprep.subr.mxu0 0.0
          %2082 = vmatpush1.msra.mxu0 %v2074
          %2083 = vmatprep.subr.mxu0 0.0
          %2084 = vmatpush1.msra.mxu0 %v2073
          %2085 = vmatprep.subr.mxu0 0.0
          %2086 = vmatpush1.msra.mxu0 %v2072
          %2087 = vmatprep.subr.mxu0 0.0
          %2088 = vmatpush1.msra.mxu0 %v2071
          %2089 = vmatprep.subr.mxu0 0.0
          %2090 = vmatpush1.msra.mxu0 %v2070
          %2091 = vmatprep.subr.mxu0 0.0
          %2092 = vmatpush1.msra.mxu0 %v2069
          %2093 = vmatprep.subr.mxu0 0.0
          %2094 = vmatpush1.msra.mxu0 %v2068
          %2095 = vmatprep.subr.mxu0 0.0
          %2096 = vmatpush1.msra.mxu0 %v2067
          %2097 = vmatprep.subr.mxu0 0.0
          %2098 = vmatpush1.msra.mxu0 %v2066
          %2099 = vmatprep.subr.mxu0 0.0
          %2100 = vmatpush1.msra.mxu0 %v2065
          %2101 = vmatprep.subr.mxu0 0.0
          %2102 = vmatpush1.msra.mxu0 %v2064
          %2103 = vmatprep.subr.mxu0 0.0
          %2104 = vmatpush1.msra.mxu0 %v2063
          %2105 = vmatprep.subr.mxu0 0.0
          %2106 = vmatpush1.msra.mxu0 %v2062
          %2107 = vmatprep.subr.mxu0 0.0
          %2108 = vmatpush1.msra.mxu0 %v2061
          %2109 = vmatprep.subr.mxu0 0.0
          %2110 = vmatpush2.msra.mxu0 0.0
          %2111 = vmatprep.subr.mxu0 0.0
          %2112 = vmatpush2.msra.mxu0 0.0
          %2113 = vmatprep.subr.mxu0 0.0
          %2114 = vmatpush2.msra.mxu0 0.0
          %2115 = vmatprep.subr.mxu0 0.0
          %2116 = vmatpush2.msra.mxu0 0.0
          %2117 = vmatprep.subr.mxu0 0.0
          %2118 = vmatpush2.msra.mxu0 0.0
          %2119 = vmatprep.subr.mxu0 0.0
          %2120 = vmatpush2.msra.mxu0 0.0
          %2121 = vmatprep.subr.mxu0 0.0
          %2122 = vmatpush2.msra.mxu0 0.0
          %2123 = vmatprep.subr.mxu0 0.0
          %2124 = vmatpush2.msra.mxu0 0.0
          %2125 = vmatprep.subr.mxu0 0.0
          %2126 = vmatpush2.msra.mxu0 0.0
          %2127 = vmatprep.subr.mxu0 0.0
          %2128 = vmatpush2.msra.mxu0 0.0
          %2129 = vmatprep.subr.mxu0 0.0
          %2130 = vmatpush2.msra.mxu0 0.0
          %2131 = vmatprep.subr.mxu0 0.0
          %2132 = vmatpush2.msra.mxu0 0.0
          %2133 = vmatprep.subr.mxu0 0.0
          %2134 = vmatpush2.msra.mxu0 0.0
          %2135 = vmatprep.subr.mxu0 0.0
          %2136 = vmatpush2.msra.mxu0 0.0
          %2137 = vmatprep.subr.mxu0 0.0
          %2138 = vmatpush2.msra.mxu0 0.0
          %2139 = vmatprep.subr.mxu0 0.0
          %2140 = vmatpush2.msra.mxu0 0.0
          %2141 = vmatprep.mubr.f32.mxu0 0.0
          %2142 = vmatmul.mubr.f32.gmra.mxu0 %v1961
          %v2143 = vpop.f32.mrf.mxu0
          %v2144 = vadd.f32 0.0, %v2143
          %v2145 = vpop.f32.mrf.mxu0
          %2146 = vmatprep.mubr.f32.mxu0 0.0
          %2147 = vmatmul.mubr.f32.gmra.mxu0 %v1962
          %v2148 = vpop.f32.mrf.mxu0
          %v2149 = vadd.f32 0.0, %v2148
          %v2150 = vpop.f32.mrf.mxu0
          %2151 = vmatprep.mubr.f32.mxu0 0.0
          %2152 = vmatmul.mubr.f32.gmra.mxu0 %v1963
          %v2153 = vpop.f32.mrf.mxu0
          %v2154 = vadd.f32 0.0, %v2153
          %v2155 = vpop.f32.mrf.mxu0
          %2156 = vmatprep.mubr.f32.mxu0 0.0
          %2157 = vmatmul.mubr.f32.gmra.mxu0 %v1964
          %v2158 = vpop.f32.mrf.mxu0
          %v2159 = vadd.f32 0.0, %v2158
          %v2160 = vpop.f32.mrf.mxu0
          %2161 = vdwg.mxu0
          %v2162 = vld [vmem:[%s17] sm:$0xff]
          %v2163 = vld [vmem:[%s17 + $0x8] sm:$0xff]
          %v2164 = vld [vmem:[%s17 + $0x10] sm:$0xff]
          %v2165 = vld [vmem:[%s17 + $0x18] sm:$0xff]
          %v2166 = vld [vmem:[%s18] sm:$0xff]
          %v2167 = vld [vmem:[%s18 + $0x8] sm:$0xff]
          %v2168 = vld [vmem:[%s18 + $0x10] sm:$0xff]
          %v2169 = vld [vmem:[%s18 + $0x18] sm:$0xff]
          %2171 = vset.pattern.permute.xlu0 0
          %2172 = vperm.xlu0 %2171, %v2166
          %v2173 = vpop.permute.xlu0 %2172
          %2176 = vset.pattern.permute.xlu0 0
          %2177 = vperm.xlu0 %2176, %v2167
          %v2178 = vpop.permute.xlu0 %2177
          %2181 = vset.pattern.permute.xlu0 0
          %2182 = vperm.xlu0 %2181, %v2168
          %v2183 = vpop.permute.xlu0 %2182
          %2186 = vset.pattern.permute.xlu0 0
          %2187 = vperm.xlu0 %2186, %v2169
          %v2188 = vpop.permute.xlu0 %2187
          %v2191 = vsel %vm1265, %v2162, 0
          %v2194 = vsel %vm1265, %v2163, 0
          %v2197 = vsel %vm1265, %v2164, 0
          %v2200 = vsel %vm1265, %v2165, 0
          %2202 = vmatprep.subr.mxu0 0.0
          %2203 = vmatpush1.msra.mxu0 0.0
          %2204 = vmatprep.subr.mxu0 0.0
          %2205 = vmatpush1.msra.mxu0 0.0
          %2206 = vmatprep.subr.mxu0 0.0
          %2207 = vmatpush1.msra.mxu0 0.0
          %2208 = vmatprep.subr.mxu0 0.0
          %2209 = vmatpush1.msra.mxu0 0.0
          %2210 = vmatprep.subr.mxu0 0.0
          %2211 = vmatpush1.msra.mxu0 0.0
          %2212 = vmatprep.subr.mxu0 0.0
          %2213 = vmatpush1.msra.mxu0 0.0
          %2214 = vmatprep.subr.mxu0 0.0
          %2215 = vmatpush1.msra.mxu0 0.0
          %2216 = vmatprep.subr.mxu0 0.0
          %2217 = vmatpush1.msra.mxu0 0.0
          %2218 = vmatprep.subr.mxu0 0.0
          %2219 = vmatpush1.msra.mxu0 0.0
          %2220 = vmatprep.subr.mxu0 0.0
          %2221 = vmatpush1.msra.mxu0 0.0
          %2222 = vmatprep.subr.mxu0 0.0
          %2223 = vmatpush1.msra.mxu0 0.0
          %2224 = vmatprep.subr.mxu0 0.0
          %2225 = vmatpush1.msra.mxu0 0.0
          %2226 = vmatprep.subr.mxu0 0.0
          %2227 = vmatpush1.msra.mxu0 %v2159
          %2228 = vmatprep.subr.mxu0 0.0
          %2229 = vmatpush1.msra.mxu0 %v2154
          %2230 = vmatprep.subr.mxu0 0.0
          %2231 = vmatpush1.msra.mxu0 %v2149
          %2232 = vmatprep.subr.mxu0 0.0
          %2233 = vmatpush1.msra.mxu0 %v2144
          %2234 = vmatprep.subr.mxu0 0.0
          %2235 = vmatpush2.msra.mxu0 0.0
          %2236 = vmatprep.subr.mxu0 0.0
          %2237 = vmatpush2.msra.mxu0 0.0
          %2238 = vmatprep.subr.mxu0 0.0
          %2239 = vmatpush2.msra.mxu0 0.0
          %2240 = vmatprep.subr.mxu0 0.0
          %2241 = vmatpush2.msra.mxu0 0.0
          %2242 = vmatprep.subr.mxu0 0.0
          %2243 = vmatpush2.msra.mxu0 0.0
          %2244 = vmatprep.subr.mxu0 0.0
          %2245 = vmatpush2.msra.mxu0 0.0
          %2246 = vmatprep.subr.mxu0 0.0
          %2247 = vmatpush2.msra.mxu0 0.0
          %2248 = vmatprep.subr.mxu0 0.0
          %2249 = vmatpush2.msra.mxu0 0.0
          %2250 = vmatprep.subr.mxu0 0.0
          %2251 = vmatpush2.msra.mxu0 0.0
          %2252 = vmatprep.subr.mxu0 0.0
          %2253 = vmatpush2.msra.mxu0 0.0
          %2254 = vmatprep.subr.mxu0 0.0
          %2255 = vmatpush2.msra.mxu0 0.0
          %2256 = vmatprep.subr.mxu0 0.0
          %2257 = vmatpush2.msra.mxu0 0.0
          %2258 = vmatprep.subr.mxu0 0.0
          %2259 = vmatpush2.msra.mxu0 0.0
          %2260 = vmatprep.subr.mxu0 0.0
          %2261 = vmatpush2.msra.mxu0 0.0
          %2262 = vmatprep.subr.mxu0 0.0
          %2263 = vmatpush2.msra.mxu0 0.0
          %2264 = vmatprep.subr.mxu0 0.0
          %2265 = vmatpush2.msra.mxu0 0.0
          %2266 = vmatprep.mubr.f32.mxu0 0.0
          %2267 = vmatmul.mubr.f32.gmra.mxu0 %v2191
          %v2268 = vpop.f32.mrf.mxu0
          %v2269 = vadd.f32 %v2173, %v2268
          %v2270 = vpop.f32.mrf.mxu0
          %2271 = vmatprep.mubr.f32.mxu0 0.0
          %2272 = vmatmul.mubr.f32.gmra.mxu0 %v2194
          %v2273 = vpop.f32.mrf.mxu0
          %v2274 = vadd.f32 %v2178, %v2273
          %v2275 = vpop.f32.mrf.mxu0
          %2276 = vmatprep.mubr.f32.mxu0 0.0
          %2277 = vmatmul.mubr.f32.gmra.mxu0 %v2197
          %v2278 = vpop.f32.mrf.mxu0
          %v2279 = vadd.f32 %v2183, %v2278
          %v2280 = vpop.f32.mrf.mxu0
          %2281 = vmatprep.mubr.f32.mxu0 0.0
          %2282 = vmatmul.mubr.f32.gmra.mxu0 %v2200
          %v2283 = vpop.f32.mrf.mxu0
          %v2284 = vadd.f32 %v2188, %v2283
          %v2285 = vpop.f32.mrf.mxu0
          %2286 = vdwg.mxu0
          %v2287 = vmax.f32 %v2269, 0.0
          %v2288 = vmax.f32 %v2274, 0.0
          %v2289 = vmax.f32 %v2279, 0.0
          %v2290 = vmax.f32 %v2284, 0.0
          %v2291 = vld [vmem:[%s19] sm:$0xff]
          %v2292 = vld [vmem:[%s19 + $0x8] sm:$0xff]
          %v2293 = vld [vmem:[%s19 + $0x10] sm:$0xff]
          %v2294 = vld [vmem:[%s19 + $0x18] sm:$0xff]
          %v2295 = vld [vmem:[%s20] sm:$0xff]
          %v2296 = vld [vmem:[%s20 + $0x8] sm:$0xff]
          %v2297 = vld [vmem:[%s20 + $0x10] sm:$0xff]
          %v2298 = vld [vmem:[%s20 + $0x18] sm:$0xff]
          %2300 = vset.pattern.permute.xlu0 0
          %2301 = vperm.xlu0 %2300, %v2295
          %v2302 = vpop.permute.xlu0 %2301
          %2305 = vset.pattern.permute.xlu0 0
          %2306 = vperm.xlu0 %2305, %v2296
          %v2307 = vpop.permute.xlu0 %2306
          %2310 = vset.pattern.permute.xlu0 0
          %2311 = vperm.xlu0 %2310, %v2297
          %v2312 = vpop.permute.xlu0 %2311
          %2315 = vset.pattern.permute.xlu0 0
          %2316 = vperm.xlu0 %2315, %v2298
          %v2317 = vpop.permute.xlu0 %2316
          %v2320 = vsel %vm1265, %v2291, 0
          %v2323 = vsel %vm1265, %v2292, 0
          %v2326 = vsel %vm1265, %v2293, 0
          %v2329 = vsel %vm1265, %v2294, 0
          %2331 = vmatprep.subr.mxu0 0.0
          %2332 = vmatpush1.msra.mxu0 0.0
          %2333 = vmatprep.subr.mxu0 0.0
          %2334 = vmatpush1.msra.mxu0 0.0
          %2335 = vmatprep.subr.mxu0 0.0
          %2336 = vmatpush1.msra.mxu0 0.0
          %2337 = vmatprep.subr.mxu0 0.0
          %2338 = vmatpush1.msra.mxu0 0.0
          %2339 = vmatprep.subr.mxu0 0.0
          %2340 = vmatpush1.msra.mxu0 0.0
          %2341 = vmatprep.subr.mxu0 0.0
          %2342 = vmatpush1.msra.mxu0 0.0
          %2343 = vmatprep.subr.mxu0 0.0
          %2344 = vmatpush1.msra.mxu0 0.0
          %2345 = vmatprep.subr.mxu0 0.0
          %2346 = vmatpush1.msra.mxu0 0.0
          %2347 = vmatprep.subr.mxu0 0.0
          %2348 = vmatpush1.msra.mxu0 0.0
          %2349 = vmatprep.subr.mxu0 0.0
          %2350 = vmatpush1.msra.mxu0 0.0
          %2351 = vmatprep.subr.mxu0 0.0
          %2352 = vmatpush1.msra.mxu0 0.0
          %2353 = vmatprep.subr.mxu0 0.0
          %2354 = vmatpush1.msra.mxu0 0.0
          %2355 = vmatprep.subr.mxu0 0.0
          %2356 = vmatpush1.msra.mxu0 %v2290
          %2357 = vmatprep.subr.mxu0 0.0
          %2358 = vmatpush1.msra.mxu0 %v2289
          %2359 = vmatprep.subr.mxu0 0.0
          %2360 = vmatpush1.msra.mxu0 %v2288
          %2361 = vmatprep.subr.mxu0 0.0
          %2362 = vmatpush1.msra.mxu0 %v2287
          %2363 = vmatprep.subr.mxu0 0.0
          %2364 = vmatpush2.msra.mxu0 0.0
          %2365 = vmatprep.subr.mxu0 0.0
          %2366 = vmatpush2.msra.mxu0 0.0
          %2367 = vmatprep.subr.mxu0 0.0
          %2368 = vmatpush2.msra.mxu0 0.0
          %2369 = vmatprep.subr.mxu0 0.0
          %2370 = vmatpush2.msra.mxu0 0.0
          %2371 = vmatprep.subr.mxu0 0.0
          %2372 = vmatpush2.msra.mxu0 0.0
          %2373 = vmatprep.subr.mxu0 0.0
          %2374 = vmatpush2.msra.mxu0 0.0
          %2375 = vmatprep.subr.mxu0 0.0
          %2376 = vmatpush2.msra.mxu0 0.0
          %2377 = vmatprep.subr.mxu0 0.0
          %2378 = vmatpush2.msra.mxu0 0.0
          %2379 = vmatprep.subr.mxu0 0.0
          %2380 = vmatpush2.msra.mxu0 0.0
          %2381 = vmatprep.subr.mxu0 0.0
          %2382 = vmatpush2.msra.mxu0 0.0
          %2383 = vmatprep.subr.mxu0 0.0
          %2384 = vmatpush2.msra.mxu0 0.0
          %2385 = vmatprep.subr.mxu0 0.0
          %2386 = vmatpush2.msra.mxu0 0.0
          %2387 = vmatprep.subr.mxu0 0.0
          %2388 = vmatpush2.msra.mxu0 0.0
          %2389 = vmatprep.subr.mxu0 0.0
          %2390 = vmatpush2.msra.mxu0 0.0
          %2391 = vmatprep.subr.mxu0 0.0
          %2392 = vmatpush2.msra.mxu0 0.0
          %2393 = vmatprep.subr.mxu0 0.0
          %2394 = vmatpush2.msra.mxu0 0.0
          %2395 = vmatprep.mubr.f32.mxu0 0.0
          %2396 = vmatmul.mubr.f32.gmra.mxu0 %v2320
          %v2397 = vpop.f32.mrf.mxu0
          %v2398 = vadd.f32 %v2302, %v2397
          %v2399 = vpop.f32.mrf.mxu0
          %2400 = vmatprep.mubr.f32.mxu0 0.0
          %2401 = vmatmul.mubr.f32.gmra.mxu0 %v2323
          %v2402 = vpop.f32.mrf.mxu0
          %v2403 = vadd.f32 %v2307, %v2402
          %v2404 = vpop.f32.mrf.mxu0
          %2405 = vmatprep.mubr.f32.mxu0 0.0
          %2406 = vmatmul.mubr.f32.gmra.mxu0 %v2326
          %v2407 = vpop.f32.mrf.mxu0
          %v2408 = vadd.f32 %v2312, %v2407
          %v2409 = vpop.f32.mrf.mxu0
          %2410 = vmatprep.mubr.f32.mxu0 0.0
          %2411 = vmatmul.mubr.f32.gmra.mxu0 %v2329
          %v2412 = vpop.f32.mrf.mxu0
          %v2413 = vadd.f32 %v2317, %v2412
          %v2414 = vpop.f32.mrf.mxu0
          %2415 = vdwg.mxu0
          %v2416 = vmax.f32 %v2398, 0.0
          %v2417 = vmax.f32 %v2403, 0.0
          %v2418 = vmax.f32 %v2408, 0.0
          %v2419 = vmax.f32 %v2413, 0.0
          %v2420 = vld [vmem:[%s21] sm:$0xff]
          %v2421 = vld [vmem:[%s21 + $0x8] sm:$0xff]
          %v2422 = vld [vmem:[%s21 + $0x10] sm:$0xff]
          %v2423 = vld [vmem:[%s21 + $0x18] sm:$0xff]
          %v2424 = vld [vmem:[%s5] sm:$0xff]
          %v2425 = vld [vmem:[%s5 + $0x8] sm:$0xf]
          %v2426 = vld [vmem:[%s22] sm:$0xff]
          %v2427 = vld [vmem:[%s22 + $0x8] sm:$0xff]
          %v2428 = vld [vmem:[%s22 + $0x10] sm:$0xff]
          %v2429 = vld [vmem:[%s22 + $0x18] sm:$0xff]
          %2431 = vset.pattern.permute.xlu0 0
          %2432 = vperm.xlu0 %2431, %v2426
          %v2433 = vpop.permute.xlu0 %2432
          %2436 = vset.pattern.permute.xlu0 0
          %2437 = vperm.xlu0 %2436, %v2427
          %v2438 = vpop.permute.xlu0 %2437
          %2441 = vset.pattern.permute.xlu0 0
          %2442 = vperm.xlu0 %2441, %v2428
          %v2443 = vpop.permute.xlu0 %2442
          %2446 = vset.pattern.permute.xlu0 0
          %2447 = vperm.xlu0 %2446, %v2429
          %v2448 = vpop.permute.xlu0 %2447
          %vm2450 = vcmask 97280
          %v2452 = vsel %vm2450, %v2420, 0
          %v2455 = vsel %vm2450, %v2421, 0
          %v2458 = vsel %vm2450, %v2422, 0
          %v2461 = vsel %vm2450, %v2423, 0
          %vm2463 = vcmask 1043456
          %v2465 = vsel %vm2463, %v2425, 0
          %2467 = vmatprep.subr.mxu0 0.0
          %2468 = vmatpush1.msra.mxu0 0.0
          %2469 = vmatprep.subr.mxu0 0.0
          %2470 = vmatpush1.msra.mxu0 0.0
          %2471 = vmatprep.subr.mxu0 0.0
          %2472 = vmatpush1.msra.mxu0 0.0
          %2473 = vmatprep.subr.mxu0 0.0
          %2474 = vmatpush1.msra.mxu0 0.0
          %2475 = vmatprep.subr.mxu0 0.0
          %2476 = vmatpush1.msra.mxu0 0.0
          %2477 = vmatprep.subr.mxu0 0.0
          %2478 = vmatpush1.msra.mxu0 0.0
          %2479 = vmatprep.subr.mxu0 0.0
          %2480 = vmatpush1.msra.mxu0 0.0
          %2481 = vmatprep.subr.mxu0 0.0
          %2482 = vmatpush1.msra.mxu0 0.0
          %2483 = vmatprep.subr.mxu0 0.0
          %2484 = vmatpush1.msra.mxu0 0.0
          %2485 = vmatprep.subr.mxu0 0.0
          %2486 = vmatpush1.msra.mxu0 0.0
          %2487 = vmatprep.subr.mxu0 0.0
          %2488 = vmatpush1.msra.mxu0 0.0
          %2489 = vmatprep.subr.mxu0 0.0
          %2490 = vmatpush1.msra.mxu0 0.0
          %2491 = vmatprep.subr.mxu0 0.0
          %2492 = vmatpush1.msra.mxu0 0.0
          %2493 = vmatprep.subr.mxu0 0.0
          %2494 = vmatpush1.msra.mxu0 0.0
          %2495 = vmatprep.subr.mxu0 0.0
          %2496 = vmatpush1.msra.mxu0 %v2465
          %2497 = vmatprep.subr.mxu0 0.0
          %2498 = vmatpush1.msra.mxu0 %v2424
          %2499 = vmatprep.subr.mxu0 0.0
          %2500 = vmatpush2.msra.mxu0 0.0
          %2501 = vmatprep.subr.mxu0 0.0
          %2502 = vmatpush2.msra.mxu0 0.0
          %2503 = vmatprep.subr.mxu0 0.0
          %2504 = vmatpush2.msra.mxu0 0.0
          %2505 = vmatprep.subr.mxu0 0.0
          %2506 = vmatpush2.msra.mxu0 0.0
          %2507 = vmatprep.subr.mxu0 0.0
          %2508 = vmatpush2.msra.mxu0 0.0
          %2509 = vmatprep.subr.mxu0 0.0
          %2510 = vmatpush2.msra.mxu0 0.0
          %2511 = vmatprep.subr.mxu0 0.0
          %2512 = vmatpush2.msra.mxu0 0.0
          %2513 = vmatprep.subr.mxu0 0.0
          %2514 = vmatpush2.msra.mxu0 0.0
          %2515 = vmatprep.subr.mxu0 0.0
          %2516 = vmatpush2.msra.mxu0 0.0
          %2517 = vmatprep.subr.mxu0 0.0
          %2518 = vmatpush2.msra.mxu0 0.0
          %2519 = vmatprep.subr.mxu0 0.0
          %2520 = vmatpush2.msra.mxu0 0.0
          %2521 = vmatprep.subr.mxu0 0.0
          %2522 = vmatpush2.msra.mxu0 0.0
          %2523 = vmatprep.subr.mxu0 0.0
          %2524 = vmatpush2.msra.mxu0 0.0
          %2525 = vmatprep.subr.mxu0 0.0
          %2526 = vmatpush2.msra.mxu0 0.0
          %2527 = vmatprep.subr.mxu0 0.0
          %2528 = vmatpush2.msra.mxu0 0.0
          %2529 = vmatprep.subr.mxu0 0.0
          %2530 = vmatpush2.msra.mxu0 0.0
          %2531 = vmatprep.mubr.f32.mxu0 0.0
          %2532 = vmatmul.mubr.f32.gmra.mxu0 %v2452
          %v2533 = vpop.f32.mrf.mxu0
          %v2534 = vadd.f32 %v2433, %v2533
          %v2535 = vpop.f32.mrf.mxu0
          %2536 = vmatprep.mubr.f32.mxu0 0.0
          %2537 = vmatmul.mubr.f32.gmra.mxu0 %v2455
          %v2538 = vpop.f32.mrf.mxu0
          %v2539 = vadd.f32 %v2438, %v2538
          %v2540 = vpop.f32.mrf.mxu0
          %2541 = vmatprep.mubr.f32.mxu0 0.0
          %2542 = vmatmul.mubr.f32.gmra.mxu0 %v2458
          %v2543 = vpop.f32.mrf.mxu0
          %v2544 = vadd.f32 %v2443, %v2543
          %v2545 = vpop.f32.mrf.mxu0
          %2546 = vmatprep.mubr.f32.mxu0 0.0
          %2547 = vmatmul.mubr.f32.gmra.mxu0 %v2461
          %v2548 = vpop.f32.mrf.mxu0
          %v2549 = vadd.f32 %v2448, %v2548
          %v2550 = vpop.f32.mrf.mxu0
          %2551 = vdwg.mxu0
          %v2552 = vmax.f32 %v2534, 0.0
          %v2553 = vmax.f32 %v2539, 0.0
          %v2554 = vmax.f32 %v2544, 0.0
          %v2555 = vmax.f32 %v2549, 0.0
          %v2556 = vld [vmem:[%s6] sm:$0xff]
          %v2557 = vld [vmem:[%s6 + $0x8] sm:$0xff]
          %v2558 = vld [vmem:[%s6 + $0x10] sm:$0xff]
          %v2559 = vld [vmem:[%s6 + $0x18] sm:$0xff]
          %v2560 = vld [vmem:[%s6 + $0x20] sm:$0xff]
          %v2561 = vld [vmem:[%s6 + $0x28] sm:$0xff]
          %v2562 = vld [vmem:[%s6 + $0x30] sm:$0xff]
          %v2563 = vld [vmem:[%s6 + $0x38] sm:$0xff]
          %v2564 = vld [vmem:[%s6 + $0x40] sm:$0xff]
          %v2565 = vld [vmem:[%s6 + $0x48] sm:$0xff]
          %v2566 = vld [vmem:[%s6 + $0x50] sm:$0xff]
          %v2567 = vld [vmem:[%s6 + $0x58] sm:$0xff]
          %v2568 = vld [vmem:[%s6 + $0x60] sm:$0xff]
          %v2569 = vld [vmem:[%s6 + $0x68] sm:$0xff]
          %v2570 = vld [vmem:[%s6 + $0x70] sm:$0xff]
          %v2571 = vld [vmem:[%s6 + $0x78] sm:$0xff]
          %2572 = vset.pattern.permute.xlu0 0
          %2573 = vperm.xlu0 %2572, %v2556
          %v2574 = vpop.permute.xlu0 %2573
          %2575 = vset.pattern.permute.xlu0 0
          %2576 = vperm.xlu0 %2575, %v2557
          %v2577 = vpop.permute.xlu0 %2576
          %2578 = vset.pattern.permute.xlu0 0
          %2579 = vperm.xlu0 %2578, %v2558
          %v2580 = vpop.permute.xlu0 %2579
          %2581 = vset.pattern.permute.xlu0 0
          %2582 = vperm.xlu0 %2581, %v2559
          %v2583 = vpop.permute.xlu0 %2582
          %2584 = vset.pattern.permute.xlu0 0
          %2585 = vperm.xlu0 %2584, %v2560
          %v2586 = vpop.permute.xlu0 %2585
          %2587 = vset.pattern.permute.xlu0 0
          %2588 = vperm.xlu0 %2587, %v2561
          %v2589 = vpop.permute.xlu0 %2588
          %2590 = vset.pattern.permute.xlu0 0
          %2591 = vperm.xlu0 %2590, %v2562
          %v2592 = vpop.permute.xlu0 %2591
          %2593 = vset.pattern.permute.xlu0 0
          %2594 = vperm.xlu0 %2593, %v2563
          %v2595 = vpop.permute.xlu0 %2594
          %2596 = vset.pattern.permute.xlu0 0
          %2597 = vperm.xlu0 %2596, %v2564
          %v2598 = vpop.permute.xlu0 %2597
          %2599 = vset.pattern.permute.xlu0 0
          %2600 = vperm.xlu0 %2599, %v2565
          %v2601 = vpop.permute.xlu0 %2600
          %2602 = vset.pattern.permute.xlu0 0
          %2603 = vperm.xlu0 %2602, %v2566
          %v2604 = vpop.permute.xlu0 %2603
          %2605 = vset.pattern.permute.xlu0 0
          %2606 = vperm.xlu0 %2605, %v2567
          %v2607 = vpop.permute.xlu0 %2606
          %2608 = vset.pattern.permute.xlu0 0
          %2609 = vperm.xlu0 %2608, %v2568
          %v2610 = vpop.permute.xlu0 %2609
          %2611 = vset.pattern.permute.xlu0 0
          %2612 = vperm.xlu0 %2611, %v2569
          %v2613 = vpop.permute.xlu0 %2612
          %2614 = vset.pattern.permute.xlu0 0
          %2615 = vperm.xlu0 %2614, %v2570
          %v2616 = vpop.permute.xlu0 %2615
          %2617 = vset.pattern.permute.xlu0 0
          %2618 = vperm.xlu0 %2617, %v2571
          %v2619 = vpop.permute.xlu0 %2618
          %vm2620 = vcmp.eq.s32.totalorder %v1494, %v2574
          %vm2621 = vcmp.eq.s32.totalorder %v1494, %v2577
          %vm2622 = vcmp.eq.s32.totalorder %v1494, %v2580
          %vm2623 = vcmp.eq.s32.totalorder %v1494, %v2583
          %vm2624 = vcmp.eq.s32.totalorder %v1494, %v2586
          %vm2625 = vcmp.eq.s32.totalorder %v1494, %v2589
          %vm2626 = vcmp.eq.s32.totalorder %v1494, %v2592
          %vm2627 = vcmp.eq.s32.totalorder %v1494, %v2595
          %vm2628 = vcmp.eq.s32.totalorder %v1494, %v2598
          %vm2629 = vcmp.eq.s32.totalorder %v1494, %v2601
          %vm2630 = vcmp.eq.s32.totalorder %v1494, %v2604
          %vm2631 = vcmp.eq.s32.totalorder %v1494, %v2607
          %vm2632 = vcmp.eq.s32.totalorder %v1494, %v2610
          %vm2633 = vcmp.eq.s32.totalorder %v1494, %v2613
          %vm2634 = vcmp.eq.s32.totalorder %v1494, %v2616
          %vm2635 = vcmp.eq.s32.totalorder %v1494, %v2619
          %v2636 = vsel %vm2620, 1, 0
          %v2637 = vsel %vm2621, 1, 0
          %v2638 = vsel %vm2622, 1, 0
          %v2639 = vsel %vm2623, 1, 0
          %v2640 = vsel %vm2624, 1, 0
          %v2641 = vsel %vm2625, 1, 0
          %v2642 = vsel %vm2626, 1, 0
          %v2643 = vsel %vm2627, 1, 0
          %v2644 = vsel %vm2628, 1, 0
          %v2645 = vsel %vm2629, 1, 0
          %v2646 = vsel %vm2630, 1, 0
          %v2647 = vsel %vm2631, 1, 0
          %v2648 = vsel %vm2632, 1, 0
          %v2649 = vsel %vm2633, 1, 0
          %v2650 = vsel %vm2634, 1, 0
          %v2651 = vsel %vm2635, 1, 0
          %v2652 = vcvt.s32.f32 %v2636
          %v2653 = vcvt.s32.f32 %v2637
          %v2654 = vcvt.s32.f32 %v2638
          %v2655 = vcvt.s32.f32 %v2639
          %v2656 = vcvt.s32.f32 %v2640
          %v2657 = vcvt.s32.f32 %v2641
          %v2658 = vcvt.s32.f32 %v2642
          %v2659 = vcvt.s32.f32 %v2643
          %v2660 = vcvt.s32.f32 %v2644
          %v2661 = vcvt.s32.f32 %v2645
          %v2662 = vcvt.s32.f32 %v2646
          %v2663 = vcvt.s32.f32 %v2647
          %v2664 = vcvt.s32.f32 %v2648
          %v2665 = vcvt.s32.f32 %v2649
          %v2666 = vcvt.s32.f32 %v2650
          %v2667 = vcvt.s32.f32 %v2651
          %2668 = vmatprep.subr.mxu0 0.0
          %2669 = vmatpush1.msra.mxu0 %v2667
          %2670 = vmatprep.subr.mxu0 0.0
          %2671 = vmatpush1.msra.mxu0 %v2666
          %2672 = vmatprep.subr.mxu0 0.0
          %2673 = vmatpush1.msra.mxu0 %v2665
          %2674 = vmatprep.subr.mxu0 0.0
          %2675 = vmatpush1.msra.mxu0 %v2664
          %2676 = vmatprep.subr.mxu0 0.0
          %2677 = vmatpush1.msra.mxu0 %v2663
          %2678 = vmatprep.subr.mxu0 0.0
          %2679 = vmatpush1.msra.mxu0 %v2662
          %2680 = vmatprep.subr.mxu0 0.0
          %2681 = vmatpush1.msra.mxu0 %v2661
          %2682 = vmatprep.subr.mxu0 0.0
          %2683 = vmatpush1.msra.mxu0 %v2660
          %2684 = vmatprep.subr.mxu0 0.0
          %2685 = vmatpush1.msra.mxu0 %v2659
          %2686 = vmatprep.subr.mxu0 0.0
          %2687 = vmatpush1.msra.mxu0 %v2658
          %2688 = vmatprep.subr.mxu0 0.0
          %2689 = vmatpush1.msra.mxu0 %v2657
          %2690 = vmatprep.subr.mxu0 0.0
          %2691 = vmatpush1.msra.mxu0 %v2656
          %2692 = vmatprep.subr.mxu0 0.0
          %2693 = vmatpush1.msra.mxu0 %v2655
          %2694 = vmatprep.subr.mxu0 0.0
          %2695 = vmatpush1.msra.mxu0 %v2654
          %2696 = vmatprep.subr.mxu0 0.0
          %2697 = vmatpush1.msra.mxu0 %v2653
          %2698 = vmatprep.subr.mxu0 0.0
          %2699 = vmatpush1.msra.mxu0 %v2652
          %2700 = vmatprep.subr.mxu0 0.0
          %2701 = vmatpush2.msra.mxu0 0.0
          %2702 = vmatprep.subr.mxu0 0.0
          %2703 = vmatpush2.msra.mxu0 0.0
          %2704 = vmatprep.subr.mxu0 0.0
          %2705 = vmatpush2.msra.mxu0 0.0
          %2706 = vmatprep.subr.mxu0 0.0
          %2707 = vmatpush2.msra.mxu0 0.0
          %2708 = vmatprep.subr.mxu0 0.0
          %2709 = vmatpush2.msra.mxu0 0.0
          %2710 = vmatprep.subr.mxu0 0.0
          %2711 = vmatpush2.msra.mxu0 0.0
          %2712 = vmatprep.subr.mxu0 0.0
          %2713 = vmatpush2.msra.mxu0 0.0
          %2714 = vmatprep.subr.mxu0 0.0
          %2715 = vmatpush2.msra.mxu0 0.0
          %2716 = vmatprep.subr.mxu0 0.0
          %2717 = vmatpush2.msra.mxu0 0.0
          %2718 = vmatprep.subr.mxu0 0.0
          %2719 = vmatpush2.msra.mxu0 0.0
          %2720 = vmatprep.subr.mxu0 0.0
          %2721 = vmatpush2.msra.mxu0 0.0
          %2722 = vmatprep.subr.mxu0 0.0
          %2723 = vmatpush2.msra.mxu0 0.0
          %2724 = vmatprep.subr.mxu0 0.0
          %2725 = vmatpush2.msra.mxu0 0.0
          %2726 = vmatprep.subr.mxu0 0.0
          %2727 = vmatpush2.msra.mxu0 0.0
          %2728 = vmatprep.subr.mxu0 0.0
          %2729 = vmatpush2.msra.mxu0 0.0
          %2730 = vmatprep.subr.mxu0 0.0
          %2731 = vmatpush2.msra.mxu0 0.0
          %2732 = vmatprep.mubr.f32.mxu0 0.0
          %2733 = vmatmul.mubr.f32.gmra.mxu0 %v2552
          %v2734 = vpop.f32.mrf.mxu0
          %v2735 = vadd.f32 0.0, %v2734
          %v2736 = vpop.f32.mrf.mxu0
          %2737 = vmatprep.mubr.f32.mxu0 0.0
          %2738 = vmatmul.mubr.f32.gmra.mxu0 %v2553
          %v2739 = vpop.f32.mrf.mxu0
          %v2740 = vadd.f32 0.0, %v2739
          %v2741 = vpop.f32.mrf.mxu0
          %2742 = vmatprep.mubr.f32.mxu0 0.0
          %2743 = vmatmul.mubr.f32.gmra.mxu0 %v2554
          %v2744 = vpop.f32.mrf.mxu0
          %v2745 = vadd.f32 0.0, %v2744
          %v2746 = vpop.f32.mrf.mxu0
          %2747 = vmatprep.mubr.f32.mxu0 0.0
          %2748 = vmatmul.mubr.f32.gmra.mxu0 %v2555
          %v2749 = vpop.f32.mrf.mxu0
          %v2750 = vadd.f32 0.0, %v2749
          %v2751 = vpop.f32.mrf.mxu0
          %2752 = vdwg.mxu0
          %v2753 = vld [vmem:[%s23] sm:$0xff]
          %v2754 = vld [vmem:[%s24] sm:$0xff]
          %v2756 = vsel %vm1265, %v2754, 0
          %2758 = vmatprep.subr.mxu0 0.0
          %2759 = vmatpush1.msra.mxu0 0.0
          %2760 = vmatprep.subr.mxu0 0.0
          %2761 = vmatpush1.msra.mxu0 0.0
          %2762 = vmatprep.subr.mxu0 0.0
          %2763 = vmatpush1.msra.mxu0 0.0
          %2764 = vmatprep.subr.mxu0 0.0
          %2765 = vmatpush1.msra.mxu0 0.0
          %2766 = vmatprep.subr.mxu0 0.0
          %2767 = vmatpush1.msra.mxu0 0.0
          %2768 = vmatprep.subr.mxu0 0.0
          %2769 = vmatpush1.msra.mxu0 0.0
          %2770 = vmatprep.subr.mxu0 0.0
          %2771 = vmatpush1.msra.mxu0 0.0
          %2772 = vmatprep.subr.mxu0 0.0
          %2773 = vmatpush1.msra.mxu0 0.0
          %2774 = vmatprep.subr.mxu0 0.0
          %2775 = vmatpush1.msra.mxu0 0.0
          %2776 = vmatprep.subr.mxu0 0.0
          %2777 = vmatpush1.msra.mxu0 0.0
          %2778 = vmatprep.subr.mxu0 0.0
          %2779 = vmatpush1.msra.mxu0 0.0
          %2780 = vmatprep.subr.mxu0 0.0
          %2781 = vmatpush1.msra.mxu0 0.0
          %2782 = vmatprep.subr.mxu0 0.0
          %2783 = vmatpush1.msra.mxu0 %v2750
          %2784 = vmatprep.subr.mxu0 0.0
          %2785 = vmatpush1.msra.mxu0 %v2745
          %2786 = vmatprep.subr.mxu0 0.0
          %2787 = vmatpush1.msra.mxu0 %v2740
          %2788 = vmatprep.subr.mxu0 0.0
          %2789 = vmatpush1.msra.mxu0 %v2735
          %2790 = vmatprep.subr.mxu0 0.0
          %2791 = vmatpush2.msra.mxu0 0.0
          %2792 = vmatprep.subr.mxu0 0.0
          %2793 = vmatpush2.msra.mxu0 0.0
          %2794 = vmatprep.subr.mxu0 0.0
          %2795 = vmatpush2.msra.mxu0 0.0
          %2796 = vmatprep.subr.mxu0 0.0
          %2797 = vmatpush2.msra.mxu0 0.0
          %2798 = vmatprep.subr.mxu0 0.0
          %2799 = vmatpush2.msra.mxu0 0.0
          %2800 = vmatprep.subr.mxu0 0.0
          %2801 = vmatpush2.msra.mxu0 0.0
          %2802 = vmatprep.subr.mxu0 0.0
          %2803 = vmatpush2.msra.mxu0 0.0
          %2804 = vmatprep.subr.mxu0 0.0
          %2805 = vmatpush2.msra.mxu0 0.0
          %2806 = vmatprep.subr.mxu0 0.0
          %2807 = vmatpush2.msra.mxu0 0.0
          %2808 = vmatprep.subr.mxu0 0.0
          %2809 = vmatpush2.msra.mxu0 0.0
          %2810 = vmatprep.subr.mxu0 0.0
          %2811 = vmatpush2.msra.mxu0 0.0
          %2812 = vmatprep.subr.mxu0 0.0
          %2813 = vmatpush2.msra.mxu0 0.0
          %2814 = vmatprep.subr.mxu0 0.0
          %2815 = vmatpush2.msra.mxu0 0.0
          %2816 = vmatprep.subr.mxu0 0.0
          %2817 = vmatpush2.msra.mxu0 0.0
          %2818 = vmatprep.subr.mxu0 0.0
          %2819 = vmatpush2.msra.mxu0 0.0
          %2820 = vmatprep.subr.mxu0 0.0
          %2821 = vmatpush2.msra.mxu0 0.0
          %2822 = vmatprep.mubr.f32.mxu0 0.0
          %2823 = vmatmul.mubr.f32.gmra.mxu0 %v2756
          %v2824 = vpop.f32.mrf.mxu0
          %v2825 = vadd.f32 0.0, %v2824
          %v2826 = vpop.f32.mrf.mxu0
          %2827 = vdwg.mxu0
          %v2829 = vsel %vm1265, %v2753, 0
          %2831 = vmatprep.subr.mxu0 0.0
          %2832 = vmatpush1.msra.mxu0 0.0
          %2833 = vmatprep.subr.mxu0 0.0
          %2834 = vmatpush1.msra.mxu0 0.0
          %2835 = vmatprep.subr.mxu0 0.0
          %2836 = vmatpush1.msra.mxu0 0.0
          %2837 = vmatprep.subr.mxu0 0.0
          %2838 = vmatpush1.msra.mxu0 0.0
          %2839 = vmatprep.subr.mxu0 0.0
          %2840 = vmatpush1.msra.mxu0 0.0
          %2841 = vmatprep.subr.mxu0 0.0
          %2842 = vmatpush1.msra.mxu0 0.0
          %2843 = vmatprep.subr.mxu0 0.0
          %2844 = vmatpush1.msra.mxu0 0.0
          %2845 = vmatprep.subr.mxu0 0.0
          %2846 = vmatpush1.msra.mxu0 0.0
          %2847 = vmatprep.subr.mxu0 0.0
          %2848 = vmatpush1.msra.mxu0 0.0
          %2849 = vmatprep.subr.mxu0 0.0
          %2850 = vmatpush1.msra.mxu0 0.0
          %2851 = vmatprep.subr.mxu0 0.0
          %2852 = vmatpush1.msra.mxu0 0.0
          %2853 = vmatprep.subr.mxu0 0.0
          %2854 = vmatpush1.msra.mxu0 0.0
          %2855 = vmatprep.subr.mxu0 0.0
          %2856 = vmatpush1.msra.mxu0 %v2419
          %2857 = vmatprep.subr.mxu0 0.0
          %2858 = vmatpush1.msra.mxu0 %v2418
          %2859 = vmatprep.subr.mxu0 0.0
          %2860 = vmatpush1.msra.mxu0 %v2417
          %2861 = vmatprep.subr.mxu0 0.0
          %2862 = vmatpush1.msra.mxu0 %v2416
          %2863 = vmatprep.subr.mxu0 0.0
          %2864 = vmatpush2.msra.mxu0 0.0
          %2865 = vmatprep.subr.mxu0 0.0
          %2866 = vmatpush2.msra.mxu0 0.0
          %2867 = vmatprep.subr.mxu0 0.0
          %2868 = vmatpush2.msra.mxu0 0.0
          %2869 = vmatprep.subr.mxu0 0.0
          %2870 = vmatpush2.msra.mxu0 0.0
          %2871 = vmatprep.subr.mxu0 0.0
          %2872 = vmatpush2.msra.mxu0 0.0
          %2873 = vmatprep.subr.mxu0 0.0
          %2874 = vmatpush2.msra.mxu0 0.0
          %2875 = vmatprep.subr.mxu0 0.0
          %2876 = vmatpush2.msra.mxu0 0.0
          %2877 = vmatprep.subr.mxu0 0.0
          %2878 = vmatpush2.msra.mxu0 0.0
          %2879 = vmatprep.subr.mxu0 0.0
          %2880 = vmatpush2.msra.mxu0 0.0
          %2881 = vmatprep.subr.mxu0 0.0
          %2882 = vmatpush2.msra.mxu0 0.0
          %2883 = vmatprep.subr.mxu0 0.0
          %2884 = vmatpush2.msra.mxu0 0.0
          %2885 = vmatprep.subr.mxu0 0.0
          %2886 = vmatpush2.msra.mxu0 0.0
          %2887 = vmatprep.subr.mxu0 0.0
          %2888 = vmatpush2.msra.mxu0 0.0
          %2889 = vmatprep.subr.mxu0 0.0
          %2890 = vmatpush2.msra.mxu0 0.0
          %2891 = vmatprep.subr.mxu0 0.0
          %2892 = vmatpush2.msra.mxu0 0.0
          %2893 = vmatprep.subr.mxu0 0.0
          %2894 = vmatpush2.msra.mxu0 0.0
          %2895 = vmatprep.mubr.f32.mxu0 0.0
          %2896 = vmatmul.mubr.f32.gmra.mxu0 %v2829
          %v2897 = vpop.f32.mrf.mxu0
          %v2898 = vadd.f32 %v2825, %v2897
          %v2899 = vpop.f32.mrf.mxu0
          %2900 = vdwg.mxu0
          %v2901 = vld [vmem:[%s25] sm:$0xff]
          %2903 = vset.pattern.permute.xlu0 0
          %2904 = vperm.xlu0 %2903, %v2901
          %v2905 = vpop.permute.xlu0 %2904
          %v2907 = vadd.f32 %v2898, %v2905
          %2908 = vst [vmem:[#allocation4] sm:$0xff] %v2907
        $region140: #{tpu_custom_call.1} parent=123 // pred_fallthru
          _
        // Predicated region
        $region141: #{tpu_custom_call.1} parent=123 // pred_check
          %p2909 = pneg %p624
        $region142: #{tpu_custom_call.1} parent=123 // pred_check_branch
          %2911 = sbr.rel (%p2909) target = $region144
        $region143: #{tpu_custom_call.1} parent=123 // pred_region
          %s2913 = ssub.s32 128, 128
          %2914 = vsyncadd [#allocation5], %s2913
          %s2916 = sshll.u32 [#allocation4], 4
          %s2917 = int_to_ptr.vmem [resolvable:$true] %s2916
          %2919 = dma.vmem_to_hbm [thread:$0]  %s2917, 128, %s26, [#allocation5]
        $region144: #{tpu_custom_call.1} parent=123 // pred_fallthru
          _
        // Predicated region
        $region145: #{tpu_custom_call.1} parent=123 // pred_check
          %p2920 = pneg %p624
        $region146: #{tpu_custom_call.1} parent=123 // pred_check_branch
          %2922 = sbr.rel (%p2920) target = $region148
        $region147: #{tpu_custom_call.1} parent=123 // pred_region
          %2923 = dma.done [#allocation5], 128
        $region148: #{tpu_custom_call.1} parent=123 // pred_fallthru
          _
      $region124: #{tpu_custom_call.1} parent=5 // pred_fallthru
        _
      %p2924 = scmp.le.s32.totalorder 2, %s33
      // Predicated region
      $region149: #{tpu_custom_call.1} parent=5 // pred_check
        %p2925 = pneg %p2924
      $region150: #{tpu_custom_call.1} parent=5 // pred_check_branch
        %2927 = sbr.rel (%p2925) target = $region152
      $region151: #{tpu_custom_call.1} parent=5 // pred_region
        %s2928 = ssub.s32 %s33, 2
      $region152: #{tpu_custom_call.1} parent=5 // pred_fallthru
        _
    $region6: #{tpu_custom_call.1} parent=1 // loop_footer
      %s37 = sadd.s32 1, %s33
    $region7: #{tpu_custom_call.1} parent=1 // loop_footer_branch
      %32 = sbr.rel target = $region3
    $region8: #{tpu_custom_call.1} parent=1 // loop_exit
      _
    %2929 = vsyncpa [#allocation5], 1
    %s2930 = scalar_lea.sflag [#allocation5], 1
    %2931 = vsyncpa %s2930, 1

</llo_original>
